<compile_context>
chip_gen: v7x
topology: tpu7x:2x2x1
jax: 0.10.0
libtpu: 0.0.40
codegen_flags: <defaults>
</compile_context>

<pallas_src>
import functools
import math

import jax
import jax.numpy as jnp
import numpy as np
from jax.experimental import pallas as pl
from jax.experimental.pallas import tpu as pltpu

INV_SQRT2 = 1.0 / math.sqrt(2.0)
EPS = 1e-5  # PyTorch InstanceNorm2d default


# ----------------------------------------------------------------------------
# In-kernel helpers (pure functions on VMEM values)
# ----------------------------------------------------------------------------
def _leaky_relu(x):
    return jnp.where(x > 0, x, 0.2 * x)


def _instance_norm(x, eps):
    # x: (H, W, C); per-channel stats over H*W (biased variance, like PyTorch).
    n = x.shape[0] * x.shape[1]
    s = jnp.sum(x, axis=1, keepdims=True)
    mean = jnp.sum(s, axis=0, keepdims=True) * (1.0 / n)      # (1, 1, C)
    d = x - mean
    s2 = jnp.sum(d * d, axis=1, keepdims=True)
    var = jnp.sum(s2, axis=0, keepdims=True) * (1.0 / n)      # (1, 1, C)
    return d * jax.lax.rsqrt(var + eps)


def _avg_pool2(a):
    # a: (H, W, C) -> (H//2, W//2, C), 2x2 mean (stride 2).
    H, W, C = a.shape
    a = a.reshape(H // 2, 2, W, C)
    a = a[:, 0] + a[:, 1]
    a = a.reshape(H // 2, W // 2, 2, C)
    a = a[:, :, 0] + a[:, :, 1]
    return a * 0.25


# ----------------------------------------------------------------------------
# Fused conv kernel:  [norm] -> [lrelu] -> KxK conv -> [+bias] -> [pool]
#                     -> [ + shortcut(optionally 1x1-conv, optionally pooled) ]
#                     -> [ * out_scale ]
# ----------------------------------------------------------------------------
def _fused_conv_kernel(*refs, pad, norm, act_in, pool_out, has_bias,
                       has_sc, sc_has_conv, sc_pool, out_scale, eps):
    it = iter(refs)
    x_ref = next(it)
    gb_ref = next(it) if norm == 'adain' else None
    if norm == 'affine':
        inw_ref = next(it)
        inb_ref = next(it)
    w_ref = next(it)
    b_ref = next(it) if has_bias else None
    sc_ref = next(it) if has_sc else None
    scw_ref = next(it) if (has_sc and sc_has_conv) else None
    o_ref = next(it)
    xp_ref = next(it) if pad > 0 else None

    x = x_ref[0].astype(jnp.float32)                    # (H, W, Cin)
    H, W, Cin = x.shape
    K = w_ref.shape[0]
    Cout = w_ref.shape[-1]
    Hc = H + 2 * pad - K + 1
    Wc = W + 2 * pad - K + 1

    # ---- pre-conv pointwise ops (fused) ----
    if norm == 'affine':
        x = _instance_norm(x, eps) * inw_ref[...] + inb_ref[...]
    elif norm == 'adain':
        gb = gb_ref[0]                                   # (2, Cin): [gamma; beta]
        x = (1.0 + gb[0:1]) * _instance_norm(x, eps) + gb[1:2]
    if act_in:
        x = _leaky_relu(x)

    # ---- zero padding inside VMEM (no HBM round-trip in the wrapper) ----
    if pad > 0:
        xp_ref[...] = jnp.zeros_like(xp_ref)
        xp_ref[pad:pad + H, pad:pad + W, :] = x
        xp = xp_ref[...]
    else:
        xp = x

    # ---- KxK conv as K*K 2-D MXU matmuls, flat f32 accumulator ----
    acc = jnp.zeros((Hc * Wc, Cout), jnp.float32)
    for kh in range(K):
        for kw in range(K):
            patch = xp[kh:kh + Hc, kw:kw + Wc, :].reshape(Hc * Wc, Cin)
            acc = acc + jnp.dot(patch, w_ref[kh, kw],
                                preferred_element_type=jnp.float32)
    if has_bias:
        acc = acc + b_ref[...]                           # (1, Cout) broadcast
    acc = acc.reshape(Hc, Wc, Cout)

    # ---- fused 2x2 avg-pool epilogue ----
    if pool_out:
        acc = _avg_pool2(acc)

    # ---- fused shortcut branch + residual add ----
    if has_sc:
        sc = sc_ref[0].astype(jnp.float32)               # (Hs, Ws, Csc)
        if sc_has_conv:
            Hs, Ws, Csc = sc.shape
            sc = jnp.dot(sc.reshape(Hs * Ws, Csc), scw_ref[...],
                         preferred_element_type=jnp.float32).reshape(Hs, Ws, Cout)
        if sc_pool:
            sc = _avg_pool2(sc)
        acc = acc + sc

    if out_scale != 1.0:
        acc = acc * out_scale

    o_ref[...] = acc[None].astype(o_ref.dtype)


def fused_conv(x, w, b=None, *, pad, norm=None, in_w=None, in_b=None, gb=None,
               act_in=False, pool_out=False, sc=None, sc_w=None, sc_pool=False,
               out_scale=1.0):
    """x: (B, H, W, Cin) NHWC; w: (K, K, Cin, Cout); b: (Cout,) or None.

    norm: None | 'affine' (in_w/in_b per-channel) | 'adain' (gb: (B, 2, Cin)).
    sc:   optional shortcut tensor (B, Hs, Ws, Csc) fused in (1x1 conv via sc_w,
          optional 2x2 pool), added to the conv result before out_scale.
    """
    B, H, W, Cin = x.shape
    K = w.shape[0]
    Cout = w.shape[-1]
    Hc = H + 2 * pad - K + 1
    Wc = W + 2 * pad - K + 1
    Ho = Hc // 2 if pool_out else Hc
    Wo = Wc // 2 if pool_out else Wc

    in_specs = [pl.BlockSpec((1, H, W, Cin), lambda i: (i, 0, 0, 0))]
    args = [x]
    if norm == 'adain':
        in_specs.append(pl.BlockSpec((1, 2, Cin), lambda i: (i, 0, 0)))
        args.append(gb)
    elif norm == 'affine':
        in_specs.append(pl.BlockSpec((1, Cin), lambda i: (0, 0)))
        args.append(in_w.reshape(1, Cin))
        in_specs.append(pl.BlockSpec((1, Cin), lambda i: (0, 0)))
        args.append(in_b.reshape(1, Cin))
    in_specs.append(pl.BlockSpec((K, K, Cin, Cout), lambda i: (0, 0, 0, 0)))
    args.append(w)
    has_bias = b is not None
    if has_bias:
        in_specs.append(pl.BlockSpec((1, Cout), lambda i: (0, 0)))
        args.append(b.reshape(1, Cout))
    has_sc = sc is not None
    sc_has_conv = sc_w is not None
    if has_sc:
        _, Hs, Ws, Csc = sc.shape
        in_specs.append(pl.BlockSpec((1, Hs, Ws, Csc), lambda i: (i, 0, 0, 0)))
        args.append(sc)
        if sc_has_conv:
            in_specs.append(pl.BlockSpec((Csc, Cout), lambda i: (0, 0)))
            args.append(sc_w)

    scratch = []
    if pad > 0:
        scratch.append(pltpu.VMEM((H + 2 * pad, W + 2 * pad, Cin), jnp.float32))

    kernel = functools.partial(
        _fused_conv_kernel, pad=pad, norm=norm, act_in=act_in, pool_out=pool_out,
        has_bias=has_bias, has_sc=has_sc, sc_has_conv=sc_has_conv,
        sc_pool=sc_pool, out_scale=out_scale, eps=EPS)

    return pl.pallas_call(
        kernel,
        out_shape=jax.ShapeDtypeStruct((B, Ho, Wo, Cout), x.dtype),
        grid=(B,),
        in_specs=in_specs,
        out_specs=pl.BlockSpec((1, Ho, Wo, Cout), lambda i: (i, 0, 0, 0)),
        scratch_shapes=scratch,
        compiler_params=pltpu.CompilerParams(
            dimension_semantics=("parallel",)),  # batch iterations independent (v7x 2-TC)
    )(*args)


# ----------------------------------------------------------------------------
# AdaIN fc: one pallas_call over the full batch (no per-sample grid steps)
# ----------------------------------------------------------------------------
def _linear_kernel(s_ref, w_ref, b_ref, o_ref):
    # s: (B, S), w: (2C, S), b: (1, 2C) -> o: (B, 2C) = s @ w.T + b
    out = jax.lax.dot_general(s_ref[...], w_ref[...], (((1,), (1,)), ((), ())),
                              preferred_element_type=jnp.float32)
    o_ref[...] = (out + b_ref[...]).astype(o_ref.dtype)


def adain_fc(s, w, b):
    """s: (B, style_dim), w: (2C, style_dim), b: (2C,) -> (B, 2, C)."""
    B, S = s.shape
    C2 = w.shape[0]
    out = pl.pallas_call(
        _linear_kernel,
        out_shape=jax.ShapeDtypeStruct((B, C2), jnp.float32),
        in_specs=[pl.BlockSpec((B, S), lambda: (0, 0)),
                  pl.BlockSpec((C2, S), lambda: (0, 0)),
                  pl.BlockSpec((1, C2), lambda: (0, 0))],
        out_specs=pl.BlockSpec((B, C2), lambda: (0, 0)),
    )(s, w, b.reshape(1, C2))
    return out.reshape(B, 2, C2 // 2)   # [:, 0, :] = gamma, [:, 1, :] = beta


# ----------------------------------------------------------------------------
# Nearest 2x upsample (pure data movement, done with XLA in the wrapper)
# ----------------------------------------------------------------------------
def _upsample_nearest_2x(x):
    # TODO(synk): fuse into the following conv kernel (sub-pixel weight folding)
    # to remove this extra HBM pass.
    B, H, W, C = x.shape
    x = jnp.broadcast_to(x[:, :, None, :, None, :], (B, H, 2, W, 2, C))
    return x.reshape(B, 2 * H, 2 * W, C)


# ----------------------------------------------------------------------------
# Generator forward (Pallas)
# ----------------------------------------------------------------------------
def generator_forward(params, x_nchw, s):
    x = jnp.transpose(x_nchw, (0, 2, 3, 1))                       # NHWC
    x = fused_conv(x, params['from_rgb_w'], params['from_rgb_b'], pad=1)

    # ---- encoder: ResidualBlock(normalize=True, downsample=maybe) ----
    for blk in params['encode']:
        down = blk['downsample']
        # residual part 1: IN1 -> lrelu -> conv1 -> (pool)   (fused)
        r = fused_conv(x, blk['conv1_w'], blk['conv1_b'], pad=1,
                       norm='affine', in_w=blk['norm1_w'], in_b=blk['norm1_b'],
                       act_in=True, pool_out=down)
        # residual part 2 + fused shortcut(+1x1 conv, +pool) + add + /sqrt(2)
        x = fused_conv(r, blk['conv2_w'], blk['conv2_b'], pad=1,
                       norm='affine', in_w=blk['norm2_w'], in_b=blk['norm2_b'],
                       act_in=True,
                       sc=x, sc_w=blk['sc_w'], sc_pool=down,
                       out_scale=INV_SQRT2)

    # ---- decoder: AdainResidualBlock(upsample=maybe) ----
    for blk in params['decode']:
        gb1 = adain_fc(s, blk['fc1_w'], blk['fc1_b'])    # (B, 2, Cin_blk)
        gb2 = adain_fc(s, blk['fc2_w'], blk['fc2_b'])    # (B, 2, Cout_blk)
        if blk['upsample']:
            # nearest upsample commutes exactly with AdaIN+LeakyReLU (stats identical),
            # so AdaIN1/lrelu are fused into the conv that consumes the upsampled map.
            xu = _upsample_nearest_2x(x)
            r = fused_conv(xu, blk['conv1_w'], blk['conv1_b'], pad=1,
                           norm='adain', gb=gb1, act_in=True)
            x = fused_conv(r, blk['conv2_w'], blk['conv2_b'], pad=1,
                           norm='adain', gb=gb2, act_in=True,
                           sc=xu, sc_w=blk['sc_w'],
                           out_scale=INV_SQRT2)
        else:
            r = fused_conv(x, blk['conv1_w'], blk['conv1_b'], pad=1,
                           norm='adain', gb=gb1, act_in=True)
            x = fused_conv(r, blk['conv2_w'], blk['conv2_b'], pad=1,
                           norm='adain', gb=gb2, act_in=True,
                           sc=x, sc_w=blk['sc_w'],
                           out_scale=INV_SQRT2)

    # ---- to_rgb: IN(affine) -> lrelu -> 1x1 conv (+bias)   (fused, K=1) ----
    x = fused_conv(x, params['to_rgb_w'], params['to_rgb_b'], pad=0,
                   norm='affine', in_w=params['to_rgb_in_w'],
                   in_b=params['to_rgb_in_b'], act_in=True)
    return jnp.transpose(x, (0, 3, 1, 2))                         # back to NCHW


# ----------------------------------------------------------------------------
# Pure-JAX reference (follows the PyTorch module op-by-op)
# ----------------------------------------------------------------------------
def ref_forward(params, x_nchw, s):
    def conv(x, w, b, pad):
        o = jax.lax.conv_general_dilated(
            x, w, (1, 1), [(pad, pad), (pad, pad)],
            dimension_numbers=('NHWC', 'HWIO', 'NHWC'))
        if b is not None:
            o = o + b.reshape(1, 1, 1, -1)
        return o

    def inorm(x):
        m = x.mean(axis=(1, 2), keepdims=True)
        v = ((x - m) ** 2).mean(axis=(1, 2), keepdims=True)
        return (x - m) / jnp.sqrt(v + EPS)

    def pool(x):
        B, H, W, C = x.shape
        return x.reshape(B, H // 2, 2, W // 2, 2, C).mean(axis=(2, 4))

    def up(x):
        return jnp.repeat(jnp.repeat(x, 2, axis=1), 2, axis=2)

    lrelu = _leaky_relu

    x = jnp.transpose(x_nchw, (0, 2, 3, 1))
    x = conv(x, params['from_rgb_w'], params['from_rgb_b'], 1)
    for blk in params['encode']:
        sc = x
        if blk['sc_w'] is not None:
            sc = conv(sc, blk['sc_w'].reshape(1, 1, *blk['sc_w'].shape), None, 0)
        if blk['downsample']:
            sc = pool(sc)
        r = inorm(x) * blk['norm1_w'] + blk['norm1_b']
        r = conv(lrelu(r), blk['conv1_w'], blk['conv1_b'], 1)
        if blk['downsample']:
            r = pool(r)
        r = inorm(r) * blk['norm2_w'] + blk['norm2_b']
        r = conv(lrelu(r), blk['conv2_w'], blk['conv2_b'], 1)
        x = (sc + r) * INV_SQRT2
    for blk in params['decode']:
        h1 = s @ blk['fc1_w'].T + blk['fc1_b']
        g1, b1 = jnp.split(h1, 2, axis=1)
        h2 = s @ blk['fc2_w'].T + blk['fc2_b']
        g2, b2 = jnp.split(h2, 2, axis=1)
        sc = x
        if blk['upsample']:
            sc = up(sc)
        if blk['sc_w'] is not None:
            sc = conv(sc, blk['sc_w'].reshape(1, 1, *blk['sc_w'].shape), None, 0)
        r = (1.0 + g1[:, None, None, :]) * inorm(x) + b1[:, None, None, :]
        r = lrelu(r)
        if blk['upsample']:
            r = up(r)
        r = conv(r, blk['conv1_w'], blk['conv1_b'], 1)
        r = (1.0 + g2[:, None, None, :]) * inorm(r) + b2[:, None, None, :]
        r = conv(lrelu(r), blk['conv2_w'], blk['conv2_b'], 1)
        x = (r + sc) * INV_SQRT2
    x = inorm(x) * params['to_rgb_in_w'] + params['to_rgb_in_b']
    x = conv(lrelu(x), params['to_rgb_w'], params['to_rgb_b'], 0)
    return jnp.transpose(x, (0, 3, 1, 2))


# ----------------------------------------------------------------------------
# Deterministic synthetic parameters (same structure as the PyTorch Generator)
# ----------------------------------------------------------------------------
def init_params(key, *, dim_in, max_conv_dim, style_dim, repeat_num, n_bottleneck=2):
    state = {'k': key}

    def rnd(shape, scale=0.1):
        state['k'], sub = jax.random.split(state['k'])
        return scale * jax.random.normal(sub, shape, jnp.float32)

    params = {
        'from_rgb_w': rnd((3, 3, 3, dim_in)),
        'from_rgb_b': rnd((dim_in,)),
    }
    encode, decode_build = [], []
    d_in = dim_in
    for _ in range(repeat_num):
        d_out = min(d_in * 2, max_conv_dim)
        encode.append({
            'downsample': True,
            'norm1_w': 1.0 + rnd((d_in,)), 'norm1_b': rnd((d_in,)),
            'conv1_w': rnd((3, 3, d_in, d_in)), 'conv1_b': rnd((d_in,)),
            'norm2_w': 1.0 + rnd((d_in,)), 'norm2_b': rnd((d_in,)),
            'conv2_w': rnd((3, 3, d_in, d_out)), 'conv2_b': rnd((d_out,)),
            'sc_w': rnd((d_in, d_out)) if d_in != d_out else None,
        })
        decode_build.append({            # AdainResidualBlock(d_out -> d_in, upsample)
            'upsample': True,
            'fc1_w': rnd((2 * d_out, style_dim)), 'fc1_b': rnd((2 * d_out,)),
            'conv1_w': rnd((3, 3, d_out, d_in)), 'conv1_b': rnd((d_in,)),
            'fc2_w': rnd((2 * d_in, style_dim)), 'fc2_b': rnd((2 * d_in,)),
            'conv2_w': rnd((3, 3, d_in, d_in)), 'conv2_b': rnd((d_in,)),
            'sc_w': rnd((d_out, d_in)) if d_in != d_out else None,
        })
        d_in = d_out
    for _ in range(n_bottleneck):
        encode.append({
            'downsample': False,
            'norm1_w': 1.0 + rnd((d_in,)), 'norm1_b': rnd((d_in,)),
            'conv1_w': rnd((3, 3, d_in, d_in)), 'conv1_b': rnd((d_in,)),
            'norm2_w': 1.0 + rnd((d_in,)), 'norm2_b': rnd((d_in,)),
            'conv2_w': rnd((3, 3, d_in, d_in)), 'conv2_b': rnd((d_in,)),
            'sc_w': None,
        })
        decode_build.append({            # AdainResidualBlock(d_in -> d_in)
            'upsample': False,
            'fc1_w': rnd((2 * d_in, style_dim)), 'fc1_b': rnd((2 * d_in,)),
            'conv1_w': rnd((3, 3, d_in, d_in)), 'conv1_b': rnd((d_in,)),
            'fc2_w': rnd((2 * d_in, style_dim)), 'fc2_b': rnd((2 * d_in,)),
            'conv2_w': rnd((3, 3, d_in, d_in)), 'conv2_b': rnd((d_in,)),
            'sc_w': None,
        })
    params['encode'] = encode
    params['decode'] = decode_build[::-1]          # same reversal as the PyTorch module
    params['to_rgb_in_w'] = 1.0 + rnd((dim_in,))
    params['to_rgb_in_b'] = rnd((dim_in,))
    params['to_rgb_w'] = rnd((1, 1, dim_in, 3))
    params['to_rgb_b'] = rnd((3,))
    return params


if __name__ == "__main__":
    # Scaled-down but structurally identical config (real: img_size=256, repeat_num=4,
    # dim_in=2**14//img_size, max_conv_dim=512).
    B = 2
    img_size = 16
    repeat_num = 2
    dim_in = 32
    max_conv_dim = 64
    style_dim = 64

    key = jax.random.PRNGKey(0)
    kp, kx, ks = jax.random.split(key, 3)
    params = init_params(kp, dim_in=dim_in, max_conv_dim=max_conv_dim,
                         style_dim=style_dim, repeat_num=repeat_num)
    x = jax.random.normal(kx, (B, 3, img_size, img_size), jnp.float32)   # NCHW like PyTorch
    s = jax.random.normal(ks, (B, style_dim), jnp.float32)               # style code

    out = generator_forward(params, x, s)
    out = jax.block_until_ready(out)
    assert out.shape == (B, 3, img_size, img_size), out.shape

    ref = ref_forward(params, x, s)
    np.testing.assert_allclose(np.asarray(out), np.asarray(ref), rtol=1e-3, atol=1e-3)
    print("KERNEL_OK")
</pallas_src>

<mosaic_0001>
module attributes {stable_mosaic.version = 11 : i64} {
  func.func @_fused_conv_kernel(%arg0: i32, %arg1: memref<1x16x16x3xf32, #tpu.memory_space<vmem>>, %arg2: memref<3x3x3x32xf32, #tpu.memory_space<vmem>>, %arg3: memref<1x32xf32, #tpu.memory_space<vmem>>, %arg4: memref<1x16x16x32xf32, #tpu.memory_space<vmem>>, %arg5: memref<18x18x3xf32, #tpu.memory_space<vmem>>) attributes {dimension_semantics = [#tpu.dimension_semantics<parallel>], iteration_bounds = array<i64: 2>, scalar_prefetch = 0 : i64, scratch_operands = 1 : i64, tpu.core_type = #tpu.core_type<tc>, window_params = [{transform_indices = @transform_0, window_bounds = array<i64: 1, 16, 16, 3>}, {pipeline_mode = #tpu.pipeline_mode<synchronous>, transform_indices = @transform_1, window_bounds = array<i64: 3, 3, 3, 32>}, {pipeline_mode = #tpu.pipeline_mode<synchronous>, transform_indices = @transform_2, window_bounds = array<i64: 1, 32>}, {transform_indices = @transform_3, window_bounds = array<i64: 1, 16, 16, 32>}]} {
    %c0 = arith.constant 0 : index
    %c0_0 = arith.constant 0 : index
    %c0_1 = arith.constant 0 : index
    %c0_2 = arith.constant 0 : index
    %0 = vector.load %arg1[%c0, %c0_0, %c0_1, %c0_2] : memref<1x16x16x3xf32, #tpu.memory_space<vmem>>, vector<1x16x16x3xf32>
    %1 = vector.shape_cast %0 : vector<1x16x16x3xf32> to vector<16x16x3xf32>
    %cst = arith.constant 0.000000e+00 : f32
    %2 = vector.broadcast %cst : f32 to vector<18x18x3xf32>
    %c0_3 = arith.constant 0 : index
    %c0_4 = arith.constant 0 : index
    %c0_5 = arith.constant 0 : index
    %3 = vector.load %arg5[%c0_3, %c0_4, %c0_5] : memref<18x18x3xf32, #tpu.memory_space<vmem>>, vector<18x18x3xf32>
    tpu.vector_store %arg5[%c0_3, %c0_4, %c0_5], %2 {strides = array<i32>} : memref<18x18x3xf32, #tpu.memory_space<vmem>>, vector<18x18x3xf32>,
    %c1 = arith.constant 1 : index
    %c1_6 = arith.constant 1 : index
    %c0_7 = arith.constant 0 : index
    %4 = vector.load %arg5[%c1, %c1_6, %c0_7] : memref<18x18x3xf32, #tpu.memory_space<vmem>>, vector<16x16x3xf32>
    tpu.vector_store %arg5[%c1, %c1_6, %c0_7], %1 {strides = array<i32>} : memref<18x18x3xf32, #tpu.memory_space<vmem>>, vector<16x16x3xf32>,
    %c0_8 = arith.constant 0 : index
    %c0_9 = arith.constant 0 : index
    %c0_10 = arith.constant 0 : index
    %5 = vector.load %arg5[%c0_8, %c0_9, %c0_10] : memref<18x18x3xf32, #tpu.memory_space<vmem>>, vector<18x18x3xf32>
    %cst_11 = arith.constant 0.000000e+00 : f32
    %6 = vector.broadcast %cst_11 : f32 to vector<256x32xf32>
    %7 = vector.extract_strided_slice %5 {offsets = [0, 0, 0], sizes = [16, 16, 3], strides = [1, 1, 1]} : vector<18x18x3xf32> to vector<16x16x3xf32>
    %8 = vector.shape_cast %7 : vector<16x16x3xf32> to vector<256x3xf32>
    %c0_12 = arith.constant 0 : index
    %c0_13 = arith.constant 0 : index
    %c0_14 = arith.constant 0 : index
    %c0_15 = arith.constant 0 : index
    %9 = vector.load %arg2[%c0_12, %c0_13, %c0_14, %c0_15] : memref<3x3x3x32xf32, #tpu.memory_space<vmem>>, vector<1x1x3x32xf32>
    %10 = vector.shape_cast %9 : vector<1x1x3x32xf32> to vector<3x32xf32>
    %cst_16 = arith.constant dense<0.000000e+00> : vector<256x32xf32>
    %11 = tpu.matmul %8, %10, %cst_16 {dimension_numbers = #tpu.dot_dimension_numbers<[1], [0], [0], [1], [0, 0, 1, 1], [], []>} : vector<256x3xf32>, vector<3x32xf32>, vector<256x32xf32> -> vector<256x32xf32>
    %12 = arith.addf %6, %11 : vector<256x32xf32>
    %13 = vector.extract_strided_slice %5 {offsets = [0, 1, 0], sizes = [16, 16, 3], strides = [1, 1, 1]} : vector<18x18x3xf32> to vector<16x16x3xf32>
    %14 = vector.shape_cast %13 : vector<16x16x3xf32> to vector<256x3xf32>
    %c0_17 = arith.constant 0 : index
    %c1_18 = arith.constant 1 : index
    %c0_19 = arith.constant 0 : index
    %c0_20 = arith.constant 0 : index
    %15 = vector.load %arg2[%c0_17, %c1_18, %c0_19, %c0_20] : memref<3x3x3x32xf32, #tpu.memory_space<vmem>>, vector<1x1x3x32xf32>
    %16 = vector.shape_cast %15 : vector<1x1x3x32xf32> to vector<3x32xf32>
    %cst_21 = arith.constant dense<0.000000e+00> : vector<256x32xf32>
    %17 = tpu.matmul %14, %16, %cst_21 {dimension_numbers = #tpu.dot_dimension_numbers<[1], [0], [0], [1], [0, 0, 1, 1], [], []>} : vector<256x3xf32>, vector<3x32xf32>, vector<256x32xf32> -> vector<256x32xf32>
    %18 = arith.addf %12, %17 : vector<256x32xf32>
    %19 = vector.extract_strided_slice %5 {offsets = [0, 2, 0], sizes = [16, 16, 3], strides = [1, 1, 1]} : vector<18x18x3xf32> to vector<16x16x3xf32>
    %20 = vector.shape_cast %19 : vector<16x16x3xf32> to vector<256x3xf32>
    %c0_22 = arith.constant 0 : index
    %c2 = arith.constant 2 : index
    %c0_23 = arith.constant 0 : index
    %c0_24 = arith.constant 0 : index
    %21 = vector.load %arg2[%c0_22, %c2, %c0_23, %c0_24] : memref<3x3x3x32xf32, #tpu.memory_space<vmem>>, vector<1x1x3x32xf32>
    %22 = vector.shape_cast %21 : vector<1x1x3x32xf32> to vector<3x32xf32>
    %cst_25 = arith.constant dense<0.000000e+00> : vector<256x32xf32>
    %23 = tpu.matmul %20, %22, %cst_25 {dimension_numbers = #tpu.dot_dimension_numbers<[1], [0], [0], [1], [0, 0, 1, 1], [], []>} : vector<256x3xf32>, vector<3x32xf32>, vector<256x32xf32> -> vector<256x32xf32>
    %24 = arith.addf %18, %23 : vector<256x32xf32>
    %25 = vector.extract_strided_slice %5 {offsets = [1, 0, 0], sizes = [16, 16, 3], strides = [1, 1, 1]} : vector<18x18x3xf32> to vector<16x16x3xf32>
    %26 = vector.shape_cast %25 : vector<16x16x3xf32> to vector<256x3xf32>
    %c1_26 = arith.constant 1 : index
    %c0_27 = arith.constant 0 : index
    %c0_28 = arith.constant 0 : index
    %c0_29 = arith.constant 0 : index
    %27 = vector.load %arg2[%c1_26, %c0_27, %c0_28, %c0_29] : memref<3x3x3x32xf32, #tpu.memory_space<vmem>>, vector<1x1x3x32xf32>
    %28 = vector.shape_cast %27 : vector<1x1x3x32xf32> to vector<3x32xf32>
    %cst_30 = arith.constant dense<0.000000e+00> : vector<256x32xf32>
    %29 = tpu.matmul %26, %28, %cst_30 {dimension_numbers = #tpu.dot_dimension_numbers<[1], [0], [0], [1], [0, 0, 1, 1], [], []>} : vector<256x3xf32>, vector<3x32xf32>, vector<256x32xf32> -> vector<256x32xf32>
    %30 = arith.addf %24, %29 : vector<256x32xf32>
    %31 = vector.extract_strided_slice %5 {offsets = [1, 1, 0], sizes = [16, 16, 3], strides = [1, 1, 1]} : vector<18x18x3xf32> to vector<16x16x3xf32>
    %32 = vector.shape_cast %31 : vector<16x16x3xf32> to vector<256x3xf32>
    %c1_31 = arith.constant 1 : index
    %c1_32 = arith.constant 1 : index
    %c0_33 = arith.constant 0 : index
    %c0_34 = arith.constant 0 : index
    %33 = vector.load %arg2[%c1_31, %c1_32, %c0_33, %c0_34] : memref<3x3x3x32xf32, #tpu.memory_space<vmem>>, vector<1x1x3x32xf32>
    %34 = vector.shape_cast %33 : vector<1x1x3x32xf32> to vector<3x32xf32>
    %cst_35 = arith.constant dense<0.000000e+00> : vector<256x32xf32>
    %35 = tpu.matmul %32, %34, %cst_35 {dimension_numbers = #tpu.dot_dimension_numbers<[1], [0], [0], [1], [0, 0, 1, 1], [], []>} : vector<256x3xf32>, vector<3x32xf32>, vector<256x32xf32> -> vector<256x32xf32>
    %36 = arith.addf %30, %35 : vector<256x32xf32>
    %37 = vector.extract_strided_slice %5 {offsets = [1, 2, 0], sizes = [16, 16, 3], strides = [1, 1, 1]} : vector<18x18x3xf32> to vector<16x16x3xf32>
    %38 = vector.shape_cast %37 : vector<16x16x3xf32> to vector<256x3xf32>
    %c1_36 = arith.constant 1 : index
    %c2_37 = arith.constant 2 : index
    %c0_38 = arith.constant 0 : index
    %c0_39 = arith.constant 0 : index
    %39 = vector.load %arg2[%c1_36, %c2_37, %c0_38, %c0_39] : memref<3x3x3x32xf32, #tpu.memory_space<vmem>>, vector<1x1x3x32xf32>
    %40 = vector.shape_cast %39 : vector<1x1x3x32xf32> to vector<3x32xf32>
    %cst_40 = arith.constant dense<0.000000e+00> : vector<256x32xf32>
    %41 = tpu.matmul %38, %40, %cst_40 {dimension_numbers = #tpu.dot_dimension_numbers<[1], [0], [0], [1], [0, 0, 1, 1], [], []>} : vector<256x3xf32>, vector<3x32xf32>, vector<256x32xf32> -> vector<256x32xf32>
    %42 = arith.addf %36, %41 : vector<256x32xf32>
    %43 = vector.extract_strided_slice %5 {offsets = [2, 0, 0], sizes = [16, 16, 3], strides = [1, 1, 1]} : vector<18x18x3xf32> to vector<16x16x3xf32>
    %44 = vector.shape_cast %43 : vector<16x16x3xf32> to vector<256x3xf32>
    %c2_41 = arith.constant 2 : index
    %c0_42 = arith.constant 0 : index
    %c0_43 = arith.constant 0 : index
    %c0_44 = arith.constant 0 : index
    %45 = vector.load %arg2[%c2_41, %c0_42, %c0_43, %c0_44] : memref<3x3x3x32xf32, #tpu.memory_space<vmem>>, vector<1x1x3x32xf32>
    %46 = vector.shape_cast %45 : vector<1x1x3x32xf32> to vector<3x32xf32>
    %cst_45 = arith.constant dense<0.000000e+00> : vector<256x32xf32>
    %47 = tpu.matmul %44, %46, %cst_45 {dimension_numbers = #tpu.dot_dimension_numbers<[1], [0], [0], [1], [0, 0, 1, 1], [], []>} : vector<256x3xf32>, vector<3x32xf32>, vector<256x32xf32> -> vector<256x32xf32>
    %48 = arith.addf %42, %47 : vector<256x32xf32>
    %49 = vector.extract_strided_slice %5 {offsets = [2, 1, 0], sizes = [16, 16, 3], strides = [1, 1, 1]} : vector<18x18x3xf32> to vector<16x16x3xf32>
    %50 = vector.shape_cast %49 : vector<16x16x3xf32> to vector<256x3xf32>
    %c2_46 = arith.constant 2 : index
    %c1_47 = arith.constant 1 : index
    %c0_48 = arith.constant 0 : index
    %c0_49 = arith.constant 0 : index
    %51 = vector.load %arg2[%c2_46, %c1_47, %c0_48, %c0_49] : memref<3x3x3x32xf32, #tpu.memory_space<vmem>>, vector<1x1x3x32xf32>
    %52 = vector.shape_cast %51 : vector<1x1x3x32xf32> to vector<3x32xf32>
    %cst_50 = arith.constant dense<0.000000e+00> : vector<256x32xf32>
    %53 = tpu.matmul %50, %52, %cst_50 {dimension_numbers = #tpu.dot_dimension_numbers<[1], [0], [0], [1], [0, 0, 1, 1], [], []>} : vector<256x3xf32>, vector<3x32xf32>, vector<256x32xf32> -> vector<256x32xf32>
    %54 = arith.addf %48, %53 : vector<256x32xf32>
    %55 = vector.extract_strided_slice %5 {offsets = [2, 2, 0], sizes = [16, 16, 3], strides = [1, 1, 1]} : vector<18x18x3xf32> to vector<16x16x3xf32>
    %56 = vector.shape_cast %55 : vector<16x16x3xf32> to vector<256x3xf32>
    %c2_51 = arith.constant 2 : index
    %c2_52 = arith.constant 2 : index
    %c0_53 = arith.constant 0 : index
    %c0_54 = arith.constant 0 : index
    %57 = vector.load %arg2[%c2_51, %c2_52, %c0_53, %c0_54] : memref<3x3x3x32xf32, #tpu.memory_space<vmem>>, vector<1x1x3x32xf32>
    %58 = vector.shape_cast %57 : vector<1x1x3x32xf32> to vector<3x32xf32>
    %cst_55 = arith.constant dense<0.000000e+00> : vector<256x32xf32>
    %59 = tpu.matmul %56, %58, %cst_55 {dimension_numbers = #tpu.dot_dimension_numbers<[1], [0], [0], [1], [0, 0, 1, 1], [], []>} : vector<256x3xf32>, vector<3x32xf32>, vector<256x32xf32> -> vector<256x32xf32>
    %60 = arith.addf %54, %59 : vector<256x32xf32>
    %c0_56 = arith.constant 0 : index
    %c0_57 = arith.constant 0 : index
    %61 = vector.load %arg3[%c0_56, %c0_57] : memref<1x32xf32, #tpu.memory_space<vmem>>, vector<1x32xf32>
    %62 = vector.broadcast %61 : vector<1x32xf32> to vector<256x32xf32>
    %63 = arith.addf %60, %62 : vector<256x32xf32>
    %64 = vector.shape_cast %63 : vector<256x32xf32> to vector<16x16x32xf32>
    %65 = vector.shape_cast %64 : vector<16x16x32xf32> to vector<1x16x16x32xf32>
    %c0_58 = arith.constant 0 : index
    %c0_59 = arith.constant 0 : index
    %c0_60 = arith.constant 0 : index
    %c0_61 = arith.constant 0 : index
    %66 = vector.load %arg4[%c0_58, %c0_59, %c0_60, %c0_61] : memref<1x16x16x32xf32, #tpu.memory_space<vmem>>, vector<1x16x16x32xf32>
    tpu.vector_store %arg4[%c0_58, %c0_59, %c0_60, %c0_61], %65 {strides = array<i32>} : memref<1x16x16x32xf32, #tpu.memory_space<vmem>>, vector<1x16x16x32xf32>,
    return
  }
  func.func @transform_0(%arg0: i32) -> (i32, i32, i32, i32) {
    %c0_i32 = arith.constant 0 : i32
    %c0_i32_0 = arith.constant 0 : i32
    %c0_i32_1 = arith.constant 0 : i32
    %c0_i32_2 = arith.constant 0 : i32
    return %arg0, %c0_i32, %c0_i32_0, %c0_i32_1 : i32, i32, i32, i32
  }
  func.func @transform_1(%arg0: i32) -> (i32, i32, i32, i32) {
    %c0_i32 = arith.constant 0 : i32
    %c0_i32_0 = arith.constant 0 : i32
    %c0_i32_1 = arith.constant 0 : i32
    %c0_i32_2 = arith.constant 0 : i32
    %c0_i32_3 = arith.constant 0 : i32
    return %c0_i32, %c0_i32_0, %c0_i32_1, %c0_i32_2 : i32, i32, i32, i32
  }
  func.func @transform_2(%arg0: i32) -> (i32, i32) {
    %c0_i32 = arith.constant 0 : i32
    %c0_i32_0 = arith.constant 0 : i32
    %c0_i32_1 = arith.constant 0 : i32
    return %c0_i32, %c0_i32_0 : i32, i32
  }
  func.func @transform_3(%arg0: i32) -> (i32, i32, i32, i32) {
    %c0_i32 = arith.constant 0 : i32
    %c0_i32_0 = arith.constant 0 : i32
    %c0_i32_1 = arith.constant 0 : i32
    %c0_i32_2 = arith.constant 0 : i32
    return %arg0, %c0_i32, %c0_i32_0, %c0_i32_1 : i32, i32, i32, i32
  }
}

</mosaic_0001>

<llo_original>
// kernel: tpu_custom_call.1
$region0: #{tpu_custom_call.1}
  #allocation0 [shape = 'u32[]', space=smem, size = 0x4, offset = 0x4, fixed_abs, tag = 'smem constant byte address 0x4 - core index']
  #allocation1 [shape = 'u32[144,128]{1,0:T(1,128)}', space=vmem, size = 0x12000, scoped, tag = 'internal scratch']
  #allocation2 [shape = 'f32[18,18,3]{2,1,0:T(8,128)}', space=vmem, size = 0x36000, scoped, tag = 'scratch operand']
  %s0 = inlined_call_operand.vmem [shape: f32[2,16,16,3], index: 0, kind: input, shape index: {}]
  %s1 = inlined_call_operand.vmem [shape: f32[3,3,3,32], index: 1, kind: input, shape index: {}]
  %s2 = inlined_call_operand.vmem [shape: f32[1,32], index: 2, kind: input, shape index: {}]
  %s3 = inlined_call_operand.hbm [shape: f32[2,16,16,32], index: 3, kind: output, shape index: {}]
  %s4 = sld [smem:[#allocation0]]
  $region45: #{tpu_custom_call.1} parent=0
    _
  %s6 = ssub.s32 1, %s4
  %s7 = scalar_select 0, %s6, %s4
  $region1: #{tpu_custom_call.1} parent=0
    #allocation3 [shape = 'u8[262144]{0}', space=vmem, size = 0x40000, scoped, tag = 'output window, operand 0']
    #allocation4 [shape = 's32[2]{0}', space=sflag, size = 0x8, scoped, tag = 'scoped memory for tpu_custom_call.1']
    %8 = vsyncpa [#allocation4], 0
    %s9 = scalar_lea.sflag [#allocation4], 1
    %10 = vsyncpa %s9, 0
    loop: start=0, step=1, limit=4
    $region2: #{tpu_custom_call.1} parent=1 // loop_pre_header
      _
    $region3: #{tpu_custom_call.1} parent=1 // loop_header
      %s12 = sphi 0, %s16
      %p13 = scmp.ge.s32.totalorder %s12, 4
      %s22 = sphi 0, %s24
      %s25 = sphi 0, %s22
      %s26 = sphi 0, %s25
      %s42 = sphi 0, %s26
      %s46 = sphi 0, %s46
      %s48 = sphi 0, %s46
      %s49 = sphi 0, %s48
      %s63 = sphi 0, %s49
      %s67 = sphi 0, %s67
      %s69 = sphi 0, %s67
      %s70 = sphi 0, %s69
      %s84 = sphi 0, %s70
      %s90 = sphi 0, %s92
      %s93 = sphi 0, %s90
      %s94 = sphi 0, %s93
      %s110 = sphi 0, %s94
    $region4: #{tpu_custom_call.1} parent=1 // loop_header_branch
      %15 = sbr.rel (%p13) target = $region8
    $region5: #{tpu_custom_call.1} parent=1 // loop_body
      %s17 = ssub.s32 %s12, 1
      %s18 = ssub.s32 %s12, 2
      %s19 = sadd.s32 %s12, 1
      %s20 = ssub.s32 %s12, %s19
      %p21 = scmp.eq.s32.totalorder %s20, 0
      %s23 = sadd.s32 %s22, 1
      %s24 = scalar_select %p21, %s22, %s23
      %p27 = pneg %p21
      %p28 = scmp.eq.s32.totalorder %s12, 1
      %p29 = por %p27, %p28
      %p30 = scmp.ne.s32.totalorder %s22, %s25
      %p31 = scmp.eq.s32.totalorder %s12, 0
      %p32 = por %p30, %p31
      %p33 = scmp.ne.s32.totalorder %s22, %s25
      %p34 = scmp.eq.s32.totalorder %s17, 1
      %p35 = por %p33, %p34
      %p36 = scmp.ne.s32.totalorder %s25, %s26
      %p37 = scmp.eq.s32.totalorder %s17, 0
      %p38 = por %p36, %p37
      %p39 = scmp.ne.s32.totalorder %s25, %s26
      %p40 = scmp.eq.s32.totalorder %s18, 1
      %p41 = por %p39, %p40
      %p43 = scmp.ne.s32.totalorder %s26, %s42
      %p44 = scmp.eq.s32.totalorder %s18, 0
      %p45 = por %p43, %p44
      %s47 = sadd.s32 %s46, 1
      %p50 = scmp.eq.s32.totalorder %s12, 1
      %p51 = scmp.ne.s32.totalorder %s46, %s48
      %p52 = scmp.eq.s32.totalorder %s12, 0
      %p53 = por %p51, %p52
      %p54 = scmp.ne.s32.totalorder %s46, %s48
      %p55 = scmp.eq.s32.totalorder %s17, 1
      %p56 = por %p54, %p55
      %p57 = scmp.ne.s32.totalorder %s48, %s49
      %p58 = scmp.eq.s32.totalorder %s17, 0
      %p59 = por %p57, %p58
      %p60 = scmp.ne.s32.totalorder %s48, %s49
      %p61 = scmp.eq.s32.totalorder %s18, 1
      %p62 = por %p60, %p61
      %p64 = scmp.ne.s32.totalorder %s49, %s63
      %p65 = scmp.eq.s32.totalorder %s18, 0
      %p66 = por %p64, %p65
      %s68 = sadd.s32 %s67, 1
      %p71 = scmp.eq.s32.totalorder %s12, 1
      %p72 = scmp.ne.s32.totalorder %s67, %s69
      %p73 = scmp.eq.s32.totalorder %s12, 0
      %p74 = por %p72, %p73
      %p75 = scmp.ne.s32.totalorder %s67, %s69
      %p76 = scmp.eq.s32.totalorder %s17, 1
      %p77 = por %p75, %p76
      %p78 = scmp.ne.s32.totalorder %s69, %s70
      %p79 = scmp.eq.s32.totalorder %s17, 0
      %p80 = por %p78, %p79
      %p81 = scmp.ne.s32.totalorder %s69, %s70
      %p82 = scmp.eq.s32.totalorder %s18, 1
      %p83 = por %p81, %p82
      %p85 = scmp.ne.s32.totalorder %s70, %s84
      %p86 = scmp.eq.s32.totalorder %s18, 0
      %p87 = por %p85, %p86
      %s88 = ssub.s32 %s12, %s19
      %p89 = scmp.eq.s32.totalorder %s88, 0
      %s91 = sadd.s32 %s90, 1
      %s92 = scalar_select %p89, %s90, %s91
      %p95 = pneg %p89
      %p96 = scmp.eq.s32.totalorder %s12, 1
      %p97 = por %p95, %p96
      %p98 = scmp.ne.s32.totalorder %s90, %s93
      %p99 = scmp.eq.s32.totalorder %s12, 0
      %p100 = por %p98, %p99
      %p101 = scmp.ne.s32.totalorder %s90, %s93
      %p102 = scmp.eq.s32.totalorder %s17, 1
      %p103 = por %p101, %p102
      %p104 = scmp.ne.s32.totalorder %s93, %s94
      %p105 = scmp.eq.s32.totalorder %s17, 0
      %p106 = por %p104, %p105
      %p107 = scmp.ne.s32.totalorder %s93, %s94
      %p108 = scmp.eq.s32.totalorder %s18, 1
      %p109 = por %p107, %p108
      %p111 = scmp.ne.s32.totalorder %s94, %s110
      %p112 = scmp.eq.s32.totalorder %s18, 0
      %p113 = por %p111, %p112
      %p114 = scmp.le.s32.totalorder 1, %s12
      %p115 = scmp.lt.s32.totalorder %s12, 3
      %p116 = pnand %p114, %p115
      %p117 = pneg %p116
      // Predicated region
      $region9: #{tpu_custom_call.1} parent=5 // pred_check
        _
      $region10: #{tpu_custom_call.1} parent=5 // pred_check_branch
        %119 = sbr.rel (%p116) target = $region12
      $region11: #{tpu_custom_call.1} parent=5 // pred_region
        %s120 = ssub.s32 %s12, 1
        // Predicated region
        $region13: #{tpu_custom_call.1} parent=11 // pred_check
          %p121 = pneg %p59
        $region14: #{tpu_custom_call.1} parent=11 // pred_check_branch
          %123 = sbr.rel (%p121) target = $region16
        $region15: #{tpu_custom_call.1} parent=11 // pred_region
          _
        $region16: #{tpu_custom_call.1} parent=11 // pred_fallthru
          _
        // Predicated region
        $region17: #{tpu_custom_call.1} parent=11 // pred_check
          %p124 = pneg %p80
        $region18: #{tpu_custom_call.1} parent=11 // pred_check_branch
          %126 = sbr.rel (%p124) target = $region20
        $region19: #{tpu_custom_call.1} parent=11 // pred_region
          _
        $region20: #{tpu_custom_call.1} parent=11 // pred_fallthru
          _
      $region12: #{tpu_custom_call.1} parent=5 // pred_fallthru
        _
      %p127 = scmp.lt.s32.totalorder %s12, 2
      // Predicated region
      $region21: #{tpu_custom_call.1} parent=5 // pred_check
        %p128 = pneg %p127
      $region22: #{tpu_custom_call.1} parent=5 // pred_check_branch
        %130 = sbr.rel (%p128) target = $region24
      $region23: #{tpu_custom_call.1} parent=5 // pred_region
        // Predicated region
        $region25: #{tpu_custom_call.1} parent=23 // pred_check
          %p131 = pneg %p32
        $region26: #{tpu_custom_call.1} parent=23 // pred_check_branch
          %133 = sbr.rel (%p131) target = $region28
        $region27: #{tpu_custom_call.1} parent=23 // pred_region
          %p134 = scmp.lt.s32.totalorder %s12, 1
          %s135 = scalar_select %p134, %s12, 1
          %s136 = smul.addr %s135, 32
          %s137 = smul.addr %s136, 8
          %s138 = scalar_lea.vmem %s0, %s137
        $region28: #{tpu_custom_call.1} parent=23 // pred_fallthru
          _
      $region24: #{tpu_custom_call.1} parent=5 // pred_fallthru
        _
      %p139 = scmp.le.s32.totalorder 1, %s12
      %p140 = scmp.lt.s32.totalorder %s12, 3
      %p141 = pnand %p139, %p140
      %p142 = pneg %p141
      // Predicated region
      $region29: #{tpu_custom_call.1} parent=5 // pred_check
        _
      $region30: #{tpu_custom_call.1} parent=5 // pred_check_branch
        %144 = sbr.rel (%p141) target = $region32
      $region31: #{tpu_custom_call.1} parent=5 // pred_region
        %s145 = ssub.s32 %s12, 1
        %p146 = scmp.lt.s32.totalorder %s17, 1
        %s147 = scalar_select %p146, %s17, 1
        %s148 = smul.addr %s147, 32
        %s149 = smul.addr %s148, 8
        %s150 = scalar_lea.vmem %s0, %s149
        %p151 = pneg %p38
        %p152 = pneg %p35
        %p153 = pneg %p59
        %p154 = pneg %p56
        %p155 = pneg %p80
        %p156 = pneg %p77
        %p157 = pneg %p106
        %p158 = pneg %p103
        %s159 = sand.u32 %s93, 1
        %s160 = scalar_lea.sflag [#allocation4], %s159
        %s161 = sand.u32 %s93, 1
        %s162 = smul.addr %s161, 256
        %s163 = scalar_lea.vmem [#allocation3], %s162
        %p164 = scmp.lt.s32.totalorder %s17, 1
        %s165 = scalar_select %p164, %s17, 1
        %s166 = smul.addr %s165, 32
        %s167 = smul.addr %s166, 8
        %s168 = scalar_lea.vmem %s0, %s167
        %v169 = vld [vmem:[%s168] sm:$0xff]
        %v170 = vld [vmem:[%s168 + $0x8] sm:$0xff]
        %v171 = vld [vmem:[%s168 + $0x10] sm:$0xff]
        %v172 = vld [vmem:[%s168 + $0x18] sm:$0xff]
        %v173 = vld [vmem:[%s168 + $0x20] sm:$0xff]
        %v174 = vld [vmem:[%s168 + $0x28] sm:$0xff]
        %v175 = vld [vmem:[%s168 + $0x30] sm:$0xff]
        %v176 = vld [vmem:[%s168 + $0x38] sm:$0xff]
        %v177 = vld [vmem:[%s168 + $0x40] sm:$0xff]
        %v178 = vld [vmem:[%s168 + $0x48] sm:$0xff]
        %v179 = vld [vmem:[%s168 + $0x50] sm:$0xff]
        %v180 = vld [vmem:[%s168 + $0x58] sm:$0xff]
        %v181 = vld [vmem:[%s168 + $0x60] sm:$0xff]
        %v182 = vld [vmem:[%s168 + $0x68] sm:$0xff]
        %v183 = vld [vmem:[%s168 + $0x70] sm:$0xff]
        %v184 = vld [vmem:[%s168 + $0x78] sm:$0xff]
        %v185 = vld [vmem:[%s168 + $0x80] sm:$0xff]
        %v186 = vld [vmem:[%s168 + $0x88] sm:$0xff]
        %v187 = vld [vmem:[%s168 + $0x90] sm:$0xff]
        %v188 = vld [vmem:[%s168 + $0x98] sm:$0xff]
        %v189 = vld [vmem:[%s168 + $0xa0] sm:$0xff]
        %v190 = vld [vmem:[%s168 + $0xa8] sm:$0xff]
        %v191 = vld [vmem:[%s168 + $0xb0] sm:$0xff]
        %v192 = vld [vmem:[%s168 + $0xb8] sm:$0xff]
        %v193 = vld [vmem:[%s168 + $0xc0] sm:$0xff]
        %v194 = vld [vmem:[%s168 + $0xc8] sm:$0xff]
        %v195 = vld [vmem:[%s168 + $0xd0] sm:$0xff]
        %v196 = vld [vmem:[%s168 + $0xd8] sm:$0xff]
        %v197 = vld [vmem:[%s168 + $0xe0] sm:$0xff]
        %v198 = vld [vmem:[%s168 + $0xe8] sm:$0xff]
        %v199 = vld [vmem:[%s168 + $0xf0] sm:$0xff]
        %v200 = vld [vmem:[%s168 + $0xf8] sm:$0xff]
        %vm201 = vcmask 23552
        %202 = vst.msk [vmem:[#allocation2] sm:$0xff] %vm201, 0.0
        %203 = vst.msk [vmem:[#allocation2 + $0x8] sm:$0xff] %vm201, 0.0
        %vm204 = vcmask 17408
        %205 = vst.msk [vmem:[#allocation2 + $0x10] sm:$0x3] %vm204, 0.0
        %206 = vst.msk [vmem:[#allocation2 + $0x18] sm:$0xff] %vm201, 0.0
        %207 = vst.msk [vmem:[#allocation2 + $0x20] sm:$0xff] %vm201, 0.0
        %208 = vst.msk [vmem:[#allocation2 + $0x28] sm:$0x3] %vm204, 0.0
        %209 = vst.msk [vmem:[#allocation2 + $0x30] sm:$0xff] %vm201, 0.0
        %210 = vst.msk [vmem:[#allocation2 + $0x38] sm:$0xff] %vm201, 0.0
        %211 = vst.msk [vmem:[#allocation2 + $0x40] sm:$0x3] %vm204, 0.0
        %212 = vst.msk [vmem:[#allocation2 + $0x48] sm:$0xff] %vm201, 0.0
        %213 = vst.msk [vmem:[#allocation2 + $0x50] sm:$0xff] %vm201, 0.0
        %214 = vst.msk [vmem:[#allocation2 + $0x58] sm:$0x3] %vm204, 0.0
        %215 = vst.msk [vmem:[#allocation2 + $0x60] sm:$0xff] %vm201, 0.0
        %216 = vst.msk [vmem:[#allocation2 + $0x68] sm:$0xff] %vm201, 0.0
        %217 = vst.msk [vmem:[#allocation2 + $0x70] sm:$0x3] %vm204, 0.0
        %218 = vst.msk [vmem:[#allocation2 + $0x78] sm:$0xff] %vm201, 0.0
        %219 = vst.msk [vmem:[#allocation2 + $0x80] sm:$0xff] %vm201, 0.0
        %220 = vst.msk [vmem:[#allocation2 + $0x88] sm:$0x3] %vm204, 0.0
        %221 = vst.msk [vmem:[#allocation2 + $0x90] sm:$0xff] %vm201, 0.0
        %222 = vst.msk [vmem:[#allocation2 + $0x98] sm:$0xff] %vm201, 0.0
        %223 = vst.msk [vmem:[#allocation2 + $0xa0] sm:$0x3] %vm204, 0.0
        %224 = vst.msk [vmem:[#allocation2 + $0xa8] sm:$0xff] %vm201, 0.0
        %225 = vst.msk [vmem:[#allocation2 + $0xb0] sm:$0xff] %vm201, 0.0
        %226 = vst.msk [vmem:[#allocation2 + $0xb8] sm:$0x3] %vm204, 0.0
        %227 = vst.msk [vmem:[#allocation2 + $0xc0] sm:$0xff] %vm201, 0.0
        %228 = vst.msk [vmem:[#allocation2 + $0xc8] sm:$0xff] %vm201, 0.0
        %229 = vst.msk [vmem:[#allocation2 + $0xd0] sm:$0x3] %vm204, 0.0
        %230 = vst.msk [vmem:[#allocation2 + $0xd8] sm:$0xff] %vm201, 0.0
        %231 = vst.msk [vmem:[#allocation2 + $0xe0] sm:$0xff] %vm201, 0.0
        %232 = vst.msk [vmem:[#allocation2 + $0xe8] sm:$0x3] %vm204, 0.0
        %233 = vst.msk [vmem:[#allocation2 + $0xf0] sm:$0xff] %vm201, 0.0
        %234 = vst.msk [vmem:[#allocation2 + $0xf8] sm:$0xff] %vm201, 0.0
        %235 = vst.msk [vmem:[#allocation2 + $0x100] sm:$0x3] %vm204, 0.0
        %236 = vst.msk [vmem:[#allocation2 + $0x108] sm:$0xff] %vm201, 0.0
        %237 = vst.msk [vmem:[#allocation2 + $0x110] sm:$0xff] %vm201, 0.0
        %238 = vst.msk [vmem:[#allocation2 + $0x118] sm:$0x3] %vm204, 0.0
        %239 = vst.msk [vmem:[#allocation2 + $0x120] sm:$0xff] %vm201, 0.0
        %240 = vst.msk [vmem:[#allocation2 + $0x128] sm:$0xff] %vm201, 0.0
        %241 = vst.msk [vmem:[#allocation2 + $0x130] sm:$0x3] %vm204, 0.0
        %242 = vst.msk [vmem:[#allocation2 + $0x138] sm:$0xff] %vm201, 0.0
        %243 = vst.msk [vmem:[#allocation2 + $0x140] sm:$0xff] %vm201, 0.0
        %244 = vst.msk [vmem:[#allocation2 + $0x148] sm:$0x3] %vm204, 0.0
        %245 = vst.msk [vmem:[#allocation2 + $0x150] sm:$0xff] %vm201, 0.0
        %246 = vst.msk [vmem:[#allocation2 + $0x158] sm:$0xff] %vm201, 0.0
        %247 = vst.msk [vmem:[#allocation2 + $0x160] sm:$0x3] %vm204, 0.0
        %248 = vst.msk [vmem:[#allocation2 + $0x168] sm:$0xff] %vm201, 0.0
        %249 = vst.msk [vmem:[#allocation2 + $0x170] sm:$0xff] %vm201, 0.0
        %250 = vst.msk [vmem:[#allocation2 + $0x178] sm:$0x3] %vm204, 0.0
        %251 = vst.msk [vmem:[#allocation2 + $0x180] sm:$0xff] %vm201, 0.0
        %252 = vst.msk [vmem:[#allocation2 + $0x188] sm:$0xff] %vm201, 0.0
        %253 = vst.msk [vmem:[#allocation2 + $0x190] sm:$0x3] %vm204, 0.0
        %254 = vst.msk [vmem:[#allocation2 + $0x198] sm:$0xff] %vm201, 0.0
        %255 = vst.msk [vmem:[#allocation2 + $0x1a0] sm:$0xff] %vm201, 0.0
        %256 = vst.msk [vmem:[#allocation2 + $0x1a8] sm:$0x3] %vm204, 0.0
        %s257 = scalar_lea.vmem [#allocation2], 24
        %258 = vst.msk [vmem:[%s257 + $0x1] sm:$0xff] %vm201, %v169
        %259 = vst.msk [vmem:[%s257 + $0x9] sm:$0xff] %vm201, %v170
        %260 = vst.msk [vmem:[%s257 + $0x19] sm:$0xff] %vm201, %v171
        %261 = vst.msk [vmem:[%s257 + $0x21] sm:$0xff] %vm201, %v172
        %262 = vst.msk [vmem:[%s257 + $0x31] sm:$0xff] %vm201, %v173
        %263 = vst.msk [vmem:[%s257 + $0x39] sm:$0xff] %vm201, %v174
        %264 = vst.msk [vmem:[%s257 + $0x49] sm:$0xff] %vm201, %v175
        %265 = vst.msk [vmem:[%s257 + $0x51] sm:$0xff] %vm201, %v176
        %266 = vst.msk [vmem:[%s257 + $0x61] sm:$0xff] %vm201, %v177
        %267 = vst.msk [vmem:[%s257 + $0x69] sm:$0xff] %vm201, %v178
        %268 = vst.msk [vmem:[%s257 + $0x79] sm:$0xff] %vm201, %v179
        %269 = vst.msk [vmem:[%s257 + $0x81] sm:$0xff] %vm201, %v180
        %270 = vst.msk [vmem:[%s257 + $0x91] sm:$0xff] %vm201, %v181
        %271 = vst.msk [vmem:[%s257 + $0x99] sm:$0xff] %vm201, %v182
        %272 = vst.msk [vmem:[%s257 + $0xa9] sm:$0xff] %vm201, %v183
        %273 = vst.msk [vmem:[%s257 + $0xb1] sm:$0xff] %vm201, %v184
        %274 = vst.msk [vmem:[%s257 + $0xc1] sm:$0xff] %vm201, %v185
        %275 = vst.msk [vmem:[%s257 + $0xc9] sm:$0xff] %vm201, %v186
        %276 = vst.msk [vmem:[%s257 + $0xd9] sm:$0xff] %vm201, %v187
        %277 = vst.msk [vmem:[%s257 + $0xe1] sm:$0xff] %vm201, %v188
        %278 = vst.msk [vmem:[%s257 + $0xf1] sm:$0xff] %vm201, %v189
        %279 = vst.msk [vmem:[%s257 + $0xf9] sm:$0xff] %vm201, %v190
        %280 = vst.msk [vmem:[%s257 + $0x109] sm:$0xff] %vm201, %v191
        %281 = vst.msk [vmem:[%s257 + $0x111] sm:$0xff] %vm201, %v192
        %282 = vst.msk [vmem:[%s257 + $0x121] sm:$0xff] %vm201, %v193
        %283 = vst.msk [vmem:[%s257 + $0x129] sm:$0xff] %vm201, %v194
        %284 = vst.msk [vmem:[%s257 + $0x139] sm:$0xff] %vm201, %v195
        %285 = vst.msk [vmem:[%s257 + $0x141] sm:$0xff] %vm201, %v196
        %286 = vst.msk [vmem:[%s257 + $0x151] sm:$0xff] %vm201, %v197
        %287 = vst.msk [vmem:[%s257 + $0x159] sm:$0xff] %vm201, %v198
        %288 = vst.msk [vmem:[%s257 + $0x169] sm:$0xff] %vm201, %v199
        %289 = vst.msk [vmem:[%s257 + $0x171] sm:$0xff] %vm201, %v200
        %v290 = vld [vmem:[#allocation2] sm:$0xff]
        %v291 = vld [vmem:[#allocation2 + $0x8] sm:$0xff]
        %v292 = vld [vmem:[#allocation2 + $0x10] sm:$0x3]
        %v293 = vld [vmem:[#allocation2 + $0x18] sm:$0xff]
        %v294 = vld [vmem:[#allocation2 + $0x20] sm:$0xff]
        %v295 = vld [vmem:[#allocation2 + $0x28] sm:$0x3]
        %v296 = vld [vmem:[#allocation2 + $0x30] sm:$0xff]
        %v297 = vld [vmem:[#allocation2 + $0x38] sm:$0xff]
        %v298 = vld [vmem:[#allocation2 + $0x40] sm:$0x3]
        %v299 = vld [vmem:[#allocation2 + $0x48] sm:$0xff]
        %v300 = vld [vmem:[#allocation2 + $0x50] sm:$0xff]
        %v301 = vld [vmem:[#allocation2 + $0x58] sm:$0x3]
        %v302 = vld [vmem:[#allocation2 + $0x60] sm:$0xff]
        %v303 = vld [vmem:[#allocation2 + $0x68] sm:$0xff]
        %v304 = vld [vmem:[#allocation2 + $0x70] sm:$0x3]
        %v305 = vld [vmem:[#allocation2 + $0x78] sm:$0xff]
        %v306 = vld [vmem:[#allocation2 + $0x80] sm:$0xff]
        %v307 = vld [vmem:[#allocation2 + $0x88] sm:$0x3]
        %v308 = vld [vmem:[#allocation2 + $0x90] sm:$0xff]
        %v309 = vld [vmem:[#allocation2 + $0x98] sm:$0xff]
        %v310 = vld [vmem:[#allocation2 + $0xa0] sm:$0x3]
        %v311 = vld [vmem:[#allocation2 + $0xa8] sm:$0xff]
        %v312 = vld [vmem:[#allocation2 + $0xb0] sm:$0xff]
        %v313 = vld [vmem:[#allocation2 + $0xb8] sm:$0x3]
        %v314 = vld [vmem:[#allocation2 + $0xc0] sm:$0xff]
        %v315 = vld [vmem:[#allocation2 + $0xc8] sm:$0xff]
        %v316 = vld [vmem:[#allocation2 + $0xd0] sm:$0x3]
        %v317 = vld [vmem:[#allocation2 + $0xd8] sm:$0xff]
        %v318 = vld [vmem:[#allocation2 + $0xe0] sm:$0xff]
        %v319 = vld [vmem:[#allocation2 + $0xe8] sm:$0x3]
        %v320 = vld [vmem:[#allocation2 + $0xf0] sm:$0xff]
        %v321 = vld [vmem:[#allocation2 + $0xf8] sm:$0xff]
        %v322 = vld [vmem:[#allocation2 + $0x100] sm:$0x3]
        %v323 = vld [vmem:[#allocation2 + $0x108] sm:$0xff]
        %v324 = vld [vmem:[#allocation2 + $0x110] sm:$0xff]
        %v325 = vld [vmem:[#allocation2 + $0x118] sm:$0x3]
        %v326 = vld [vmem:[#allocation2 + $0x120] sm:$0xff]
        %v327 = vld [vmem:[#allocation2 + $0x128] sm:$0xff]
        %v328 = vld [vmem:[#allocation2 + $0x130] sm:$0x3]
        %v329 = vld [vmem:[#allocation2 + $0x138] sm:$0xff]
        %v330 = vld [vmem:[#allocation2 + $0x140] sm:$0xff]
        %v331 = vld [vmem:[#allocation2 + $0x148] sm:$0x3]
        %v332 = vld [vmem:[#allocation2 + $0x150] sm:$0xff]
        %v333 = vld [vmem:[#allocation2 + $0x158] sm:$0xff]
        %v334 = vld [vmem:[#allocation2 + $0x160] sm:$0x3]
        %v335 = vld [vmem:[#allocation2 + $0x168] sm:$0xff]
        %v336 = vld [vmem:[#allocation2 + $0x170] sm:$0xff]
        %v337 = vld [vmem:[#allocation2 + $0x178] sm:$0x3]
        %v338 = vld [vmem:[#allocation2 + $0x180] sm:$0xff]
        %v339 = vld [vmem:[#allocation2 + $0x188] sm:$0xff]
        %v340 = vld [vmem:[#allocation2 + $0x190] sm:$0x3]
        %v341 = vld [vmem:[#allocation2 + $0x198] sm:$0xff]
        %v342 = vld [vmem:[#allocation2 + $0x1a0] sm:$0xff]
        %v343 = vld [vmem:[#allocation2 + $0x1a8] sm:$0x3]
        %v344 = vld [vmem:[%s1] sm:$0x7]
        %vm393 = vcmask 1046528
        %v394 = vrot.slane %v290, 1
        %v395 = vrot.slane %v291, 1
        %v396 = vsel %vm393, %v394, %v395
        %v397 = vrot.slane %v292, 1
        %v398 = vsel %vm393, %v395, %v397
        %v399 = vrot.slane %v293, 1
        %v400 = vrot.slane %v294, 1
        %v401 = vsel %vm393, %v399, %v400
        %v402 = vrot.slane %v295, 1
        %v403 = vsel %vm393, %v400, %v402
        %v404 = vrot.slane %v296, 1
        %v405 = vrot.slane %v297, 1
        %v406 = vsel %vm393, %v404, %v405
        %v407 = vrot.slane %v298, 1
        %v408 = vsel %vm393, %v405, %v407
        %v409 = vrot.slane %v299, 1
        %v410 = vrot.slane %v300, 1
        %v411 = vsel %vm393, %v409, %v410
        %v412 = vrot.slane %v301, 1
        %v413 = vsel %vm393, %v410, %v412
        %v414 = vrot.slane %v302, 1
        %v415 = vrot.slane %v303, 1
        %v416 = vsel %vm393, %v414, %v415
        %v417 = vrot.slane %v304, 1
        %v418 = vsel %vm393, %v415, %v417
        %v419 = vrot.slane %v305, 1
        %v420 = vrot.slane %v306, 1
        %v421 = vsel %vm393, %v419, %v420
        %v422 = vrot.slane %v307, 1
        %v423 = vsel %vm393, %v420, %v422
        %v424 = vrot.slane %v308, 1
        %v425 = vrot.slane %v309, 1
        %v426 = vsel %vm393, %v424, %v425
        %v427 = vrot.slane %v310, 1
        %v428 = vsel %vm393, %v425, %v427
        %v429 = vrot.slane %v311, 1
        %v430 = vrot.slane %v312, 1
        %v431 = vsel %vm393, %v429, %v430
        %v432 = vrot.slane %v313, 1
        %v433 = vsel %vm393, %v430, %v432
        %v434 = vrot.slane %v314, 1
        %v435 = vrot.slane %v315, 1
        %v436 = vsel %vm393, %v434, %v435
        %v437 = vrot.slane %v316, 1
        %v438 = vsel %vm393, %v435, %v437
        %v439 = vrot.slane %v317, 1
        %v440 = vrot.slane %v318, 1
        %v441 = vsel %vm393, %v439, %v440
        %v442 = vrot.slane %v319, 1
        %v443 = vsel %vm393, %v440, %v442
        %v444 = vrot.slane %v320, 1
        %v445 = vrot.slane %v321, 1
        %v446 = vsel %vm393, %v444, %v445
        %v447 = vrot.slane %v322, 1
        %v448 = vsel %vm393, %v445, %v447
        %v449 = vrot.slane %v323, 1
        %v450 = vrot.slane %v324, 1
        %v451 = vsel %vm393, %v449, %v450
        %v452 = vrot.slane %v325, 1
        %v453 = vsel %vm393, %v450, %v452
        %v454 = vrot.slane %v326, 1
        %v455 = vrot.slane %v327, 1
        %v456 = vsel %vm393, %v454, %v455
        %v457 = vrot.slane %v328, 1
        %v458 = vsel %vm393, %v455, %v457
        %v459 = vrot.slane %v329, 1
        %v460 = vrot.slane %v330, 1
        %v461 = vsel %vm393, %v459, %v460
        %v462 = vrot.slane %v331, 1
        %v463 = vsel %vm393, %v460, %v462
        %v464 = vrot.slane %v332, 1
        %v465 = vrot.slane %v333, 1
        %v466 = vsel %vm393, %v464, %v465
        %v467 = vrot.slane %v334, 1
        %v468 = vsel %vm393, %v465, %v467
        %v469 = vrot.slane %v335, 1
        %v470 = vrot.slane %v336, 1
        %v471 = vsel %vm393, %v469, %v470
        %v472 = vrot.slane %v337, 1
        %v473 = vsel %vm393, %v470, %v472
        %s474 = scalar_lea.vmem %s1, 4
        %v475 = vld [vmem:[%s474] sm:$0x7]
        %v476 = vsel %vm201, %v396, 0
        %v478 = vsel %vm201, %v398, 0
        %v480 = vsel %vm201, %v401, 0
        %v482 = vsel %vm201, %v403, 0
        %v484 = vsel %vm201, %v406, 0
        %v486 = vsel %vm201, %v408, 0
        %v488 = vsel %vm201, %v411, 0
        %v490 = vsel %vm201, %v413, 0
        %v492 = vsel %vm201, %v416, 0
        %v494 = vsel %vm201, %v418, 0
        %v496 = vsel %vm201, %v421, 0
        %v498 = vsel %vm201, %v423, 0
        %v500 = vsel %vm201, %v426, 0
        %v502 = vsel %vm201, %v428, 0
        %v504 = vsel %vm201, %v431, 0
        %v506 = vsel %vm201, %v433, 0
        %v508 = vsel %vm201, %v436, 0
        %v510 = vsel %vm201, %v438, 0
        %v512 = vsel %vm201, %v441, 0
        %v514 = vsel %vm201, %v443, 0
        %v516 = vsel %vm201, %v446, 0
        %v518 = vsel %vm201, %v448, 0
        %v520 = vsel %vm201, %v451, 0
        %v522 = vsel %vm201, %v453, 0
        %v524 = vsel %vm201, %v456, 0
        %v526 = vsel %vm201, %v458, 0
        %v528 = vsel %vm201, %v461, 0
        %v530 = vsel %vm201, %v463, 0
        %v532 = vsel %vm201, %v466, 0
        %v534 = vsel %vm201, %v468, 0
        %v536 = vsel %vm201, %v471, 0
        %v538 = vsel %vm201, %v473, 0
        %vm540 = vcmask 1042432
        %v542 = vsel %vm540, %v475, 0
        %544 = vmatprep.subr.mxu0 0.0
        %545 = vmatpush1.msra.mxu0 %v542
        %546 = vmatprep.subr.mxu0 0.0
        %547 = vmatpush1.msra.mxu0 0.0
        %548 = vmatprep.subr.mxu0 0.0
        %549 = vmatpush1.msra.mxu0 0.0
        %550 = vmatprep.subr.mxu0 0.0
        %551 = vmatpush1.msra.mxu0 0.0
        %552 = vmatprep.subr.mxu0 0.0
        %553 = vmatpush1.msra.mxu0 0.0
        %554 = vmatprep.subr.mxu0 0.0
        %555 = vmatpush1.msra.mxu0 0.0
        %556 = vmatprep.subr.mxu0 0.0
        %557 = vmatpush1.msra.mxu0 0.0
        %558 = vmatprep.subr.mxu0 0.0
        %559 = vmatpush1.msra.mxu0 0.0
        %560 = vmatprep.subr.mxu0 0.0
        %561 = vmatpush1.msra.mxu0 0.0
        %562 = vmatprep.subr.mxu0 0.0
        %563 = vmatpush1.msra.mxu0 0.0
        %564 = vmatprep.subr.mxu0 0.0
        %565 = vmatpush1.msra.mxu0 0.0
        %566 = vmatprep.subr.mxu0 0.0
        %567 = vmatpush1.msra.mxu0 0.0
        %568 = vmatprep.subr.mxu0 0.0
        %569 = vmatpush1.msra.mxu0 0.0
        %570 = vmatprep.subr.mxu0 0.0
        %571 = vmatpush1.msra.mxu0 0.0
        %572 = vmatprep.subr.mxu0 0.0
        %573 = vmatpush1.msra.mxu0 0.0
        %574 = vmatprep.subr.mxu0 0.0
        %575 = vmatpush1.msra.mxu0 0.0
        %576 = vmatprep.subr.mxu0 0.0
        %577 = vmatpush1.msra.mxu0 0.0
        %578 = vmatprep.subr.mxu0 0.0
        %579 = vmatpush1.msra.mxu0 0.0
        %580 = vmatprep.subr.mxu0 0.0
        %581 = vmatpush1.msra.mxu0 0.0
        %582 = vmatprep.subr.mxu0 0.0
        %583 = vmatpush1.msra.mxu0 0.0
        %584 = vmatprep.subr.mxu0 0.0
        %585 = vmatpush1.msra.mxu0 0.0
        %586 = vmatprep.subr.mxu0 0.0
        %587 = vmatpush1.msra.mxu0 0.0
        %588 = vmatprep.subr.mxu0 0.0
        %589 = vmatpush1.msra.mxu0 0.0
        %590 = vmatprep.subr.mxu0 0.0
        %591 = vmatpush1.msra.mxu0 0.0
        %592 = vmatprep.subr.mxu0 0.0
        %593 = vmatpush1.msra.mxu0 0.0
        %594 = vmatprep.subr.mxu0 0.0
        %595 = vmatpush1.msra.mxu0 0.0
        %596 = vmatprep.subr.mxu0 0.0
        %597 = vmatpush1.msra.mxu0 0.0
        %598 = vmatprep.subr.mxu0 0.0
        %599 = vmatpush1.msra.mxu0 0.0
        %600 = vmatprep.subr.mxu0 0.0
        %601 = vmatpush1.msra.mxu0 0.0
        %602 = vmatprep.subr.mxu0 0.0
        %603 = vmatpush1.msra.mxu0 0.0
        %604 = vmatprep.subr.mxu0 0.0
        %605 = vmatpush1.msra.mxu0 0.0
        %606 = vmatprep.subr.mxu0 0.0
        %607 = vmatpush1.msra.mxu0 0.0
        %608 = vmatprep.mubr.f32.mxu0 0.0
        %609 = vmatmul.mubr.f32.gmra.mrb[0].mxu0 %v476
        %v610 = vpop.f32.mrb[0].mxu0
        %v611 = vadd.f32 0.0, %v610
        %v612 = vpop.f32.mrb[0].mxu0
        %613 = vmatprep.mubr.f32.mxu0 0.0
        %614 = vmatmul.mubr.f32.gmra.mrb[0].mxu0 %v478
        %v615 = vpop.f32.mrb[0].mxu0
        %v616 = vadd.f32 0.0, %v615
        %v617 = vpop.f32.mrb[0].mxu0
        %618 = vmatprep.mubr.f32.mxu0 0.0
        %619 = vmatmul.mubr.f32.gmra.mrb[0].mxu0 %v480
        %v620 = vpop.f32.mrb[0].mxu0
        %v621 = vadd.f32 0.0, %v620
        %v622 = vpop.f32.mrb[0].mxu0
        %623 = vmatprep.mubr.f32.mxu0 0.0
        %624 = vmatmul.mubr.f32.gmra.mrb[0].mxu0 %v482
        %v625 = vpop.f32.mrb[0].mxu0
        %v626 = vadd.f32 0.0, %v625
        %v627 = vpop.f32.mrb[0].mxu0
        %628 = vmatprep.mubr.f32.mxu0 0.0
        %629 = vmatmul.mubr.f32.gmra.mrb[0].mxu0 %v484
        %v630 = vpop.f32.mrb[0].mxu0
        %v631 = vadd.f32 0.0, %v630
        %v632 = vpop.f32.mrb[0].mxu0
        %633 = vmatprep.mubr.f32.mxu0 0.0
        %634 = vmatmul.mubr.f32.gmra.mrb[0].mxu0 %v486
        %v635 = vpop.f32.mrb[0].mxu0
        %v636 = vadd.f32 0.0, %v635
        %v637 = vpop.f32.mrb[0].mxu0
        %638 = vmatprep.mubr.f32.mxu0 0.0
        %639 = vmatmul.mubr.f32.gmra.mrb[0].mxu0 %v488
        %v640 = vpop.f32.mrb[0].mxu0
        %v641 = vadd.f32 0.0, %v640
        %v642 = vpop.f32.mrb[0].mxu0
        %643 = vmatprep.mubr.f32.mxu0 0.0
        %644 = vmatmul.mubr.f32.gmra.mrb[0].mxu0 %v490
        %v645 = vpop.f32.mrb[0].mxu0
        %v646 = vadd.f32 0.0, %v645
        %v647 = vpop.f32.mrb[0].mxu0
        %648 = vmatprep.mubr.f32.mxu0 0.0
        %649 = vmatmul.mubr.f32.gmra.mrb[0].mxu0 %v492
        %v650 = vpop.f32.mrb[0].mxu0
        %v651 = vadd.f32 0.0, %v650
        %v652 = vpop.f32.mrb[0].mxu0
        %653 = vmatprep.mubr.f32.mxu0 0.0
        %654 = vmatmul.mubr.f32.gmra.mrb[0].mxu0 %v494
        %v655 = vpop.f32.mrb[0].mxu0
        %v656 = vadd.f32 0.0, %v655
        %v657 = vpop.f32.mrb[0].mxu0
        %658 = vmatprep.mubr.f32.mxu0 0.0
        %659 = vmatmul.mubr.f32.gmra.mrb[0].mxu0 %v496
        %v660 = vpop.f32.mrb[0].mxu0
        %v661 = vadd.f32 0.0, %v660
        %v662 = vpop.f32.mrb[0].mxu0
        %663 = vmatprep.mubr.f32.mxu0 0.0
        %664 = vmatmul.mubr.f32.gmra.mrb[0].mxu0 %v498
        %v665 = vpop.f32.mrb[0].mxu0
        %v666 = vadd.f32 0.0, %v665
        %v667 = vpop.f32.mrb[0].mxu0
        %668 = vmatprep.mubr.f32.mxu0 0.0
        %669 = vmatmul.mubr.f32.gmra.mrb[0].mxu0 %v500
        %v670 = vpop.f32.mrb[0].mxu0
        %v671 = vadd.f32 0.0, %v670
        %v672 = vpop.f32.mrb[0].mxu0
        %673 = vmatprep.mubr.f32.mxu0 0.0
        %674 = vmatmul.mubr.f32.gmra.mrb[0].mxu0 %v502
        %v675 = vpop.f32.mrb[0].mxu0
        %v676 = vadd.f32 0.0, %v675
        %v677 = vpop.f32.mrb[0].mxu0
        %678 = vmatprep.mubr.f32.mxu0 0.0
        %679 = vmatmul.mubr.f32.gmra.mrb[0].mxu0 %v504
        %v680 = vpop.f32.mrb[0].mxu0
        %v681 = vadd.f32 0.0, %v680
        %v682 = vpop.f32.mrb[0].mxu0
        %683 = vmatprep.mubr.f32.mxu0 0.0
        %684 = vmatmul.mubr.f32.gmra.mrb[0].mxu0 %v506
        %v685 = vpop.f32.mrb[0].mxu0
        %v686 = vadd.f32 0.0, %v685
        %v687 = vpop.f32.mrb[0].mxu0
        %688 = vmatprep.mubr.f32.mxu0 0.0
        %689 = vmatmul.mubr.f32.gmra.mrb[0].mxu0 %v508
        %v690 = vpop.f32.mrb[0].mxu0
        %v691 = vadd.f32 0.0, %v690
        %v692 = vpop.f32.mrb[0].mxu0
        %693 = vmatprep.mubr.f32.mxu0 0.0
        %694 = vmatmul.mubr.f32.gmra.mrb[0].mxu0 %v510
        %v695 = vpop.f32.mrb[0].mxu0
        %v696 = vadd.f32 0.0, %v695
        %v697 = vpop.f32.mrb[0].mxu0
        %698 = vmatprep.mubr.f32.mxu0 0.0
        %699 = vmatmul.mubr.f32.gmra.mrb[0].mxu0 %v512
        %v700 = vpop.f32.mrb[0].mxu0
        %v701 = vadd.f32 0.0, %v700
        %v702 = vpop.f32.mrb[0].mxu0
        %703 = vmatprep.mubr.f32.mxu0 0.0
        %704 = vmatmul.mubr.f32.gmra.mrb[0].mxu0 %v514
        %v705 = vpop.f32.mrb[0].mxu0
        %v706 = vadd.f32 0.0, %v705
        %v707 = vpop.f32.mrb[0].mxu0
        %708 = vmatprep.mubr.f32.mxu0 0.0
        %709 = vmatmul.mubr.f32.gmra.mrb[0].mxu0 %v516
        %v710 = vpop.f32.mrb[0].mxu0
        %v711 = vadd.f32 0.0, %v710
        %v712 = vpop.f32.mrb[0].mxu0
        %713 = vmatprep.mubr.f32.mxu0 0.0
        %714 = vmatmul.mubr.f32.gmra.mrb[0].mxu0 %v518
        %v715 = vpop.f32.mrb[0].mxu0
        %v716 = vadd.f32 0.0, %v715
        %v717 = vpop.f32.mrb[0].mxu0
        %718 = vmatprep.mubr.f32.mxu0 0.0
        %719 = vmatmul.mubr.f32.gmra.mrb[0].mxu0 %v520
        %v720 = vpop.f32.mrb[0].mxu0
        %v721 = vadd.f32 0.0, %v720
        %v722 = vpop.f32.mrb[0].mxu0
        %723 = vmatprep.mubr.f32.mxu0 0.0
        %724 = vmatmul.mubr.f32.gmra.mrb[0].mxu0 %v522
        %v725 = vpop.f32.mrb[0].mxu0
        %v726 = vadd.f32 0.0, %v725
        %v727 = vpop.f32.mrb[0].mxu0
        %728 = vmatprep.mubr.f32.mxu0 0.0
        %729 = vmatmul.mubr.f32.gmra.mrb[0].mxu0 %v524
        %v730 = vpop.f32.mrb[0].mxu0
        %v731 = vadd.f32 0.0, %v730
        %v732 = vpop.f32.mrb[0].mxu0
        %733 = vmatprep.mubr.f32.mxu0 0.0
        %734 = vmatmul.mubr.f32.gmra.mrb[0].mxu0 %v526
        %v735 = vpop.f32.mrb[0].mxu0
        %v736 = vadd.f32 0.0, %v735
        %v737 = vpop.f32.mrb[0].mxu0
        %738 = vmatprep.mubr.f32.mxu0 0.0
        %739 = vmatmul.mubr.f32.gmra.mrb[0].mxu0 %v528
        %v740 = vpop.f32.mrb[0].mxu0
        %v741 = vadd.f32 0.0, %v740
        %v742 = vpop.f32.mrb[0].mxu0
        %743 = vmatprep.mubr.f32.mxu0 0.0
        %744 = vmatmul.mubr.f32.gmra.mrb[0].mxu0 %v530
        %v745 = vpop.f32.mrb[0].mxu0
        %v746 = vadd.f32 0.0, %v745
        %v747 = vpop.f32.mrb[0].mxu0
        %748 = vmatprep.mubr.f32.mxu0 0.0
        %749 = vmatmul.mubr.f32.gmra.mrb[0].mxu0 %v532
        %v750 = vpop.f32.mrb[0].mxu0
        %v751 = vadd.f32 0.0, %v750
        %v752 = vpop.f32.mrb[0].mxu0
        %753 = vmatprep.mubr.f32.mxu0 0.0
        %754 = vmatmul.mubr.f32.gmra.mrb[0].mxu0 %v534
        %v755 = vpop.f32.mrb[0].mxu0
        %v756 = vadd.f32 0.0, %v755
        %v757 = vpop.f32.mrb[0].mxu0
        %758 = vmatprep.mubr.f32.mxu0 0.0
        %759 = vmatmul.mubr.f32.gmra.mrb[0].mxu0 %v536
        %v760 = vpop.f32.mrb[0].mxu0
        %v761 = vadd.f32 0.0, %v760
        %v762 = vpop.f32.mrb[0].mxu0
        %763 = vmatprep.mubr.f32.mxu0 0.0
        %764 = vmatmul.mubr.f32.gmra.mrb[0].mxu0 %v538
        %v765 = vpop.f32.mrb[0].mxu0
        %v766 = vadd.f32 0.0, %v765
        %v767 = vpop.f32.mrb[0].mxu0
        %768 = vdwg.mxu0
        %v769 = vsel %vm201, %v290, 0
        %v771 = vsel %vm201, %v291, 0
        %v773 = vsel %vm201, %v293, 0
        %v775 = vsel %vm201, %v294, 0
        %v777 = vsel %vm201, %v296, 0
        %v779 = vsel %vm201, %v297, 0
        %v781 = vsel %vm201, %v299, 0
        %v783 = vsel %vm201, %v300, 0
        %v785 = vsel %vm201, %v302, 0
        %v787 = vsel %vm201, %v303, 0
        %v789 = vsel %vm201, %v305, 0
        %v791 = vsel %vm201, %v306, 0
        %v793 = vsel %vm201, %v308, 0
        %v795 = vsel %vm201, %v309, 0
        %v797 = vsel %vm201, %v311, 0
        %v799 = vsel %vm201, %v312, 0
        %v801 = vsel %vm201, %v314, 0
        %v803 = vsel %vm201, %v315, 0
        %v805 = vsel %vm201, %v317, 0
        %v807 = vsel %vm201, %v318, 0
        %v809 = vsel %vm201, %v320, 0
        %v811 = vsel %vm201, %v321, 0
        %v813 = vsel %vm201, %v323, 0
        %v815 = vsel %vm201, %v324, 0
        %v817 = vsel %vm201, %v326, 0
        %v819 = vsel %vm201, %v327, 0
        %v821 = vsel %vm201, %v329, 0
        %v823 = vsel %vm201, %v330, 0
        %v825 = vsel %vm201, %v332, 0
        %v827 = vsel %vm201, %v333, 0
        %v829 = vsel %vm201, %v335, 0
        %v831 = vsel %vm201, %v336, 0
        %v834 = vsel %vm540, %v344, 0
        %836 = vmatprep.subr.mxu0 0.0
        %837 = vmatpush1.msra.mxu0 %v834
        %838 = vmatprep.subr.mxu0 0.0
        %839 = vmatpush1.msra.mxu0 0.0
        %840 = vmatprep.subr.mxu0 0.0
        %841 = vmatpush1.msra.mxu0 0.0
        %842 = vmatprep.subr.mxu0 0.0
        %843 = vmatpush1.msra.mxu0 0.0
        %844 = vmatprep.subr.mxu0 0.0
        %845 = vmatpush1.msra.mxu0 0.0
        %846 = vmatprep.subr.mxu0 0.0
        %847 = vmatpush1.msra.mxu0 0.0
        %848 = vmatprep.subr.mxu0 0.0
        %849 = vmatpush1.msra.mxu0 0.0
        %850 = vmatprep.subr.mxu0 0.0
        %851 = vmatpush1.msra.mxu0 0.0
        %852 = vmatprep.subr.mxu0 0.0
        %853 = vmatpush1.msra.mxu0 0.0
        %854 = vmatprep.subr.mxu0 0.0
        %855 = vmatpush1.msra.mxu0 0.0
        %856 = vmatprep.subr.mxu0 0.0
        %857 = vmatpush1.msra.mxu0 0.0
        %858 = vmatprep.subr.mxu0 0.0
        %859 = vmatpush1.msra.mxu0 0.0
        %860 = vmatprep.subr.mxu0 0.0
        %861 = vmatpush1.msra.mxu0 0.0
        %862 = vmatprep.subr.mxu0 0.0
        %863 = vmatpush1.msra.mxu0 0.0
        %864 = vmatprep.subr.mxu0 0.0
        %865 = vmatpush1.msra.mxu0 0.0
        %866 = vmatprep.subr.mxu0 0.0
        %867 = vmatpush1.msra.mxu0 0.0
        %868 = vmatprep.subr.mxu0 0.0
        %869 = vmatpush1.msra.mxu0 0.0
        %870 = vmatprep.subr.mxu0 0.0
        %871 = vmatpush1.msra.mxu0 0.0
        %872 = vmatprep.subr.mxu0 0.0
        %873 = vmatpush1.msra.mxu0 0.0
        %874 = vmatprep.subr.mxu0 0.0
        %875 = vmatpush1.msra.mxu0 0.0
        %876 = vmatprep.subr.mxu0 0.0
        %877 = vmatpush1.msra.mxu0 0.0
        %878 = vmatprep.subr.mxu0 0.0
        %879 = vmatpush1.msra.mxu0 0.0
        %880 = vmatprep.subr.mxu0 0.0
        %881 = vmatpush1.msra.mxu0 0.0
        %882 = vmatprep.subr.mxu0 0.0
        %883 = vmatpush1.msra.mxu0 0.0
        %884 = vmatprep.subr.mxu0 0.0
        %885 = vmatpush1.msra.mxu0 0.0
        %886 = vmatprep.subr.mxu0 0.0
        %887 = vmatpush1.msra.mxu0 0.0
        %888 = vmatprep.subr.mxu0 0.0
        %889 = vmatpush1.msra.mxu0 0.0
        %890 = vmatprep.subr.mxu0 0.0
        %891 = vmatpush1.msra.mxu0 0.0
        %892 = vmatprep.subr.mxu0 0.0
        %893 = vmatpush1.msra.mxu0 0.0
        %894 = vmatprep.subr.mxu0 0.0
        %895 = vmatpush1.msra.mxu0 0.0
        %896 = vmatprep.subr.mxu0 0.0
        %897 = vmatpush1.msra.mxu0 0.0
        %898 = vmatprep.subr.mxu0 0.0
        %899 = vmatpush1.msra.mxu0 0.0
        %900 = vmatprep.mubr.f32.mxu0 0.0
        %901 = vmatmul.mubr.f32.gmra.mrb[0].mxu0 %v769
        %v902 = vpop.f32.mrb[0].mxu0
        %v903 = vadd.f32 %v611, %v902
        %v904 = vpop.f32.mrb[0].mxu0
        %905 = vmatprep.mubr.f32.mxu0 0.0
        %906 = vmatmul.mubr.f32.gmra.mrb[0].mxu0 %v771
        %v907 = vpop.f32.mrb[0].mxu0
        %v908 = vadd.f32 %v616, %v907
        %v909 = vpop.f32.mrb[0].mxu0
        %910 = vmatprep.mubr.f32.mxu0 0.0
        %911 = vmatmul.mubr.f32.gmra.mrb[0].mxu0 %v773
        %v912 = vpop.f32.mrb[0].mxu0
        %v913 = vadd.f32 %v621, %v912
        %v914 = vpop.f32.mrb[0].mxu0
        %915 = vmatprep.mubr.f32.mxu0 0.0
        %916 = vmatmul.mubr.f32.gmra.mrb[0].mxu0 %v775
        %v917 = vpop.f32.mrb[0].mxu0
        %v918 = vadd.f32 %v626, %v917
        %v919 = vpop.f32.mrb[0].mxu0
        %920 = vmatprep.mubr.f32.mxu0 0.0
        %921 = vmatmul.mubr.f32.gmra.mrb[0].mxu0 %v777
        %v922 = vpop.f32.mrb[0].mxu0
        %v923 = vadd.f32 %v631, %v922
        %v924 = vpop.f32.mrb[0].mxu0
        %925 = vmatprep.mubr.f32.mxu0 0.0
        %926 = vmatmul.mubr.f32.gmra.mrb[0].mxu0 %v779
        %v927 = vpop.f32.mrb[0].mxu0
        %v928 = vadd.f32 %v636, %v927
        %v929 = vpop.f32.mrb[0].mxu0
        %930 = vmatprep.mubr.f32.mxu0 0.0
        %931 = vmatmul.mubr.f32.gmra.mrb[0].mxu0 %v781
        %v932 = vpop.f32.mrb[0].mxu0
        %v933 = vadd.f32 %v641, %v932
        %v934 = vpop.f32.mrb[0].mxu0
        %935 = vmatprep.mubr.f32.mxu0 0.0
        %936 = vmatmul.mubr.f32.gmra.mrb[0].mxu0 %v783
        %v937 = vpop.f32.mrb[0].mxu0
        %v938 = vadd.f32 %v646, %v937
        %v939 = vpop.f32.mrb[0].mxu0
        %940 = vmatprep.mubr.f32.mxu0 0.0
        %941 = vmatmul.mubr.f32.gmra.mrb[0].mxu0 %v785
        %v942 = vpop.f32.mrb[0].mxu0
        %v943 = vadd.f32 %v651, %v942
        %v944 = vpop.f32.mrb[0].mxu0
        %945 = vmatprep.mubr.f32.mxu0 0.0
        %946 = vmatmul.mubr.f32.gmra.mrb[0].mxu0 %v787
        %v947 = vpop.f32.mrb[0].mxu0
        %v948 = vadd.f32 %v656, %v947
        %v949 = vpop.f32.mrb[0].mxu0
        %950 = vmatprep.mubr.f32.mxu0 0.0
        %951 = vmatmul.mubr.f32.gmra.mrb[0].mxu0 %v789
        %v952 = vpop.f32.mrb[0].mxu0
        %v953 = vadd.f32 %v661, %v952
        %v954 = vpop.f32.mrb[0].mxu0
        %955 = vmatprep.mubr.f32.mxu0 0.0
        %956 = vmatmul.mubr.f32.gmra.mrb[0].mxu0 %v791
        %v957 = vpop.f32.mrb[0].mxu0
        %v958 = vadd.f32 %v666, %v957
        %v959 = vpop.f32.mrb[0].mxu0
        %960 = vmatprep.mubr.f32.mxu0 0.0
        %961 = vmatmul.mubr.f32.gmra.mrb[0].mxu0 %v793
        %v962 = vpop.f32.mrb[0].mxu0
        %v963 = vadd.f32 %v671, %v962
        %v964 = vpop.f32.mrb[0].mxu0
        %965 = vmatprep.mubr.f32.mxu0 0.0
        %966 = vmatmul.mubr.f32.gmra.mrb[0].mxu0 %v795
        %v967 = vpop.f32.mrb[0].mxu0
        %v968 = vadd.f32 %v676, %v967
        %v969 = vpop.f32.mrb[0].mxu0
        %970 = vmatprep.mubr.f32.mxu0 0.0
        %971 = vmatmul.mubr.f32.gmra.mrb[0].mxu0 %v797
        %v972 = vpop.f32.mrb[0].mxu0
        %v973 = vadd.f32 %v681, %v972
        %v974 = vpop.f32.mrb[0].mxu0
        %975 = vmatprep.mubr.f32.mxu0 0.0
        %976 = vmatmul.mubr.f32.gmra.mrb[0].mxu0 %v799
        %v977 = vpop.f32.mrb[0].mxu0
        %v978 = vadd.f32 %v686, %v977
        %v979 = vpop.f32.mrb[0].mxu0
        %980 = vmatprep.mubr.f32.mxu0 0.0
        %981 = vmatmul.mubr.f32.gmra.mrb[0].mxu0 %v801
        %v982 = vpop.f32.mrb[0].mxu0
        %v983 = vadd.f32 %v691, %v982
        %v984 = vpop.f32.mrb[0].mxu0
        %985 = vmatprep.mubr.f32.mxu0 0.0
        %986 = vmatmul.mubr.f32.gmra.mrb[0].mxu0 %v803
        %v987 = vpop.f32.mrb[0].mxu0
        %v988 = vadd.f32 %v696, %v987
        %v989 = vpop.f32.mrb[0].mxu0
        %990 = vmatprep.mubr.f32.mxu0 0.0
        %991 = vmatmul.mubr.f32.gmra.mrb[0].mxu0 %v805
        %v992 = vpop.f32.mrb[0].mxu0
        %v993 = vadd.f32 %v701, %v992
        %v994 = vpop.f32.mrb[0].mxu0
        %995 = vmatprep.mubr.f32.mxu0 0.0
        %996 = vmatmul.mubr.f32.gmra.mrb[0].mxu0 %v807
        %v997 = vpop.f32.mrb[0].mxu0
        %v998 = vadd.f32 %v706, %v997
        %v999 = vpop.f32.mrb[0].mxu0
        %1000 = vmatprep.mubr.f32.mxu0 0.0
        %1001 = vmatmul.mubr.f32.gmra.mrb[0].mxu0 %v809
        %v1002 = vpop.f32.mrb[0].mxu0
        %v1003 = vadd.f32 %v711, %v1002
        %v1004 = vpop.f32.mrb[0].mxu0
        %1005 = vmatprep.mubr.f32.mxu0 0.0
        %1006 = vmatmul.mubr.f32.gmra.mrb[0].mxu0 %v811
        %v1007 = vpop.f32.mrb[0].mxu0
        %v1008 = vadd.f32 %v716, %v1007
        %v1009 = vpop.f32.mrb[0].mxu0
        %1010 = vmatprep.mubr.f32.mxu0 0.0
        %1011 = vmatmul.mubr.f32.gmra.mrb[0].mxu0 %v813
        %v1012 = vpop.f32.mrb[0].mxu0
        %v1013 = vadd.f32 %v721, %v1012
        %v1014 = vpop.f32.mrb[0].mxu0
        %1015 = vmatprep.mubr.f32.mxu0 0.0
        %1016 = vmatmul.mubr.f32.gmra.mrb[0].mxu0 %v815
        %v1017 = vpop.f32.mrb[0].mxu0
        %v1018 = vadd.f32 %v726, %v1017
        %v1019 = vpop.f32.mrb[0].mxu0
        %1020 = vmatprep.mubr.f32.mxu0 0.0
        %1021 = vmatmul.mubr.f32.gmra.mrb[0].mxu0 %v817
        %v1022 = vpop.f32.mrb[0].mxu0
        %v1023 = vadd.f32 %v731, %v1022
        %v1024 = vpop.f32.mrb[0].mxu0
        %1025 = vmatprep.mubr.f32.mxu0 0.0
        %1026 = vmatmul.mubr.f32.gmra.mrb[0].mxu0 %v819
        %v1027 = vpop.f32.mrb[0].mxu0
        %v1028 = vadd.f32 %v736, %v1027
        %v1029 = vpop.f32.mrb[0].mxu0
        %1030 = vmatprep.mubr.f32.mxu0 0.0
        %1031 = vmatmul.mubr.f32.gmra.mrb[0].mxu0 %v821
        %v1032 = vpop.f32.mrb[0].mxu0
        %v1033 = vadd.f32 %v741, %v1032
        %v1034 = vpop.f32.mrb[0].mxu0
        %1035 = vmatprep.mubr.f32.mxu0 0.0
        %1036 = vmatmul.mubr.f32.gmra.mrb[0].mxu0 %v823
        %v1037 = vpop.f32.mrb[0].mxu0
        %v1038 = vadd.f32 %v746, %v1037
        %v1039 = vpop.f32.mrb[0].mxu0
        %1040 = vmatprep.mubr.f32.mxu0 0.0
        %1041 = vmatmul.mubr.f32.gmra.mrb[0].mxu0 %v825
        %v1042 = vpop.f32.mrb[0].mxu0
        %v1043 = vadd.f32 %v751, %v1042
        %v1044 = vpop.f32.mrb[0].mxu0
        %1045 = vmatprep.mubr.f32.mxu0 0.0
        %1046 = vmatmul.mubr.f32.gmra.mrb[0].mxu0 %v827
        %v1047 = vpop.f32.mrb[0].mxu0
        %v1048 = vadd.f32 %v756, %v1047
        %v1049 = vpop.f32.mrb[0].mxu0
        %1050 = vmatprep.mubr.f32.mxu0 0.0
        %1051 = vmatmul.mubr.f32.gmra.mrb[0].mxu0 %v829
        %v1052 = vpop.f32.mrb[0].mxu0
        %v1053 = vadd.f32 %v761, %v1052
        %v1054 = vpop.f32.mrb[0].mxu0
        %1055 = vmatprep.mubr.f32.mxu0 0.0
        %1056 = vmatmul.mubr.f32.gmra.mrb[0].mxu0 %v831
        %v1057 = vpop.f32.mrb[0].mxu0
        %v1058 = vadd.f32 %v766, %v1057
        %v1059 = vpop.f32.mrb[0].mxu0
        %1060 = vdwg.mxu0
        %vm1061 = vcmask 1045504
        %v1062 = vrot.slane %v290, 2
        %v1063 = vrot.slane %v291, 2
        %v1064 = vsel %vm1061, %v1062, %v1063
        %v1065 = vrot.slane %v292, 2
        %v1066 = vsel %vm1061, %v1063, %v1065
        %v1067 = vrot.slane %v293, 2
        %v1068 = vrot.slane %v294, 2
        %v1069 = vsel %vm1061, %v1067, %v1068
        %v1070 = vrot.slane %v295, 2
        %v1071 = vsel %vm1061, %v1068, %v1070
        %v1072 = vrot.slane %v296, 2
        %v1073 = vrot.slane %v297, 2
        %v1074 = vsel %vm1061, %v1072, %v1073
        %v1075 = vrot.slane %v298, 2
        %v1076 = vsel %vm1061, %v1073, %v1075
        %v1077 = vrot.slane %v299, 2
        %v1078 = vrot.slane %v300, 2
        %v1079 = vsel %vm1061, %v1077, %v1078
        %v1080 = vrot.slane %v301, 2
        %v1081 = vsel %vm1061, %v1078, %v1080
        %v1082 = vrot.slane %v302, 2
        %v1083 = vrot.slane %v303, 2
        %v1084 = vsel %vm1061, %v1082, %v1083
        %v1085 = vrot.slane %v304, 2
        %v1086 = vsel %vm1061, %v1083, %v1085
        %v1087 = vrot.slane %v305, 2
        %v1088 = vrot.slane %v306, 2
        %v1089 = vsel %vm1061, %v1087, %v1088
        %v1090 = vrot.slane %v307, 2
        %v1091 = vsel %vm1061, %v1088, %v1090
        %v1092 = vrot.slane %v308, 2
        %v1093 = vrot.slane %v309, 2
        %v1094 = vsel %vm1061, %v1092, %v1093
        %v1095 = vrot.slane %v310, 2
        %v1096 = vsel %vm1061, %v1093, %v1095
        %v1097 = vrot.slane %v311, 2
        %v1098 = vrot.slane %v312, 2
        %v1099 = vsel %vm1061, %v1097, %v1098
        %v1100 = vrot.slane %v313, 2
        %v1101 = vsel %vm1061, %v1098, %v1100
        %v1102 = vrot.slane %v314, 2
        %v1103 = vrot.slane %v315, 2
        %v1104 = vsel %vm1061, %v1102, %v1103
        %v1105 = vrot.slane %v316, 2
        %v1106 = vsel %vm1061, %v1103, %v1105
        %v1107 = vrot.slane %v317, 2
        %v1108 = vrot.slane %v318, 2
        %v1109 = vsel %vm1061, %v1107, %v1108
        %v1110 = vrot.slane %v319, 2
        %v1111 = vsel %vm1061, %v1108, %v1110
        %v1112 = vrot.slane %v320, 2
        %v1113 = vrot.slane %v321, 2
        %v1114 = vsel %vm1061, %v1112, %v1113
        %v1115 = vrot.slane %v322, 2
        %v1116 = vsel %vm1061, %v1113, %v1115
        %v1117 = vrot.slane %v323, 2
        %v1118 = vrot.slane %v324, 2
        %v1119 = vsel %vm1061, %v1117, %v1118
        %v1120 = vrot.slane %v325, 2
        %v1121 = vsel %vm1061, %v1118, %v1120
        %v1122 = vrot.slane %v326, 2
        %v1123 = vrot.slane %v327, 2
        %v1124 = vsel %vm1061, %v1122, %v1123
        %v1125 = vrot.slane %v328, 2
        %v1126 = vsel %vm1061, %v1123, %v1125
        %v1127 = vrot.slane %v329, 2
        %v1128 = vrot.slane %v330, 2
        %v1129 = vsel %vm1061, %v1127, %v1128
        %v1130 = vrot.slane %v331, 2
        %v1131 = vsel %vm1061, %v1128, %v1130
        %v1132 = vrot.slane %v332, 2
        %v1133 = vrot.slane %v333, 2
        %v1134 = vsel %vm1061, %v1132, %v1133
        %v1135 = vrot.slane %v334, 2
        %v1136 = vsel %vm1061, %v1133, %v1135
        %v1137 = vrot.slane %v335, 2
        %v1138 = vrot.slane %v336, 2
        %v1139 = vsel %vm1061, %v1137, %v1138
        %v1140 = vrot.slane %v337, 2
        %v1141 = vsel %vm1061, %v1138, %v1140
        %s1142 = scalar_lea.vmem %s1, 8
        %v1143 = vld [vmem:[%s1142] sm:$0x7]
        %v1144 = vsel %vm201, %v1064, 0
        %v1146 = vsel %vm201, %v1066, 0
        %v1148 = vsel %vm201, %v1069, 0
        %v1150 = vsel %vm201, %v1071, 0
        %v1152 = vsel %vm201, %v1074, 0
        %v1154 = vsel %vm201, %v1076, 0
        %v1156 = vsel %vm201, %v1079, 0
        %v1158 = vsel %vm201, %v1081, 0
        %v1160 = vsel %vm201, %v1084, 0
        %v1162 = vsel %vm201, %v1086, 0
        %v1164 = vsel %vm201, %v1089, 0
        %v1166 = vsel %vm201, %v1091, 0
        %v1168 = vsel %vm201, %v1094, 0
        %v1170 = vsel %vm201, %v1096, 0
        %v1172 = vsel %vm201, %v1099, 0
        %v1174 = vsel %vm201, %v1101, 0
        %v1176 = vsel %vm201, %v1104, 0
        %v1178 = vsel %vm201, %v1106, 0
        %v1180 = vsel %vm201, %v1109, 0
        %v1182 = vsel %vm201, %v1111, 0
        %v1184 = vsel %vm201, %v1114, 0
        %v1186 = vsel %vm201, %v1116, 0
        %v1188 = vsel %vm201, %v1119, 0
        %v1190 = vsel %vm201, %v1121, 0
        %v1192 = vsel %vm201, %v1124, 0
        %v1194 = vsel %vm201, %v1126, 0
        %v1196 = vsel %vm201, %v1129, 0
        %v1198 = vsel %vm201, %v1131, 0
        %v1200 = vsel %vm201, %v1134, 0
        %v1202 = vsel %vm201, %v1136, 0
        %v1204 = vsel %vm201, %v1139, 0
        %v1206 = vsel %vm201, %v1141, 0
        %v1209 = vsel %vm540, %v1143, 0
        %1211 = vmatprep.subr.mxu0 0.0
        %1212 = vmatpush1.msra.mxu0 %v1209
        %1213 = vmatprep.subr.mxu0 0.0
        %1214 = vmatpush1.msra.mxu0 0.0
        %1215 = vmatprep.subr.mxu0 0.0
        %1216 = vmatpush1.msra.mxu0 0.0
        %1217 = vmatprep.subr.mxu0 0.0
        %1218 = vmatpush1.msra.mxu0 0.0
        %1219 = vmatprep.subr.mxu0 0.0
        %1220 = vmatpush1.msra.mxu0 0.0
        %1221 = vmatprep.subr.mxu0 0.0
        %1222 = vmatpush1.msra.mxu0 0.0
        %1223 = vmatprep.subr.mxu0 0.0
        %1224 = vmatpush1.msra.mxu0 0.0
        %1225 = vmatprep.subr.mxu0 0.0
        %1226 = vmatpush1.msra.mxu0 0.0
        %1227 = vmatprep.subr.mxu0 0.0
        %1228 = vmatpush1.msra.mxu0 0.0
        %1229 = vmatprep.subr.mxu0 0.0
        %1230 = vmatpush1.msra.mxu0 0.0
        %1231 = vmatprep.subr.mxu0 0.0
        %1232 = vmatpush1.msra.mxu0 0.0
        %1233 = vmatprep.subr.mxu0 0.0
        %1234 = vmatpush1.msra.mxu0 0.0
        %1235 = vmatprep.subr.mxu0 0.0
        %1236 = vmatpush1.msra.mxu0 0.0
        %1237 = vmatprep.subr.mxu0 0.0
        %1238 = vmatpush1.msra.mxu0 0.0
        %1239 = vmatprep.subr.mxu0 0.0
        %1240 = vmatpush1.msra.mxu0 0.0
        %1241 = vmatprep.subr.mxu0 0.0
        %1242 = vmatpush1.msra.mxu0 0.0
        %1243 = vmatprep.subr.mxu0 0.0
        %1244 = vmatpush1.msra.mxu0 0.0
        %1245 = vmatprep.subr.mxu0 0.0
        %1246 = vmatpush1.msra.mxu0 0.0
        %1247 = vmatprep.subr.mxu0 0.0
        %1248 = vmatpush1.msra.mxu0 0.0
        %1249 = vmatprep.subr.mxu0 0.0
        %1250 = vmatpush1.msra.mxu0 0.0
        %1251 = vmatprep.subr.mxu0 0.0
        %1252 = vmatpush1.msra.mxu0 0.0
        %1253 = vmatprep.subr.mxu0 0.0
        %1254 = vmatpush1.msra.mxu0 0.0
        %1255 = vmatprep.subr.mxu0 0.0
        %1256 = vmatpush1.msra.mxu0 0.0
        %1257 = vmatprep.subr.mxu0 0.0
        %1258 = vmatpush1.msra.mxu0 0.0
        %1259 = vmatprep.subr.mxu0 0.0
        %1260 = vmatpush1.msra.mxu0 0.0
        %1261 = vmatprep.subr.mxu0 0.0
        %1262 = vmatpush1.msra.mxu0 0.0
        %1263 = vmatprep.subr.mxu0 0.0
        %1264 = vmatpush1.msra.mxu0 0.0
        %1265 = vmatprep.subr.mxu0 0.0
        %1266 = vmatpush1.msra.mxu0 0.0
        %1267 = vmatprep.subr.mxu0 0.0
        %1268 = vmatpush1.msra.mxu0 0.0
        %1269 = vmatprep.subr.mxu0 0.0
        %1270 = vmatpush1.msra.mxu0 0.0
        %1271 = vmatprep.subr.mxu0 0.0
        %1272 = vmatpush1.msra.mxu0 0.0
        %1273 = vmatprep.subr.mxu0 0.0
        %1274 = vmatpush1.msra.mxu0 0.0
        %1275 = vmatprep.mubr.f32.mxu0 0.0
        %1276 = vmatmul.mubr.f32.gmra.mrb[0].mxu0 %v1144
        %v1277 = vpop.f32.mrb[0].mxu0
        %v1278 = vadd.f32 0.0, %v1277
        %v1279 = vpop.f32.mrb[0].mxu0
        %1280 = vmatprep.mubr.f32.mxu0 0.0
        %1281 = vmatmul.mubr.f32.gmra.mrb[0].mxu0 %v1146
        %v1282 = vpop.f32.mrb[0].mxu0
        %v1283 = vadd.f32 0.0, %v1282
        %v1284 = vpop.f32.mrb[0].mxu0
        %1285 = vmatprep.mubr.f32.mxu0 0.0
        %1286 = vmatmul.mubr.f32.gmra.mrb[0].mxu0 %v1148
        %v1287 = vpop.f32.mrb[0].mxu0
        %v1288 = vadd.f32 0.0, %v1287
        %v1289 = vpop.f32.mrb[0].mxu0
        %1290 = vmatprep.mubr.f32.mxu0 0.0
        %1291 = vmatmul.mubr.f32.gmra.mrb[0].mxu0 %v1150
        %v1292 = vpop.f32.mrb[0].mxu0
        %v1293 = vadd.f32 0.0, %v1292
        %v1294 = vpop.f32.mrb[0].mxu0
        %1295 = vmatprep.mubr.f32.mxu0 0.0
        %1296 = vmatmul.mubr.f32.gmra.mrb[0].mxu0 %v1152
        %v1297 = vpop.f32.mrb[0].mxu0
        %v1298 = vadd.f32 0.0, %v1297
        %v1299 = vpop.f32.mrb[0].mxu0
        %1300 = vmatprep.mubr.f32.mxu0 0.0
        %1301 = vmatmul.mubr.f32.gmra.mrb[0].mxu0 %v1154
        %v1302 = vpop.f32.mrb[0].mxu0
        %v1303 = vadd.f32 0.0, %v1302
        %v1304 = vpop.f32.mrb[0].mxu0
        %1305 = vmatprep.mubr.f32.mxu0 0.0
        %1306 = vmatmul.mubr.f32.gmra.mrb[0].mxu0 %v1156
        %v1307 = vpop.f32.mrb[0].mxu0
        %v1308 = vadd.f32 0.0, %v1307
        %v1309 = vpop.f32.mrb[0].mxu0
        %1310 = vmatprep.mubr.f32.mxu0 0.0
        %1311 = vmatmul.mubr.f32.gmra.mrb[0].mxu0 %v1158
        %v1312 = vpop.f32.mrb[0].mxu0
        %v1313 = vadd.f32 0.0, %v1312
        %v1314 = vpop.f32.mrb[0].mxu0
        %1315 = vmatprep.mubr.f32.mxu0 0.0
        %1316 = vmatmul.mubr.f32.gmra.mrb[0].mxu0 %v1160
        %v1317 = vpop.f32.mrb[0].mxu0
        %v1318 = vadd.f32 0.0, %v1317
        %v1319 = vpop.f32.mrb[0].mxu0
        %1320 = vmatprep.mubr.f32.mxu0 0.0
        %1321 = vmatmul.mubr.f32.gmra.mrb[0].mxu0 %v1162
        %v1322 = vpop.f32.mrb[0].mxu0
        %v1323 = vadd.f32 0.0, %v1322
        %v1324 = vpop.f32.mrb[0].mxu0
        %1325 = vmatprep.mubr.f32.mxu0 0.0
        %1326 = vmatmul.mubr.f32.gmra.mrb[0].mxu0 %v1164
        %v1327 = vpop.f32.mrb[0].mxu0
        %v1328 = vadd.f32 0.0, %v1327
        %v1329 = vpop.f32.mrb[0].mxu0
        %1330 = vmatprep.mubr.f32.mxu0 0.0
        %1331 = vmatmul.mubr.f32.gmra.mrb[0].mxu0 %v1166
        %v1332 = vpop.f32.mrb[0].mxu0
        %v1333 = vadd.f32 0.0, %v1332
        %v1334 = vpop.f32.mrb[0].mxu0
        %1335 = vmatprep.mubr.f32.mxu0 0.0
        %1336 = vmatmul.mubr.f32.gmra.mrb[0].mxu0 %v1168
        %v1337 = vpop.f32.mrb[0].mxu0
        %v1338 = vadd.f32 0.0, %v1337
        %v1339 = vpop.f32.mrb[0].mxu0
        %1340 = vmatprep.mubr.f32.mxu0 0.0
        %1341 = vmatmul.mubr.f32.gmra.mrb[0].mxu0 %v1170
        %v1342 = vpop.f32.mrb[0].mxu0
        %v1343 = vadd.f32 0.0, %v1342
        %v1344 = vpop.f32.mrb[0].mxu0
        %1345 = vmatprep.mubr.f32.mxu0 0.0
        %1346 = vmatmul.mubr.f32.gmra.mrb[0].mxu0 %v1172
        %v1347 = vpop.f32.mrb[0].mxu0
        %v1348 = vadd.f32 0.0, %v1347
        %v1349 = vpop.f32.mrb[0].mxu0
        %1350 = vmatprep.mubr.f32.mxu0 0.0
        %1351 = vmatmul.mubr.f32.gmra.mrb[0].mxu0 %v1174
        %v1352 = vpop.f32.mrb[0].mxu0
        %v1353 = vadd.f32 0.0, %v1352
        %v1354 = vpop.f32.mrb[0].mxu0
        %1355 = vmatprep.mubr.f32.mxu0 0.0
        %1356 = vmatmul.mubr.f32.gmra.mrb[0].mxu0 %v1176
        %v1357 = vpop.f32.mrb[0].mxu0
        %v1358 = vadd.f32 0.0, %v1357
        %v1359 = vpop.f32.mrb[0].mxu0
        %1360 = vmatprep.mubr.f32.mxu0 0.0
        %1361 = vmatmul.mubr.f32.gmra.mrb[0].mxu0 %v1178
        %v1362 = vpop.f32.mrb[0].mxu0
        %v1363 = vadd.f32 0.0, %v1362
        %v1364 = vpop.f32.mrb[0].mxu0
        %1365 = vmatprep.mubr.f32.mxu0 0.0
        %1366 = vmatmul.mubr.f32.gmra.mrb[0].mxu0 %v1180
        %v1367 = vpop.f32.mrb[0].mxu0
        %v1368 = vadd.f32 0.0, %v1367
        %v1369 = vpop.f32.mrb[0].mxu0
        %1370 = vmatprep.mubr.f32.mxu0 0.0
        %1371 = vmatmul.mubr.f32.gmra.mrb[0].mxu0 %v1182
        %v1372 = vpop.f32.mrb[0].mxu0
        %v1373 = vadd.f32 0.0, %v1372
        %v1374 = vpop.f32.mrb[0].mxu0
        %1375 = vmatprep.mubr.f32.mxu0 0.0
        %1376 = vmatmul.mubr.f32.gmra.mrb[0].mxu0 %v1184
        %v1377 = vpop.f32.mrb[0].mxu0
        %v1378 = vadd.f32 0.0, %v1377
        %v1379 = vpop.f32.mrb[0].mxu0
        %1380 = vmatprep.mubr.f32.mxu0 0.0
        %1381 = vmatmul.mubr.f32.gmra.mrb[0].mxu0 %v1186
        %v1382 = vpop.f32.mrb[0].mxu0
        %v1383 = vadd.f32 0.0, %v1382
        %v1384 = vpop.f32.mrb[0].mxu0
        %1385 = vmatprep.mubr.f32.mxu0 0.0
        %1386 = vmatmul.mubr.f32.gmra.mrb[0].mxu0 %v1188
        %v1387 = vpop.f32.mrb[0].mxu0
        %v1388 = vadd.f32 0.0, %v1387
        %v1389 = vpop.f32.mrb[0].mxu0
        %1390 = vmatprep.mubr.f32.mxu0 0.0
        %1391 = vmatmul.mubr.f32.gmra.mrb[0].mxu0 %v1190
        %v1392 = vpop.f32.mrb[0].mxu0
        %v1393 = vadd.f32 0.0, %v1392
        %v1394 = vpop.f32.mrb[0].mxu0
        %1395 = vmatprep.mubr.f32.mxu0 0.0
        %1396 = vmatmul.mubr.f32.gmra.mrb[0].mxu0 %v1192
        %v1397 = vpop.f32.mrb[0].mxu0
        %v1398 = vadd.f32 0.0, %v1397
        %v1399 = vpop.f32.mrb[0].mxu0
        %1400 = vmatprep.mubr.f32.mxu0 0.0
        %1401 = vmatmul.mubr.f32.gmra.mrb[0].mxu0 %v1194
        %v1402 = vpop.f32.mrb[0].mxu0
        %v1403 = vadd.f32 0.0, %v1402
        %v1404 = vpop.f32.mrb[0].mxu0
        %1405 = vmatprep.mubr.f32.mxu0 0.0
        %1406 = vmatmul.mubr.f32.gmra.mrb[0].mxu0 %v1196
        %v1407 = vpop.f32.mrb[0].mxu0
        %v1408 = vadd.f32 0.0, %v1407
        %v1409 = vpop.f32.mrb[0].mxu0
        %1410 = vmatprep.mubr.f32.mxu0 0.0
        %1411 = vmatmul.mubr.f32.gmra.mrb[0].mxu0 %v1198
        %v1412 = vpop.f32.mrb[0].mxu0
        %v1413 = vadd.f32 0.0, %v1412
        %v1414 = vpop.f32.mrb[0].mxu0
        %1415 = vmatprep.mubr.f32.mxu0 0.0
        %1416 = vmatmul.mubr.f32.gmra.mrb[0].mxu0 %v1200
        %v1417 = vpop.f32.mrb[0].mxu0
        %v1418 = vadd.f32 0.0, %v1417
        %v1419 = vpop.f32.mrb[0].mxu0
        %1420 = vmatprep.mubr.f32.mxu0 0.0
        %1421 = vmatmul.mubr.f32.gmra.mrb[0].mxu0 %v1202
        %v1422 = vpop.f32.mrb[0].mxu0
        %v1423 = vadd.f32 0.0, %v1422
        %v1424 = vpop.f32.mrb[0].mxu0
        %1425 = vmatprep.mubr.f32.mxu0 0.0
        %1426 = vmatmul.mubr.f32.gmra.mrb[0].mxu0 %v1204
        %v1427 = vpop.f32.mrb[0].mxu0
        %v1428 = vadd.f32 0.0, %v1427
        %v1429 = vpop.f32.mrb[0].mxu0
        %1430 = vmatprep.mubr.f32.mxu0 0.0
        %1431 = vmatmul.mubr.f32.gmra.mrb[0].mxu0 %v1206
        %v1432 = vpop.f32.mrb[0].mxu0
        %v1433 = vadd.f32 0.0, %v1432
        %v1434 = vpop.f32.mrb[0].mxu0
        %1435 = vdwg.mxu0
        %v1436 = vadd.f32 %v903, %v1278
        %v1437 = vadd.f32 %v908, %v1283
        %v1438 = vadd.f32 %v913, %v1288
        %v1439 = vadd.f32 %v918, %v1293
        %v1440 = vadd.f32 %v923, %v1298
        %v1441 = vadd.f32 %v928, %v1303
        %v1442 = vadd.f32 %v933, %v1308
        %v1443 = vadd.f32 %v938, %v1313
        %v1444 = vadd.f32 %v943, %v1318
        %v1445 = vadd.f32 %v948, %v1323
        %v1446 = vadd.f32 %v953, %v1328
        %v1447 = vadd.f32 %v958, %v1333
        %v1448 = vadd.f32 %v963, %v1338
        %v1449 = vadd.f32 %v968, %v1343
        %v1450 = vadd.f32 %v973, %v1348
        %v1451 = vadd.f32 %v978, %v1353
        %v1452 = vadd.f32 %v983, %v1358
        %v1453 = vadd.f32 %v988, %v1363
        %v1454 = vadd.f32 %v993, %v1368
        %v1455 = vadd.f32 %v998, %v1373
        %v1456 = vadd.f32 %v1003, %v1378
        %v1457 = vadd.f32 %v1008, %v1383
        %v1458 = vadd.f32 %v1013, %v1388
        %v1459 = vadd.f32 %v1018, %v1393
        %v1460 = vadd.f32 %v1023, %v1398
        %v1461 = vadd.f32 %v1028, %v1403
        %v1462 = vadd.f32 %v1033, %v1408
        %v1463 = vadd.f32 %v1038, %v1413
        %v1464 = vadd.f32 %v1043, %v1418
        %v1465 = vadd.f32 %v1048, %v1423
        %v1466 = vadd.f32 %v1053, %v1428
        %v1467 = vadd.f32 %v1058, %v1433
        %s1468 = scalar_lea.vmem %s1, 12
        %v1469 = vld [vmem:[%s1468] sm:$0x7]
        %v1471 = vsel %vm201, %v338, 0
        %v1474 = vsel %vm201, %v339, 0
        %v1477 = vsel %vm540, %v1469, 0
        %1479 = vmatprep.subr.mxu0 0.0
        %1480 = vmatpush1.msra.mxu0 %v1477
        %1481 = vmatprep.subr.mxu0 0.0
        %1482 = vmatpush1.msra.mxu0 0.0
        %1483 = vmatprep.subr.mxu0 0.0
        %1484 = vmatpush1.msra.mxu0 0.0
        %1485 = vmatprep.subr.mxu0 0.0
        %1486 = vmatpush1.msra.mxu0 0.0
        %1487 = vmatprep.subr.mxu0 0.0
        %1488 = vmatpush1.msra.mxu0 0.0
        %1489 = vmatprep.subr.mxu0 0.0
        %1490 = vmatpush1.msra.mxu0 0.0
        %1491 = vmatprep.subr.mxu0 0.0
        %1492 = vmatpush1.msra.mxu0 0.0
        %1493 = vmatprep.subr.mxu0 0.0
        %1494 = vmatpush1.msra.mxu0 0.0
        %1495 = vmatprep.subr.mxu0 0.0
        %1496 = vmatpush1.msra.mxu0 0.0
        %1497 = vmatprep.subr.mxu0 0.0
        %1498 = vmatpush1.msra.mxu0 0.0
        %1499 = vmatprep.subr.mxu0 0.0
        %1500 = vmatpush1.msra.mxu0 0.0
        %1501 = vmatprep.subr.mxu0 0.0
        %1502 = vmatpush1.msra.mxu0 0.0
        %1503 = vmatprep.subr.mxu0 0.0
        %1504 = vmatpush1.msra.mxu0 0.0
        %1505 = vmatprep.subr.mxu0 0.0
        %1506 = vmatpush1.msra.mxu0 0.0
        %1507 = vmatprep.subr.mxu0 0.0
        %1508 = vmatpush1.msra.mxu0 0.0
        %1509 = vmatprep.subr.mxu0 0.0
        %1510 = vmatpush1.msra.mxu0 0.0
        %1511 = vmatprep.subr.mxu0 0.0
        %1512 = vmatpush1.msra.mxu0 0.0
        %1513 = vmatprep.subr.mxu0 0.0
        %1514 = vmatpush1.msra.mxu0 0.0
        %1515 = vmatprep.subr.mxu0 0.0
        %1516 = vmatpush1.msra.mxu0 0.0
        %1517 = vmatprep.subr.mxu0 0.0
        %1518 = vmatpush1.msra.mxu0 0.0
        %1519 = vmatprep.subr.mxu0 0.0
        %1520 = vmatpush1.msra.mxu0 0.0
        %1521 = vmatprep.subr.mxu0 0.0
        %1522 = vmatpush1.msra.mxu0 0.0
        %1523 = vmatprep.subr.mxu0 0.0
        %1524 = vmatpush1.msra.mxu0 0.0
        %1525 = vmatprep.subr.mxu0 0.0
        %1526 = vmatpush1.msra.mxu0 0.0
        %1527 = vmatprep.subr.mxu0 0.0
        %1528 = vmatpush1.msra.mxu0 0.0
        %1529 = vmatprep.subr.mxu0 0.0
        %1530 = vmatpush1.msra.mxu0 0.0
        %1531 = vmatprep.subr.mxu0 0.0
        %1532 = vmatpush1.msra.mxu0 0.0
        %1533 = vmatprep.subr.mxu0 0.0
        %1534 = vmatpush1.msra.mxu0 0.0
        %1535 = vmatprep.subr.mxu0 0.0
        %1536 = vmatpush1.msra.mxu0 0.0
        %1537 = vmatprep.subr.mxu0 0.0
        %1538 = vmatpush1.msra.mxu0 0.0
        %1539 = vmatprep.subr.mxu0 0.0
        %1540 = vmatpush1.msra.mxu0 0.0
        %1541 = vmatprep.subr.mxu0 0.0
        %1542 = vmatpush1.msra.mxu0 0.0
        %1543 = vmatprep.mubr.f32.mxu0 0.0
        %1544 = vmatmul.mubr.f32.gmra.mrb[0].mxu0 %v773
        %v1545 = vpop.f32.mrb[0].mxu0
        %v1546 = vadd.f32 0.0, %v1545
        %v1547 = vpop.f32.mrb[0].mxu0
        %1548 = vmatprep.mubr.f32.mxu0 0.0
        %1549 = vmatmul.mubr.f32.gmra.mrb[0].mxu0 %v775
        %v1550 = vpop.f32.mrb[0].mxu0
        %v1551 = vadd.f32 0.0, %v1550
        %v1552 = vpop.f32.mrb[0].mxu0
        %1553 = vmatprep.mubr.f32.mxu0 0.0
        %1554 = vmatmul.mubr.f32.gmra.mrb[0].mxu0 %v777
        %v1555 = vpop.f32.mrb[0].mxu0
        %v1556 = vadd.f32 0.0, %v1555
        %v1557 = vpop.f32.mrb[0].mxu0
        %1558 = vmatprep.mubr.f32.mxu0 0.0
        %1559 = vmatmul.mubr.f32.gmra.mrb[0].mxu0 %v779
        %v1560 = vpop.f32.mrb[0].mxu0
        %v1561 = vadd.f32 0.0, %v1560
        %v1562 = vpop.f32.mrb[0].mxu0
        %1563 = vmatprep.mubr.f32.mxu0 0.0
        %1564 = vmatmul.mubr.f32.gmra.mrb[0].mxu0 %v781
        %v1565 = vpop.f32.mrb[0].mxu0
        %v1566 = vadd.f32 0.0, %v1565
        %v1567 = vpop.f32.mrb[0].mxu0
        %1568 = vmatprep.mubr.f32.mxu0 0.0
        %1569 = vmatmul.mubr.f32.gmra.mrb[0].mxu0 %v783
        %v1570 = vpop.f32.mrb[0].mxu0
        %v1571 = vadd.f32 0.0, %v1570
        %v1572 = vpop.f32.mrb[0].mxu0
        %1573 = vmatprep.mubr.f32.mxu0 0.0
        %1574 = vmatmul.mubr.f32.gmra.mrb[0].mxu0 %v785
        %v1575 = vpop.f32.mrb[0].mxu0
        %v1576 = vadd.f32 0.0, %v1575
        %v1577 = vpop.f32.mrb[0].mxu0
        %1578 = vmatprep.mubr.f32.mxu0 0.0
        %1579 = vmatmul.mubr.f32.gmra.mrb[0].mxu0 %v787
        %v1580 = vpop.f32.mrb[0].mxu0
        %v1581 = vadd.f32 0.0, %v1580
        %v1582 = vpop.f32.mrb[0].mxu0
        %1583 = vmatprep.mubr.f32.mxu0 0.0
        %1584 = vmatmul.mubr.f32.gmra.mrb[0].mxu0 %v789
        %v1585 = vpop.f32.mrb[0].mxu0
        %v1586 = vadd.f32 0.0, %v1585
        %v1587 = vpop.f32.mrb[0].mxu0
        %1588 = vmatprep.mubr.f32.mxu0 0.0
        %1589 = vmatmul.mubr.f32.gmra.mrb[0].mxu0 %v791
        %v1590 = vpop.f32.mrb[0].mxu0
        %v1591 = vadd.f32 0.0, %v1590
        %v1592 = vpop.f32.mrb[0].mxu0
        %1593 = vmatprep.mubr.f32.mxu0 0.0
        %1594 = vmatmul.mubr.f32.gmra.mrb[0].mxu0 %v793
        %v1595 = vpop.f32.mrb[0].mxu0
        %v1596 = vadd.f32 0.0, %v1595
        %v1597 = vpop.f32.mrb[0].mxu0
        %1598 = vmatprep.mubr.f32.mxu0 0.0
        %1599 = vmatmul.mubr.f32.gmra.mrb[0].mxu0 %v795
        %v1600 = vpop.f32.mrb[0].mxu0
        %v1601 = vadd.f32 0.0, %v1600
        %v1602 = vpop.f32.mrb[0].mxu0
        %1603 = vmatprep.mubr.f32.mxu0 0.0
        %1604 = vmatmul.mubr.f32.gmra.mrb[0].mxu0 %v797
        %v1605 = vpop.f32.mrb[0].mxu0
        %v1606 = vadd.f32 0.0, %v1605
        %v1607 = vpop.f32.mrb[0].mxu0
        %1608 = vmatprep.mubr.f32.mxu0 0.0
        %1609 = vmatmul.mubr.f32.gmra.mrb[0].mxu0 %v799
        %v1610 = vpop.f32.mrb[0].mxu0
        %v1611 = vadd.f32 0.0, %v1610
        %v1612 = vpop.f32.mrb[0].mxu0
        %1613 = vmatprep.mubr.f32.mxu0 0.0
        %1614 = vmatmul.mubr.f32.gmra.mrb[0].mxu0 %v801
        %v1615 = vpop.f32.mrb[0].mxu0
        %v1616 = vadd.f32 0.0, %v1615
        %v1617 = vpop.f32.mrb[0].mxu0
        %1618 = vmatprep.mubr.f32.mxu0 0.0
        %1619 = vmatmul.mubr.f32.gmra.mrb[0].mxu0 %v803
        %v1620 = vpop.f32.mrb[0].mxu0
        %v1621 = vadd.f32 0.0, %v1620
        %v1622 = vpop.f32.mrb[0].mxu0
        %1623 = vmatprep.mubr.f32.mxu0 0.0
        %1624 = vmatmul.mubr.f32.gmra.mrb[0].mxu0 %v805
        %v1625 = vpop.f32.mrb[0].mxu0
        %v1626 = vadd.f32 0.0, %v1625
        %v1627 = vpop.f32.mrb[0].mxu0
        %1628 = vmatprep.mubr.f32.mxu0 0.0
        %1629 = vmatmul.mubr.f32.gmra.mrb[0].mxu0 %v807
        %v1630 = vpop.f32.mrb[0].mxu0
        %v1631 = vadd.f32 0.0, %v1630
        %v1632 = vpop.f32.mrb[0].mxu0
        %1633 = vmatprep.mubr.f32.mxu0 0.0
        %1634 = vmatmul.mubr.f32.gmra.mrb[0].mxu0 %v809
        %v1635 = vpop.f32.mrb[0].mxu0
        %v1636 = vadd.f32 0.0, %v1635
        %v1637 = vpop.f32.mrb[0].mxu0
        %1638 = vmatprep.mubr.f32.mxu0 0.0
        %1639 = vmatmul.mubr.f32.gmra.mrb[0].mxu0 %v811
        %v1640 = vpop.f32.mrb[0].mxu0
        %v1641 = vadd.f32 0.0, %v1640
        %v1642 = vpop.f32.mrb[0].mxu0
        %1643 = vmatprep.mubr.f32.mxu0 0.0
        %1644 = vmatmul.mubr.f32.gmra.mrb[0].mxu0 %v813
        %v1645 = vpop.f32.mrb[0].mxu0
        %v1646 = vadd.f32 0.0, %v1645
        %v1647 = vpop.f32.mrb[0].mxu0
        %1648 = vmatprep.mubr.f32.mxu0 0.0
        %1649 = vmatmul.mubr.f32.gmra.mrb[0].mxu0 %v815
        %v1650 = vpop.f32.mrb[0].mxu0
        %v1651 = vadd.f32 0.0, %v1650
        %v1652 = vpop.f32.mrb[0].mxu0
        %1653 = vmatprep.mubr.f32.mxu0 0.0
        %1654 = vmatmul.mubr.f32.gmra.mrb[0].mxu0 %v817
        %v1655 = vpop.f32.mrb[0].mxu0
        %v1656 = vadd.f32 0.0, %v1655
        %v1657 = vpop.f32.mrb[0].mxu0
        %1658 = vmatprep.mubr.f32.mxu0 0.0
        %1659 = vmatmul.mubr.f32.gmra.mrb[0].mxu0 %v819
        %v1660 = vpop.f32.mrb[0].mxu0
        %v1661 = vadd.f32 0.0, %v1660
        %v1662 = vpop.f32.mrb[0].mxu0
        %1663 = vmatprep.mubr.f32.mxu0 0.0
        %1664 = vmatmul.mubr.f32.gmra.mrb[0].mxu0 %v821
        %v1665 = vpop.f32.mrb[0].mxu0
        %v1666 = vadd.f32 0.0, %v1665
        %v1667 = vpop.f32.mrb[0].mxu0
        %1668 = vmatprep.mubr.f32.mxu0 0.0
        %1669 = vmatmul.mubr.f32.gmra.mrb[0].mxu0 %v823
        %v1670 = vpop.f32.mrb[0].mxu0
        %v1671 = vadd.f32 0.0, %v1670
        %v1672 = vpop.f32.mrb[0].mxu0
        %1673 = vmatprep.mubr.f32.mxu0 0.0
        %1674 = vmatmul.mubr.f32.gmra.mrb[0].mxu0 %v825
        %v1675 = vpop.f32.mrb[0].mxu0
        %v1676 = vadd.f32 0.0, %v1675
        %v1677 = vpop.f32.mrb[0].mxu0
        %1678 = vmatprep.mubr.f32.mxu0 0.0
        %1679 = vmatmul.mubr.f32.gmra.mrb[0].mxu0 %v827
        %v1680 = vpop.f32.mrb[0].mxu0
        %v1681 = vadd.f32 0.0, %v1680
        %v1682 = vpop.f32.mrb[0].mxu0
        %1683 = vmatprep.mubr.f32.mxu0 0.0
        %1684 = vmatmul.mubr.f32.gmra.mrb[0].mxu0 %v829
        %v1685 = vpop.f32.mrb[0].mxu0
        %v1686 = vadd.f32 0.0, %v1685
        %v1687 = vpop.f32.mrb[0].mxu0
        %1688 = vmatprep.mubr.f32.mxu0 0.0
        %1689 = vmatmul.mubr.f32.gmra.mrb[0].mxu0 %v831
        %v1690 = vpop.f32.mrb[0].mxu0
        %v1691 = vadd.f32 0.0, %v1690
        %v1692 = vpop.f32.mrb[0].mxu0
        %1693 = vmatprep.mubr.f32.mxu0 0.0
        %1694 = vmatmul.mubr.f32.gmra.mrb[0].mxu0 %v1471
        %v1695 = vpop.f32.mrb[0].mxu0
        %v1696 = vadd.f32 0.0, %v1695
        %v1697 = vpop.f32.mrb[0].mxu0
        %1698 = vmatprep.mubr.f32.mxu0 0.0
        %1699 = vmatmul.mubr.f32.gmra.mrb[0].mxu0 %v1474
        %v1700 = vpop.f32.mrb[0].mxu0
        %v1701 = vadd.f32 0.0, %v1700
        %v1702 = vpop.f32.mrb[0].mxu0
        %1703 = vdwg.mxu0
        %v1704 = vadd.f32 %v1436, %v1546
        %v1705 = vadd.f32 %v1437, %v1551
        %v1706 = vadd.f32 %v1438, %v1556
        %v1707 = vadd.f32 %v1439, %v1561
        %v1708 = vadd.f32 %v1440, %v1566
        %v1709 = vadd.f32 %v1441, %v1571
        %v1710 = vadd.f32 %v1442, %v1576
        %v1711 = vadd.f32 %v1443, %v1581
        %v1712 = vadd.f32 %v1444, %v1586
        %v1713 = vadd.f32 %v1445, %v1591
        %v1714 = vadd.f32 %v1446, %v1596
        %v1715 = vadd.f32 %v1447, %v1601
        %v1716 = vadd.f32 %v1448, %v1606
        %v1717 = vadd.f32 %v1449, %v1611
        %v1718 = vadd.f32 %v1450, %v1616
        %v1719 = vadd.f32 %v1451, %v1621
        %v1720 = vadd.f32 %v1452, %v1626
        %v1721 = vadd.f32 %v1453, %v1631
        %v1722 = vadd.f32 %v1454, %v1636
        %v1723 = vadd.f32 %v1455, %v1641
        %v1724 = vadd.f32 %v1456, %v1646
        %v1725 = vadd.f32 %v1457, %v1651
        %v1726 = vadd.f32 %v1458, %v1656
        %v1727 = vadd.f32 %v1459, %v1661
        %v1728 = vadd.f32 %v1460, %v1666
        %v1729 = vadd.f32 %v1461, %v1671
        %v1730 = vadd.f32 %v1462, %v1676
        %v1731 = vadd.f32 %v1463, %v1681
        %v1732 = vadd.f32 %v1464, %v1686
        %v1733 = vadd.f32 %v1465, %v1691
        %v1734 = vadd.f32 %v1466, %v1696
        %v1735 = vadd.f32 %v1467, %v1701
        %v1737 = vrot.slane %v338, 1
        %v1738 = vrot.slane %v339, 1
        %v1739 = vsel %vm393, %v1737, %v1738
        %v1740 = vrot.slane %v340, 1
        %v1741 = vsel %vm393, %v1738, %v1740
        %s1742 = scalar_lea.vmem %s1, 16
        %v1743 = vld [vmem:[%s1742] sm:$0x7]
        %v1744 = vsel %vm201, %v1739, 0
        %v1746 = vsel %vm201, %v1741, 0
        %v1749 = vsel %vm540, %v1743, 0
        %1751 = vmatprep.subr.mxu0 0.0
        %1752 = vmatpush1.msra.mxu0 %v1749
        %1753 = vmatprep.subr.mxu0 0.0
        %1754 = vmatpush1.msra.mxu0 0.0
        %1755 = vmatprep.subr.mxu0 0.0
        %1756 = vmatpush1.msra.mxu0 0.0
        %1757 = vmatprep.subr.mxu0 0.0
        %1758 = vmatpush1.msra.mxu0 0.0
        %1759 = vmatprep.subr.mxu0 0.0
        %1760 = vmatpush1.msra.mxu0 0.0
        %1761 = vmatprep.subr.mxu0 0.0
        %1762 = vmatpush1.msra.mxu0 0.0
        %1763 = vmatprep.subr.mxu0 0.0
        %1764 = vmatpush1.msra.mxu0 0.0
        %1765 = vmatprep.subr.mxu0 0.0
        %1766 = vmatpush1.msra.mxu0 0.0
        %1767 = vmatprep.subr.mxu0 0.0
        %1768 = vmatpush1.msra.mxu0 0.0
        %1769 = vmatprep.subr.mxu0 0.0
        %1770 = vmatpush1.msra.mxu0 0.0
        %1771 = vmatprep.subr.mxu0 0.0
        %1772 = vmatpush1.msra.mxu0 0.0
        %1773 = vmatprep.subr.mxu0 0.0
        %1774 = vmatpush1.msra.mxu0 0.0
        %1775 = vmatprep.subr.mxu0 0.0
        %1776 = vmatpush1.msra.mxu0 0.0
        %1777 = vmatprep.subr.mxu0 0.0
        %1778 = vmatpush1.msra.mxu0 0.0
        %1779 = vmatprep.subr.mxu0 0.0
        %1780 = vmatpush1.msra.mxu0 0.0
        %1781 = vmatprep.subr.mxu0 0.0
        %1782 = vmatpush1.msra.mxu0 0.0
        %1783 = vmatprep.subr.mxu0 0.0
        %1784 = vmatpush1.msra.mxu0 0.0
        %1785 = vmatprep.subr.mxu0 0.0
        %1786 = vmatpush1.msra.mxu0 0.0
        %1787 = vmatprep.subr.mxu0 0.0
        %1788 = vmatpush1.msra.mxu0 0.0
        %1789 = vmatprep.subr.mxu0 0.0
        %1790 = vmatpush1.msra.mxu0 0.0
        %1791 = vmatprep.subr.mxu0 0.0
        %1792 = vmatpush1.msra.mxu0 0.0
        %1793 = vmatprep.subr.mxu0 0.0
        %1794 = vmatpush1.msra.mxu0 0.0
        %1795 = vmatprep.subr.mxu0 0.0
        %1796 = vmatpush1.msra.mxu0 0.0
        %1797 = vmatprep.subr.mxu0 0.0
        %1798 = vmatpush1.msra.mxu0 0.0
        %1799 = vmatprep.subr.mxu0 0.0
        %1800 = vmatpush1.msra.mxu0 0.0
        %1801 = vmatprep.subr.mxu0 0.0
        %1802 = vmatpush1.msra.mxu0 0.0
        %1803 = vmatprep.subr.mxu0 0.0
        %1804 = vmatpush1.msra.mxu0 0.0
        %1805 = vmatprep.subr.mxu0 0.0
        %1806 = vmatpush1.msra.mxu0 0.0
        %1807 = vmatprep.subr.mxu0 0.0
        %1808 = vmatpush1.msra.mxu0 0.0
        %1809 = vmatprep.subr.mxu0 0.0
        %1810 = vmatpush1.msra.mxu0 0.0
        %1811 = vmatprep.subr.mxu0 0.0
        %1812 = vmatpush1.msra.mxu0 0.0
        %1813 = vmatprep.subr.mxu0 0.0
        %1814 = vmatpush1.msra.mxu0 0.0
        %1815 = vmatprep.mubr.f32.mxu0 0.0
        %1816 = vmatmul.mubr.f32.gmra.mrb[0].mxu0 %v480
        %v1817 = vpop.f32.mrb[0].mxu0
        %v1818 = vadd.f32 0.0, %v1817
        %v1819 = vpop.f32.mrb[0].mxu0
        %1820 = vmatprep.mubr.f32.mxu0 0.0
        %1821 = vmatmul.mubr.f32.gmra.mrb[0].mxu0 %v482
        %v1822 = vpop.f32.mrb[0].mxu0
        %v1823 = vadd.f32 0.0, %v1822
        %v1824 = vpop.f32.mrb[0].mxu0
        %1825 = vmatprep.mubr.f32.mxu0 0.0
        %1826 = vmatmul.mubr.f32.gmra.mrb[0].mxu0 %v484
        %v1827 = vpop.f32.mrb[0].mxu0
        %v1828 = vadd.f32 0.0, %v1827
        %v1829 = vpop.f32.mrb[0].mxu0
        %1830 = vmatprep.mubr.f32.mxu0 0.0
        %1831 = vmatmul.mubr.f32.gmra.mrb[0].mxu0 %v486
        %v1832 = vpop.f32.mrb[0].mxu0
        %v1833 = vadd.f32 0.0, %v1832
        %v1834 = vpop.f32.mrb[0].mxu0
        %1835 = vmatprep.mubr.f32.mxu0 0.0
        %1836 = vmatmul.mubr.f32.gmra.mrb[0].mxu0 %v488
        %v1837 = vpop.f32.mrb[0].mxu0
        %v1838 = vadd.f32 0.0, %v1837
        %v1839 = vpop.f32.mrb[0].mxu0
        %1840 = vmatprep.mubr.f32.mxu0 0.0
        %1841 = vmatmul.mubr.f32.gmra.mrb[0].mxu0 %v490
        %v1842 = vpop.f32.mrb[0].mxu0
        %v1843 = vadd.f32 0.0, %v1842
        %v1844 = vpop.f32.mrb[0].mxu0
        %1845 = vmatprep.mubr.f32.mxu0 0.0
        %1846 = vmatmul.mubr.f32.gmra.mrb[0].mxu0 %v492
        %v1847 = vpop.f32.mrb[0].mxu0
        %v1848 = vadd.f32 0.0, %v1847
        %v1849 = vpop.f32.mrb[0].mxu0
        %1850 = vmatprep.mubr.f32.mxu0 0.0
        %1851 = vmatmul.mubr.f32.gmra.mrb[0].mxu0 %v494
        %v1852 = vpop.f32.mrb[0].mxu0
        %v1853 = vadd.f32 0.0, %v1852
        %v1854 = vpop.f32.mrb[0].mxu0
        %1855 = vmatprep.mubr.f32.mxu0 0.0
        %1856 = vmatmul.mubr.f32.gmra.mrb[0].mxu0 %v496
        %v1857 = vpop.f32.mrb[0].mxu0
        %v1858 = vadd.f32 0.0, %v1857
        %v1859 = vpop.f32.mrb[0].mxu0
        %1860 = vmatprep.mubr.f32.mxu0 0.0
        %1861 = vmatmul.mubr.f32.gmra.mrb[0].mxu0 %v498
        %v1862 = vpop.f32.mrb[0].mxu0
        %v1863 = vadd.f32 0.0, %v1862
        %v1864 = vpop.f32.mrb[0].mxu0
        %1865 = vmatprep.mubr.f32.mxu0 0.0
        %1866 = vmatmul.mubr.f32.gmra.mrb[0].mxu0 %v500
        %v1867 = vpop.f32.mrb[0].mxu0
        %v1868 = vadd.f32 0.0, %v1867
        %v1869 = vpop.f32.mrb[0].mxu0
        %1870 = vmatprep.mubr.f32.mxu0 0.0
        %1871 = vmatmul.mubr.f32.gmra.mrb[0].mxu0 %v502
        %v1872 = vpop.f32.mrb[0].mxu0
        %v1873 = vadd.f32 0.0, %v1872
        %v1874 = vpop.f32.mrb[0].mxu0
        %1875 = vmatprep.mubr.f32.mxu0 0.0
        %1876 = vmatmul.mubr.f32.gmra.mrb[0].mxu0 %v504
        %v1877 = vpop.f32.mrb[0].mxu0
        %v1878 = vadd.f32 0.0, %v1877
        %v1879 = vpop.f32.mrb[0].mxu0
        %1880 = vmatprep.mubr.f32.mxu0 0.0
        %1881 = vmatmul.mubr.f32.gmra.mrb[0].mxu0 %v506
        %v1882 = vpop.f32.mrb[0].mxu0
        %v1883 = vadd.f32 0.0, %v1882
        %v1884 = vpop.f32.mrb[0].mxu0
        %1885 = vmatprep.mubr.f32.mxu0 0.0
        %1886 = vmatmul.mubr.f32.gmra.mrb[0].mxu0 %v508
        %v1887 = vpop.f32.mrb[0].mxu0
        %v1888 = vadd.f32 0.0, %v1887
        %v1889 = vpop.f32.mrb[0].mxu0
        %1890 = vmatprep.mubr.f32.mxu0 0.0
        %1891 = vmatmul.mubr.f32.gmra.mrb[0].mxu0 %v510
        %v1892 = vpop.f32.mrb[0].mxu0
        %v1893 = vadd.f32 0.0, %v1892
        %v1894 = vpop.f32.mrb[0].mxu0
        %1895 = vmatprep.mubr.f32.mxu0 0.0
        %1896 = vmatmul.mubr.f32.gmra.mrb[0].mxu0 %v512
        %v1897 = vpop.f32.mrb[0].mxu0
        %v1898 = vadd.f32 0.0, %v1897
        %v1899 = vpop.f32.mrb[0].mxu0
        %1900 = vmatprep.mubr.f32.mxu0 0.0
        %1901 = vmatmul.mubr.f32.gmra.mrb[0].mxu0 %v514
        %v1902 = vpop.f32.mrb[0].mxu0
        %v1903 = vadd.f32 0.0, %v1902
        %v1904 = vpop.f32.mrb[0].mxu0
        %1905 = vmatprep.mubr.f32.mxu0 0.0
        %1906 = vmatmul.mubr.f32.gmra.mrb[0].mxu0 %v516
        %v1907 = vpop.f32.mrb[0].mxu0
        %v1908 = vadd.f32 0.0, %v1907
        %v1909 = vpop.f32.mrb[0].mxu0
        %1910 = vmatprep.mubr.f32.mxu0 0.0
        %1911 = vmatmul.mubr.f32.gmra.mrb[0].mxu0 %v518
        %v1912 = vpop.f32.mrb[0].mxu0
        %v1913 = vadd.f32 0.0, %v1912
        %v1914 = vpop.f32.mrb[0].mxu0
        %1915 = vmatprep.mubr.f32.mxu0 0.0
        %1916 = vmatmul.mubr.f32.gmra.mrb[0].mxu0 %v520
        %v1917 = vpop.f32.mrb[0].mxu0
        %v1918 = vadd.f32 0.0, %v1917
        %v1919 = vpop.f32.mrb[0].mxu0
        %1920 = vmatprep.mubr.f32.mxu0 0.0
        %1921 = vmatmul.mubr.f32.gmra.mrb[0].mxu0 %v522
        %v1922 = vpop.f32.mrb[0].mxu0
        %v1923 = vadd.f32 0.0, %v1922
        %v1924 = vpop.f32.mrb[0].mxu0
        %1925 = vmatprep.mubr.f32.mxu0 0.0
        %1926 = vmatmul.mubr.f32.gmra.mrb[0].mxu0 %v524
        %v1927 = vpop.f32.mrb[0].mxu0
        %v1928 = vadd.f32 0.0, %v1927
        %v1929 = vpop.f32.mrb[0].mxu0
        %1930 = vmatprep.mubr.f32.mxu0 0.0
        %1931 = vmatmul.mubr.f32.gmra.mrb[0].mxu0 %v526
        %v1932 = vpop.f32.mrb[0].mxu0
        %v1933 = vadd.f32 0.0, %v1932
        %v1934 = vpop.f32.mrb[0].mxu0
        %1935 = vmatprep.mubr.f32.mxu0 0.0
        %1936 = vmatmul.mubr.f32.gmra.mrb[0].mxu0 %v528
        %v1937 = vpop.f32.mrb[0].mxu0
        %v1938 = vadd.f32 0.0, %v1937
        %v1939 = vpop.f32.mrb[0].mxu0
        %1940 = vmatprep.mubr.f32.mxu0 0.0
        %1941 = vmatmul.mubr.f32.gmra.mrb[0].mxu0 %v530
        %v1942 = vpop.f32.mrb[0].mxu0
        %v1943 = vadd.f32 0.0, %v1942
        %v1944 = vpop.f32.mrb[0].mxu0
        %1945 = vmatprep.mubr.f32.mxu0 0.0
        %1946 = vmatmul.mubr.f32.gmra.mrb[0].mxu0 %v532
        %v1947 = vpop.f32.mrb[0].mxu0
        %v1948 = vadd.f32 0.0, %v1947
        %v1949 = vpop.f32.mrb[0].mxu0
        %1950 = vmatprep.mubr.f32.mxu0 0.0
        %1951 = vmatmul.mubr.f32.gmra.mrb[0].mxu0 %v534
        %v1952 = vpop.f32.mrb[0].mxu0
        %v1953 = vadd.f32 0.0, %v1952
        %v1954 = vpop.f32.mrb[0].mxu0
        %1955 = vmatprep.mubr.f32.mxu0 0.0
        %1956 = vmatmul.mubr.f32.gmra.mrb[0].mxu0 %v536
        %v1957 = vpop.f32.mrb[0].mxu0
        %v1958 = vadd.f32 0.0, %v1957
        %v1959 = vpop.f32.mrb[0].mxu0
        %1960 = vmatprep.mubr.f32.mxu0 0.0
        %1961 = vmatmul.mubr.f32.gmra.mrb[0].mxu0 %v538
        %v1962 = vpop.f32.mrb[0].mxu0
        %v1963 = vadd.f32 0.0, %v1962
        %v1964 = vpop.f32.mrb[0].mxu0
        %1965 = vmatprep.mubr.f32.mxu0 0.0
        %1966 = vmatmul.mubr.f32.gmra.mrb[0].mxu0 %v1744
        %v1967 = vpop.f32.mrb[0].mxu0
        %v1968 = vadd.f32 0.0, %v1967
        %v1969 = vpop.f32.mrb[0].mxu0
        %1970 = vmatprep.mubr.f32.mxu0 0.0
        %1971 = vmatmul.mubr.f32.gmra.mrb[0].mxu0 %v1746
        %v1972 = vpop.f32.mrb[0].mxu0
        %v1973 = vadd.f32 0.0, %v1972
        %v1974 = vpop.f32.mrb[0].mxu0
        %1975 = vdwg.mxu0
        %v1976 = vadd.f32 %v1704, %v1818
        %v1977 = vadd.f32 %v1705, %v1823
        %v1978 = vadd.f32 %v1706, %v1828
        %v1979 = vadd.f32 %v1707, %v1833
        %v1980 = vadd.f32 %v1708, %v1838
        %v1981 = vadd.f32 %v1709, %v1843
        %v1982 = vadd.f32 %v1710, %v1848
        %v1983 = vadd.f32 %v1711, %v1853
        %v1984 = vadd.f32 %v1712, %v1858
        %v1985 = vadd.f32 %v1713, %v1863
        %v1986 = vadd.f32 %v1714, %v1868
        %v1987 = vadd.f32 %v1715, %v1873
        %v1988 = vadd.f32 %v1716, %v1878
        %v1989 = vadd.f32 %v1717, %v1883
        %v1990 = vadd.f32 %v1718, %v1888
        %v1991 = vadd.f32 %v1719, %v1893
        %v1992 = vadd.f32 %v1720, %v1898
        %v1993 = vadd.f32 %v1721, %v1903
        %v1994 = vadd.f32 %v1722, %v1908
        %v1995 = vadd.f32 %v1723, %v1913
        %v1996 = vadd.f32 %v1724, %v1918
        %v1997 = vadd.f32 %v1725, %v1923
        %v1998 = vadd.f32 %v1726, %v1928
        %v1999 = vadd.f32 %v1727, %v1933
        %v2000 = vadd.f32 %v1728, %v1938
        %v2001 = vadd.f32 %v1729, %v1943
        %v2002 = vadd.f32 %v1730, %v1948
        %v2003 = vadd.f32 %v1731, %v1953
        %v2004 = vadd.f32 %v1732, %v1958
        %v2005 = vadd.f32 %v1733, %v1963
        %v2006 = vadd.f32 %v1734, %v1968
        %v2007 = vadd.f32 %v1735, %v1973
        %v2008 = vrot.slane %v338, 2
        %v2009 = vrot.slane %v339, 2
        %v2010 = vsel %vm1061, %v2008, %v2009
        %v2011 = vrot.slane %v340, 2
        %v2012 = vsel %vm1061, %v2009, %v2011
        %s2013 = scalar_lea.vmem %s1, 20
        %v2014 = vld [vmem:[%s2013] sm:$0x7]
        %v2015 = vsel %vm201, %v2010, 0
        %v2017 = vsel %vm201, %v2012, 0
        %v2020 = vsel %vm540, %v2014, 0
        %2022 = vmatprep.subr.mxu0 0.0
        %2023 = vmatpush1.msra.mxu0 %v2020
        %2024 = vmatprep.subr.mxu0 0.0
        %2025 = vmatpush1.msra.mxu0 0.0
        %2026 = vmatprep.subr.mxu0 0.0
        %2027 = vmatpush1.msra.mxu0 0.0
        %2028 = vmatprep.subr.mxu0 0.0
        %2029 = vmatpush1.msra.mxu0 0.0
        %2030 = vmatprep.subr.mxu0 0.0
        %2031 = vmatpush1.msra.mxu0 0.0
        %2032 = vmatprep.subr.mxu0 0.0
        %2033 = vmatpush1.msra.mxu0 0.0
        %2034 = vmatprep.subr.mxu0 0.0
        %2035 = vmatpush1.msra.mxu0 0.0
        %2036 = vmatprep.subr.mxu0 0.0
        %2037 = vmatpush1.msra.mxu0 0.0
        %2038 = vmatprep.subr.mxu0 0.0
        %2039 = vmatpush1.msra.mxu0 0.0
        %2040 = vmatprep.subr.mxu0 0.0
        %2041 = vmatpush1.msra.mxu0 0.0
        %2042 = vmatprep.subr.mxu0 0.0
        %2043 = vmatpush1.msra.mxu0 0.0
        %2044 = vmatprep.subr.mxu0 0.0
        %2045 = vmatpush1.msra.mxu0 0.0
        %2046 = vmatprep.subr.mxu0 0.0
        %2047 = vmatpush1.msra.mxu0 0.0
        %2048 = vmatprep.subr.mxu0 0.0
        %2049 = vmatpush1.msra.mxu0 0.0
        %2050 = vmatprep.subr.mxu0 0.0
        %2051 = vmatpush1.msra.mxu0 0.0
        %2052 = vmatprep.subr.mxu0 0.0
        %2053 = vmatpush1.msra.mxu0 0.0
        %2054 = vmatprep.subr.mxu0 0.0
        %2055 = vmatpush1.msra.mxu0 0.0
        %2056 = vmatprep.subr.mxu0 0.0
        %2057 = vmatpush1.msra.mxu0 0.0
        %2058 = vmatprep.subr.mxu0 0.0
        %2059 = vmatpush1.msra.mxu0 0.0
        %2060 = vmatprep.subr.mxu0 0.0
        %2061 = vmatpush1.msra.mxu0 0.0
        %2062 = vmatprep.subr.mxu0 0.0
        %2063 = vmatpush1.msra.mxu0 0.0
        %2064 = vmatprep.subr.mxu0 0.0
        %2065 = vmatpush1.msra.mxu0 0.0
        %2066 = vmatprep.subr.mxu0 0.0
        %2067 = vmatpush1.msra.mxu0 0.0
        %2068 = vmatprep.subr.mxu0 0.0
        %2069 = vmatpush1.msra.mxu0 0.0
        %2070 = vmatprep.subr.mxu0 0.0
        %2071 = vmatpush1.msra.mxu0 0.0
        %2072 = vmatprep.subr.mxu0 0.0
        %2073 = vmatpush1.msra.mxu0 0.0
        %2074 = vmatprep.subr.mxu0 0.0
        %2075 = vmatpush1.msra.mxu0 0.0
        %2076 = vmatprep.subr.mxu0 0.0
        %2077 = vmatpush1.msra.mxu0 0.0
        %2078 = vmatprep.subr.mxu0 0.0
        %2079 = vmatpush1.msra.mxu0 0.0
        %2080 = vmatprep.subr.mxu0 0.0
        %2081 = vmatpush1.msra.mxu0 0.0
        %2082 = vmatprep.subr.mxu0 0.0
        %2083 = vmatpush1.msra.mxu0 0.0
        %2084 = vmatprep.subr.mxu0 0.0
        %2085 = vmatpush1.msra.mxu0 0.0
        %2086 = vmatprep.mubr.f32.mxu0 0.0
        %2087 = vmatmul.mubr.f32.gmra.mrb[0].mxu0 %v1148
        %v2088 = vpop.f32.mrb[0].mxu0
        %v2089 = vadd.f32 0.0, %v2088
        %v2090 = vpop.f32.mrb[0].mxu0
        %2091 = vmatprep.mubr.f32.mxu0 0.0
        %2092 = vmatmul.mubr.f32.gmra.mrb[0].mxu0 %v1150
        %v2093 = vpop.f32.mrb[0].mxu0
        %v2094 = vadd.f32 0.0, %v2093
        %v2095 = vpop.f32.mrb[0].mxu0
        %2096 = vmatprep.mubr.f32.mxu0 0.0
        %2097 = vmatmul.mubr.f32.gmra.mrb[0].mxu0 %v1152
        %v2098 = vpop.f32.mrb[0].mxu0
        %v2099 = vadd.f32 0.0, %v2098
        %v2100 = vpop.f32.mrb[0].mxu0
        %2101 = vmatprep.mubr.f32.mxu0 0.0
        %2102 = vmatmul.mubr.f32.gmra.mrb[0].mxu0 %v1154
        %v2103 = vpop.f32.mrb[0].mxu0
        %v2104 = vadd.f32 0.0, %v2103
        %v2105 = vpop.f32.mrb[0].mxu0
        %2106 = vmatprep.mubr.f32.mxu0 0.0
        %2107 = vmatmul.mubr.f32.gmra.mrb[0].mxu0 %v1156
        %v2108 = vpop.f32.mrb[0].mxu0
        %v2109 = vadd.f32 0.0, %v2108
        %v2110 = vpop.f32.mrb[0].mxu0
        %2111 = vmatprep.mubr.f32.mxu0 0.0
        %2112 = vmatmul.mubr.f32.gmra.mrb[0].mxu0 %v1158
        %v2113 = vpop.f32.mrb[0].mxu0
        %v2114 = vadd.f32 0.0, %v2113
        %v2115 = vpop.f32.mrb[0].mxu0
        %2116 = vmatprep.mubr.f32.mxu0 0.0
        %2117 = vmatmul.mubr.f32.gmra.mrb[0].mxu0 %v1160
        %v2118 = vpop.f32.mrb[0].mxu0
        %v2119 = vadd.f32 0.0, %v2118
        %v2120 = vpop.f32.mrb[0].mxu0
        %2121 = vmatprep.mubr.f32.mxu0 0.0
        %2122 = vmatmul.mubr.f32.gmra.mrb[0].mxu0 %v1162
        %v2123 = vpop.f32.mrb[0].mxu0
        %v2124 = vadd.f32 0.0, %v2123
        %v2125 = vpop.f32.mrb[0].mxu0
        %2126 = vmatprep.mubr.f32.mxu0 0.0
        %2127 = vmatmul.mubr.f32.gmra.mrb[0].mxu0 %v1164
        %v2128 = vpop.f32.mrb[0].mxu0
        %v2129 = vadd.f32 0.0, %v2128
        %v2130 = vpop.f32.mrb[0].mxu0
        %2131 = vmatprep.mubr.f32.mxu0 0.0
        %2132 = vmatmul.mubr.f32.gmra.mrb[0].mxu0 %v1166
        %v2133 = vpop.f32.mrb[0].mxu0
        %v2134 = vadd.f32 0.0, %v2133
        %v2135 = vpop.f32.mrb[0].mxu0
        %2136 = vmatprep.mubr.f32.mxu0 0.0
        %2137 = vmatmul.mubr.f32.gmra.mrb[0].mxu0 %v1168
        %v2138 = vpop.f32.mrb[0].mxu0
        %v2139 = vadd.f32 0.0, %v2138
        %v2140 = vpop.f32.mrb[0].mxu0
        %2141 = vmatprep.mubr.f32.mxu0 0.0
        %2142 = vmatmul.mubr.f32.gmra.mrb[0].mxu0 %v1170
        %v2143 = vpop.f32.mrb[0].mxu0
        %v2144 = vadd.f32 0.0, %v2143
        %v2145 = vpop.f32.mrb[0].mxu0
        %2146 = vmatprep.mubr.f32.mxu0 0.0
        %2147 = vmatmul.mubr.f32.gmra.mrb[0].mxu0 %v1172
        %v2148 = vpop.f32.mrb[0].mxu0
        %v2149 = vadd.f32 0.0, %v2148
        %v2150 = vpop.f32.mrb[0].mxu0
        %2151 = vmatprep.mubr.f32.mxu0 0.0
        %2152 = vmatmul.mubr.f32.gmra.mrb[0].mxu0 %v1174
        %v2153 = vpop.f32.mrb[0].mxu0
        %v2154 = vadd.f32 0.0, %v2153
        %v2155 = vpop.f32.mrb[0].mxu0
        %2156 = vmatprep.mubr.f32.mxu0 0.0
        %2157 = vmatmul.mubr.f32.gmra.mrb[0].mxu0 %v1176
        %v2158 = vpop.f32.mrb[0].mxu0
        %v2159 = vadd.f32 0.0, %v2158
        %v2160 = vpop.f32.mrb[0].mxu0
        %2161 = vmatprep.mubr.f32.mxu0 0.0
        %2162 = vmatmul.mubr.f32.gmra.mrb[0].mxu0 %v1178
        %v2163 = vpop.f32.mrb[0].mxu0
        %v2164 = vadd.f32 0.0, %v2163
        %v2165 = vpop.f32.mrb[0].mxu0
        %2166 = vmatprep.mubr.f32.mxu0 0.0
        %2167 = vmatmul.mubr.f32.gmra.mrb[0].mxu0 %v1180
        %v2168 = vpop.f32.mrb[0].mxu0
        %v2169 = vadd.f32 0.0, %v2168
        %v2170 = vpop.f32.mrb[0].mxu0
        %2171 = vmatprep.mubr.f32.mxu0 0.0
        %2172 = vmatmul.mubr.f32.gmra.mrb[0].mxu0 %v1182
        %v2173 = vpop.f32.mrb[0].mxu0
        %v2174 = vadd.f32 0.0, %v2173
        %v2175 = vpop.f32.mrb[0].mxu0
        %2176 = vmatprep.mubr.f32.mxu0 0.0
        %2177 = vmatmul.mubr.f32.gmra.mrb[0].mxu0 %v1184
        %v2178 = vpop.f32.mrb[0].mxu0
        %v2179 = vadd.f32 0.0, %v2178
        %v2180 = vpop.f32.mrb[0].mxu0
        %2181 = vmatprep.mubr.f32.mxu0 0.0
        %2182 = vmatmul.mubr.f32.gmra.mrb[0].mxu0 %v1186
        %v2183 = vpop.f32.mrb[0].mxu0
        %v2184 = vadd.f32 0.0, %v2183
        %v2185 = vpop.f32.mrb[0].mxu0
        %2186 = vmatprep.mubr.f32.mxu0 0.0
        %2187 = vmatmul.mubr.f32.gmra.mrb[0].mxu0 %v1188
        %v2188 = vpop.f32.mrb[0].mxu0
        %v2189 = vadd.f32 0.0, %v2188
        %v2190 = vpop.f32.mrb[0].mxu0
        %2191 = vmatprep.mubr.f32.mxu0 0.0
        %2192 = vmatmul.mubr.f32.gmra.mrb[0].mxu0 %v1190
        %v2193 = vpop.f32.mrb[0].mxu0
        %v2194 = vadd.f32 0.0, %v2193
        %v2195 = vpop.f32.mrb[0].mxu0
        %2196 = vmatprep.mubr.f32.mxu0 0.0
        %2197 = vmatmul.mubr.f32.gmra.mrb[0].mxu0 %v1192
        %v2198 = vpop.f32.mrb[0].mxu0
        %v2199 = vadd.f32 0.0, %v2198
        %v2200 = vpop.f32.mrb[0].mxu0
        %2201 = vmatprep.mubr.f32.mxu0 0.0
        %2202 = vmatmul.mubr.f32.gmra.mrb[0].mxu0 %v1194
        %v2203 = vpop.f32.mrb[0].mxu0
        %v2204 = vadd.f32 0.0, %v2203
        %v2205 = vpop.f32.mrb[0].mxu0
        %2206 = vmatprep.mubr.f32.mxu0 0.0
        %2207 = vmatmul.mubr.f32.gmra.mrb[0].mxu0 %v1196
        %v2208 = vpop.f32.mrb[0].mxu0
        %v2209 = vadd.f32 0.0, %v2208
        %v2210 = vpop.f32.mrb[0].mxu0
        %2211 = vmatprep.mubr.f32.mxu0 0.0
        %2212 = vmatmul.mubr.f32.gmra.mrb[0].mxu0 %v1198
        %v2213 = vpop.f32.mrb[0].mxu0
        %v2214 = vadd.f32 0.0, %v2213
        %v2215 = vpop.f32.mrb[0].mxu0
        %2216 = vmatprep.mubr.f32.mxu0 0.0
        %2217 = vmatmul.mubr.f32.gmra.mrb[0].mxu0 %v1200
        %v2218 = vpop.f32.mrb[0].mxu0
        %v2219 = vadd.f32 0.0, %v2218
        %v2220 = vpop.f32.mrb[0].mxu0
        %2221 = vmatprep.mubr.f32.mxu0 0.0
        %2222 = vmatmul.mubr.f32.gmra.mrb[0].mxu0 %v1202
        %v2223 = vpop.f32.mrb[0].mxu0
        %v2224 = vadd.f32 0.0, %v2223
        %v2225 = vpop.f32.mrb[0].mxu0
        %2226 = vmatprep.mubr.f32.mxu0 0.0
        %2227 = vmatmul.mubr.f32.gmra.mrb[0].mxu0 %v1204
        %v2228 = vpop.f32.mrb[0].mxu0
        %v2229 = vadd.f32 0.0, %v2228
        %v2230 = vpop.f32.mrb[0].mxu0
        %2231 = vmatprep.mubr.f32.mxu0 0.0
        %2232 = vmatmul.mubr.f32.gmra.mrb[0].mxu0 %v1206
        %v2233 = vpop.f32.mrb[0].mxu0
        %v2234 = vadd.f32 0.0, %v2233
        %v2235 = vpop.f32.mrb[0].mxu0
        %2236 = vmatprep.mubr.f32.mxu0 0.0
        %2237 = vmatmul.mubr.f32.gmra.mrb[0].mxu0 %v2015
        %v2238 = vpop.f32.mrb[0].mxu0
        %v2239 = vadd.f32 0.0, %v2238
        %v2240 = vpop.f32.mrb[0].mxu0
        %2241 = vmatprep.mubr.f32.mxu0 0.0
        %2242 = vmatmul.mubr.f32.gmra.mrb[0].mxu0 %v2017
        %v2243 = vpop.f32.mrb[0].mxu0
        %v2244 = vadd.f32 0.0, %v2243
        %v2245 = vpop.f32.mrb[0].mxu0
        %2246 = vdwg.mxu0
        %v2247 = vadd.f32 %v1976, %v2089
        %v2248 = vadd.f32 %v1977, %v2094
        %v2249 = vadd.f32 %v1978, %v2099
        %v2250 = vadd.f32 %v1979, %v2104
        %v2251 = vadd.f32 %v1980, %v2109
        %v2252 = vadd.f32 %v1981, %v2114
        %v2253 = vadd.f32 %v1982, %v2119
        %v2254 = vadd.f32 %v1983, %v2124
        %v2255 = vadd.f32 %v1984, %v2129
        %v2256 = vadd.f32 %v1985, %v2134
        %v2257 = vadd.f32 %v1986, %v2139
        %v2258 = vadd.f32 %v1987, %v2144
        %v2259 = vadd.f32 %v1988, %v2149
        %v2260 = vadd.f32 %v1989, %v2154
        %v2261 = vadd.f32 %v1990, %v2159
        %v2262 = vadd.f32 %v1991, %v2164
        %v2263 = vadd.f32 %v1992, %v2169
        %v2264 = vadd.f32 %v1993, %v2174
        %v2265 = vadd.f32 %v1994, %v2179
        %v2266 = vadd.f32 %v1995, %v2184
        %v2267 = vadd.f32 %v1996, %v2189
        %v2268 = vadd.f32 %v1997, %v2194
        %v2269 = vadd.f32 %v1998, %v2199
        %v2270 = vadd.f32 %v1999, %v2204
        %v2271 = vadd.f32 %v2000, %v2209
        %v2272 = vadd.f32 %v2001, %v2214
        %v2273 = vadd.f32 %v2002, %v2219
        %v2274 = vadd.f32 %v2003, %v2224
        %v2275 = vadd.f32 %v2004, %v2229
        %v2276 = vadd.f32 %v2005, %v2234
        %v2277 = vadd.f32 %v2006, %v2239
        %v2278 = vadd.f32 %v2007, %v2244
        %s2279 = scalar_lea.vmem %s1, 24
        %v2280 = vld [vmem:[%s2279] sm:$0x7]
        %v2282 = vsel %vm201, %v341, 0
        %v2285 = vsel %vm201, %v342, 0
        %v2288 = vsel %vm540, %v2280, 0
        %2290 = vmatprep.subr.mxu0 0.0
        %2291 = vmatpush1.msra.mxu0 %v2288
        %2292 = vmatprep.subr.mxu0 0.0
        %2293 = vmatpush1.msra.mxu0 0.0
        %2294 = vmatprep.subr.mxu0 0.0
        %2295 = vmatpush1.msra.mxu0 0.0
        %2296 = vmatprep.subr.mxu0 0.0
        %2297 = vmatpush1.msra.mxu0 0.0
        %2298 = vmatprep.subr.mxu0 0.0
        %2299 = vmatpush1.msra.mxu0 0.0
        %2300 = vmatprep.subr.mxu0 0.0
        %2301 = vmatpush1.msra.mxu0 0.0
        %2302 = vmatprep.subr.mxu0 0.0
        %2303 = vmatpush1.msra.mxu0 0.0
        %2304 = vmatprep.subr.mxu0 0.0
        %2305 = vmatpush1.msra.mxu0 0.0
        %2306 = vmatprep.subr.mxu0 0.0
        %2307 = vmatpush1.msra.mxu0 0.0
        %2308 = vmatprep.subr.mxu0 0.0
        %2309 = vmatpush1.msra.mxu0 0.0
        %2310 = vmatprep.subr.mxu0 0.0
        %2311 = vmatpush1.msra.mxu0 0.0
        %2312 = vmatprep.subr.mxu0 0.0
        %2313 = vmatpush1.msra.mxu0 0.0
        %2314 = vmatprep.subr.mxu0 0.0
        %2315 = vmatpush1.msra.mxu0 0.0
        %2316 = vmatprep.subr.mxu0 0.0
        %2317 = vmatpush1.msra.mxu0 0.0
        %2318 = vmatprep.subr.mxu0 0.0
        %2319 = vmatpush1.msra.mxu0 0.0
        %2320 = vmatprep.subr.mxu0 0.0
        %2321 = vmatpush1.msra.mxu0 0.0
        %2322 = vmatprep.subr.mxu0 0.0
        %2323 = vmatpush1.msra.mxu0 0.0
        %2324 = vmatprep.subr.mxu0 0.0
        %2325 = vmatpush1.msra.mxu0 0.0
        %2326 = vmatprep.subr.mxu0 0.0
        %2327 = vmatpush1.msra.mxu0 0.0
        %2328 = vmatprep.subr.mxu0 0.0
        %2329 = vmatpush1.msra.mxu0 0.0
        %2330 = vmatprep.subr.mxu0 0.0
        %2331 = vmatpush1.msra.mxu0 0.0
        %2332 = vmatprep.subr.mxu0 0.0
        %2333 = vmatpush1.msra.mxu0 0.0
        %2334 = vmatprep.subr.mxu0 0.0
        %2335 = vmatpush1.msra.mxu0 0.0
        %2336 = vmatprep.subr.mxu0 0.0
        %2337 = vmatpush1.msra.mxu0 0.0
        %2338 = vmatprep.subr.mxu0 0.0
        %2339 = vmatpush1.msra.mxu0 0.0
        %2340 = vmatprep.subr.mxu0 0.0
        %2341 = vmatpush1.msra.mxu0 0.0
        %2342 = vmatprep.subr.mxu0 0.0
        %2343 = vmatpush1.msra.mxu0 0.0
        %2344 = vmatprep.subr.mxu0 0.0
        %2345 = vmatpush1.msra.mxu0 0.0
        %2346 = vmatprep.subr.mxu0 0.0
        %2347 = vmatpush1.msra.mxu0 0.0
        %2348 = vmatprep.subr.mxu0 0.0
        %2349 = vmatpush1.msra.mxu0 0.0
        %2350 = vmatprep.subr.mxu0 0.0
        %2351 = vmatpush1.msra.mxu0 0.0
        %2352 = vmatprep.subr.mxu0 0.0
        %2353 = vmatpush1.msra.mxu0 0.0
        %2354 = vmatprep.mubr.f32.mxu0 0.0
        %2355 = vmatmul.mubr.f32.gmra.mrb[0].mxu0 %v777
        %v2356 = vpop.f32.mrb[0].mxu0
        %v2357 = vadd.f32 0.0, %v2356
        %v2358 = vpop.f32.mrb[0].mxu0
        %2359 = vmatprep.mubr.f32.mxu0 0.0
        %2360 = vmatmul.mubr.f32.gmra.mrb[0].mxu0 %v779
        %v2361 = vpop.f32.mrb[0].mxu0
        %v2362 = vadd.f32 0.0, %v2361
        %v2363 = vpop.f32.mrb[0].mxu0
        %2364 = vmatprep.mubr.f32.mxu0 0.0
        %2365 = vmatmul.mubr.f32.gmra.mrb[0].mxu0 %v781
        %v2366 = vpop.f32.mrb[0].mxu0
        %v2367 = vadd.f32 0.0, %v2366
        %v2368 = vpop.f32.mrb[0].mxu0
        %2369 = vmatprep.mubr.f32.mxu0 0.0
        %2370 = vmatmul.mubr.f32.gmra.mrb[0].mxu0 %v783
        %v2371 = vpop.f32.mrb[0].mxu0
        %v2372 = vadd.f32 0.0, %v2371
        %v2373 = vpop.f32.mrb[0].mxu0
        %2374 = vmatprep.mubr.f32.mxu0 0.0
        %2375 = vmatmul.mubr.f32.gmra.mrb[0].mxu0 %v785
        %v2376 = vpop.f32.mrb[0].mxu0
        %v2377 = vadd.f32 0.0, %v2376
        %v2378 = vpop.f32.mrb[0].mxu0
        %2379 = vmatprep.mubr.f32.mxu0 0.0
        %2380 = vmatmul.mubr.f32.gmra.mrb[0].mxu0 %v787
        %v2381 = vpop.f32.mrb[0].mxu0
        %v2382 = vadd.f32 0.0, %v2381
        %v2383 = vpop.f32.mrb[0].mxu0
        %2384 = vmatprep.mubr.f32.mxu0 0.0
        %2385 = vmatmul.mubr.f32.gmra.mrb[0].mxu0 %v789
        %v2386 = vpop.f32.mrb[0].mxu0
        %v2387 = vadd.f32 0.0, %v2386
        %v2388 = vpop.f32.mrb[0].mxu0
        %2389 = vmatprep.mubr.f32.mxu0 0.0
        %2390 = vmatmul.mubr.f32.gmra.mrb[0].mxu0 %v791
        %v2391 = vpop.f32.mrb[0].mxu0
        %v2392 = vadd.f32 0.0, %v2391
        %v2393 = vpop.f32.mrb[0].mxu0
        %2394 = vmatprep.mubr.f32.mxu0 0.0
        %2395 = vmatmul.mubr.f32.gmra.mrb[0].mxu0 %v793
        %v2396 = vpop.f32.mrb[0].mxu0
        %v2397 = vadd.f32 0.0, %v2396
        %v2398 = vpop.f32.mrb[0].mxu0
        %2399 = vmatprep.mubr.f32.mxu0 0.0
        %2400 = vmatmul.mubr.f32.gmra.mrb[0].mxu0 %v795
        %v2401 = vpop.f32.mrb[0].mxu0
        %v2402 = vadd.f32 0.0, %v2401
        %v2403 = vpop.f32.mrb[0].mxu0
        %2404 = vmatprep.mubr.f32.mxu0 0.0
        %2405 = vmatmul.mubr.f32.gmra.mrb[0].mxu0 %v797
        %v2406 = vpop.f32.mrb[0].mxu0
        %v2407 = vadd.f32 0.0, %v2406
        %v2408 = vpop.f32.mrb[0].mxu0
        %2409 = vmatprep.mubr.f32.mxu0 0.0
        %2410 = vmatmul.mubr.f32.gmra.mrb[0].mxu0 %v799
        %v2411 = vpop.f32.mrb[0].mxu0
        %v2412 = vadd.f32 0.0, %v2411
        %v2413 = vpop.f32.mrb[0].mxu0
        %2414 = vmatprep.mubr.f32.mxu0 0.0
        %2415 = vmatmul.mubr.f32.gmra.mrb[0].mxu0 %v801
        %v2416 = vpop.f32.mrb[0].mxu0
        %v2417 = vadd.f32 0.0, %v2416
        %v2418 = vpop.f32.mrb[0].mxu0
        %2419 = vmatprep.mubr.f32.mxu0 0.0
        %2420 = vmatmul.mubr.f32.gmra.mrb[0].mxu0 %v803
        %v2421 = vpop.f32.mrb[0].mxu0
        %v2422 = vadd.f32 0.0, %v2421
        %v2423 = vpop.f32.mrb[0].mxu0
        %2424 = vmatprep.mubr.f32.mxu0 0.0
        %2425 = vmatmul.mubr.f32.gmra.mrb[0].mxu0 %v805
        %v2426 = vpop.f32.mrb[0].mxu0
        %v2427 = vadd.f32 0.0, %v2426
        %v2428 = vpop.f32.mrb[0].mxu0
        %2429 = vmatprep.mubr.f32.mxu0 0.0
        %2430 = vmatmul.mubr.f32.gmra.mrb[0].mxu0 %v807
        %v2431 = vpop.f32.mrb[0].mxu0
        %v2432 = vadd.f32 0.0, %v2431
        %v2433 = vpop.f32.mrb[0].mxu0
        %2434 = vmatprep.mubr.f32.mxu0 0.0
        %2435 = vmatmul.mubr.f32.gmra.mrb[0].mxu0 %v809
        %v2436 = vpop.f32.mrb[0].mxu0
        %v2437 = vadd.f32 0.0, %v2436
        %v2438 = vpop.f32.mrb[0].mxu0
        %2439 = vmatprep.mubr.f32.mxu0 0.0
        %2440 = vmatmul.mubr.f32.gmra.mrb[0].mxu0 %v811
        %v2441 = vpop.f32.mrb[0].mxu0
        %v2442 = vadd.f32 0.0, %v2441
        %v2443 = vpop.f32.mrb[0].mxu0
        %2444 = vmatprep.mubr.f32.mxu0 0.0
        %2445 = vmatmul.mubr.f32.gmra.mrb[0].mxu0 %v813
        %v2446 = vpop.f32.mrb[0].mxu0
        %v2447 = vadd.f32 0.0, %v2446
        %v2448 = vpop.f32.mrb[0].mxu0
        %2449 = vmatprep.mubr.f32.mxu0 0.0
        %2450 = vmatmul.mubr.f32.gmra.mrb[0].mxu0 %v815
        %v2451 = vpop.f32.mrb[0].mxu0
        %v2452 = vadd.f32 0.0, %v2451
        %v2453 = vpop.f32.mrb[0].mxu0
        %2454 = vmatprep.mubr.f32.mxu0 0.0
        %2455 = vmatmul.mubr.f32.gmra.mrb[0].mxu0 %v817
        %v2456 = vpop.f32.mrb[0].mxu0
        %v2457 = vadd.f32 0.0, %v2456
        %v2458 = vpop.f32.mrb[0].mxu0
        %2459 = vmatprep.mubr.f32.mxu0 0.0
        %2460 = vmatmul.mubr.f32.gmra.mrb[0].mxu0 %v819
        %v2461 = vpop.f32.mrb[0].mxu0
        %v2462 = vadd.f32 0.0, %v2461
        %v2463 = vpop.f32.mrb[0].mxu0
        %2464 = vmatprep.mubr.f32.mxu0 0.0
        %2465 = vmatmul.mubr.f32.gmra.mrb[0].mxu0 %v821
        %v2466 = vpop.f32.mrb[0].mxu0
        %v2467 = vadd.f32 0.0, %v2466
        %v2468 = vpop.f32.mrb[0].mxu0
        %2469 = vmatprep.mubr.f32.mxu0 0.0
        %2470 = vmatmul.mubr.f32.gmra.mrb[0].mxu0 %v823
        %v2471 = vpop.f32.mrb[0].mxu0
        %v2472 = vadd.f32 0.0, %v2471
        %v2473 = vpop.f32.mrb[0].mxu0
        %2474 = vmatprep.mubr.f32.mxu0 0.0
        %2475 = vmatmul.mubr.f32.gmra.mrb[0].mxu0 %v825
        %v2476 = vpop.f32.mrb[0].mxu0
        %v2477 = vadd.f32 0.0, %v2476
        %v2478 = vpop.f32.mrb[0].mxu0
        %2479 = vmatprep.mubr.f32.mxu0 0.0
        %2480 = vmatmul.mubr.f32.gmra.mrb[0].mxu0 %v827
        %v2481 = vpop.f32.mrb[0].mxu0
        %v2482 = vadd.f32 0.0, %v2481
        %v2483 = vpop.f32.mrb[0].mxu0
        %2484 = vmatprep.mubr.f32.mxu0 0.0
        %2485 = vmatmul.mubr.f32.gmra.mrb[0].mxu0 %v829
        %v2486 = vpop.f32.mrb[0].mxu0
        %v2487 = vadd.f32 0.0, %v2486
        %v2488 = vpop.f32.mrb[0].mxu0
        %2489 = vmatprep.mubr.f32.mxu0 0.0
        %2490 = vmatmul.mubr.f32.gmra.mrb[0].mxu0 %v831
        %v2491 = vpop.f32.mrb[0].mxu0
        %v2492 = vadd.f32 0.0, %v2491
        %v2493 = vpop.f32.mrb[0].mxu0
        %2494 = vmatprep.mubr.f32.mxu0 0.0
        %2495 = vmatmul.mubr.f32.gmra.mrb[0].mxu0 %v1471
        %v2496 = vpop.f32.mrb[0].mxu0
        %v2497 = vadd.f32 0.0, %v2496
        %v2498 = vpop.f32.mrb[0].mxu0
        %2499 = vmatprep.mubr.f32.mxu0 0.0
        %2500 = vmatmul.mubr.f32.gmra.mrb[0].mxu0 %v1474
        %v2501 = vpop.f32.mrb[0].mxu0
        %v2502 = vadd.f32 0.0, %v2501
        %v2503 = vpop.f32.mrb[0].mxu0
        %2504 = vmatprep.mubr.f32.mxu0 0.0
        %2505 = vmatmul.mubr.f32.gmra.mrb[0].mxu0 %v2282
        %v2506 = vpop.f32.mrb[0].mxu0
        %v2507 = vadd.f32 0.0, %v2506
        %v2508 = vpop.f32.mrb[0].mxu0
        %2509 = vmatprep.mubr.f32.mxu0 0.0
        %2510 = vmatmul.mubr.f32.gmra.mrb[0].mxu0 %v2285
        %v2511 = vpop.f32.mrb[0].mxu0
        %v2512 = vadd.f32 0.0, %v2511
        %v2513 = vpop.f32.mrb[0].mxu0
        %2514 = vdwg.mxu0
        %v2515 = vadd.f32 %v2247, %v2357
        %v2516 = vadd.f32 %v2248, %v2362
        %v2517 = vadd.f32 %v2249, %v2367
        %v2518 = vadd.f32 %v2250, %v2372
        %v2519 = vadd.f32 %v2251, %v2377
        %v2520 = vadd.f32 %v2252, %v2382
        %v2521 = vadd.f32 %v2253, %v2387
        %v2522 = vadd.f32 %v2254, %v2392
        %v2523 = vadd.f32 %v2255, %v2397
        %v2524 = vadd.f32 %v2256, %v2402
        %v2525 = vadd.f32 %v2257, %v2407
        %v2526 = vadd.f32 %v2258, %v2412
        %v2527 = vadd.f32 %v2259, %v2417
        %v2528 = vadd.f32 %v2260, %v2422
        %v2529 = vadd.f32 %v2261, %v2427
        %v2530 = vadd.f32 %v2262, %v2432
        %v2531 = vadd.f32 %v2263, %v2437
        %v2532 = vadd.f32 %v2264, %v2442
        %v2533 = vadd.f32 %v2265, %v2447
        %v2534 = vadd.f32 %v2266, %v2452
        %v2535 = vadd.f32 %v2267, %v2457
        %v2536 = vadd.f32 %v2268, %v2462
        %v2537 = vadd.f32 %v2269, %v2467
        %v2538 = vadd.f32 %v2270, %v2472
        %v2539 = vadd.f32 %v2271, %v2477
        %v2540 = vadd.f32 %v2272, %v2482
        %v2541 = vadd.f32 %v2273, %v2487
        %v2542 = vadd.f32 %v2274, %v2492
        %v2543 = vadd.f32 %v2275, %v2497
        %v2544 = vadd.f32 %v2276, %v2502
        %v2545 = vadd.f32 %v2277, %v2507
        %v2546 = vadd.f32 %v2278, %v2512
        %v2548 = vrot.slane %v341, 1
        %v2549 = vrot.slane %v342, 1
        %v2550 = vsel %vm393, %v2548, %v2549
        %v2551 = vrot.slane %v343, 1
        %v2552 = vsel %vm393, %v2549, %v2551
        %s2553 = scalar_lea.vmem %s1, 28
        %v2554 = vld [vmem:[%s2553] sm:$0x7]
        %v2555 = vsel %vm201, %v2550, 0
        %v2557 = vsel %vm201, %v2552, 0
        %v2560 = vsel %vm540, %v2554, 0
        %2562 = vmatprep.subr.mxu0 0.0
        %2563 = vmatpush1.msra.mxu0 %v2560
        %2564 = vmatprep.subr.mxu0 0.0
        %2565 = vmatpush1.msra.mxu0 0.0
        %2566 = vmatprep.subr.mxu0 0.0
        %2567 = vmatpush1.msra.mxu0 0.0
        %2568 = vmatprep.subr.mxu0 0.0
        %2569 = vmatpush1.msra.mxu0 0.0
        %2570 = vmatprep.subr.mxu0 0.0
        %2571 = vmatpush1.msra.mxu0 0.0
        %2572 = vmatprep.subr.mxu0 0.0
        %2573 = vmatpush1.msra.mxu0 0.0
        %2574 = vmatprep.subr.mxu0 0.0
        %2575 = vmatpush1.msra.mxu0 0.0
        %2576 = vmatprep.subr.mxu0 0.0
        %2577 = vmatpush1.msra.mxu0 0.0
        %2578 = vmatprep.subr.mxu0 0.0
        %2579 = vmatpush1.msra.mxu0 0.0
        %2580 = vmatprep.subr.mxu0 0.0
        %2581 = vmatpush1.msra.mxu0 0.0
        %2582 = vmatprep.subr.mxu0 0.0
        %2583 = vmatpush1.msra.mxu0 0.0
        %2584 = vmatprep.subr.mxu0 0.0
        %2585 = vmatpush1.msra.mxu0 0.0
        %2586 = vmatprep.subr.mxu0 0.0
        %2587 = vmatpush1.msra.mxu0 0.0
        %2588 = vmatprep.subr.mxu0 0.0
        %2589 = vmatpush1.msra.mxu0 0.0
        %2590 = vmatprep.subr.mxu0 0.0
        %2591 = vmatpush1.msra.mxu0 0.0
        %2592 = vmatprep.subr.mxu0 0.0
        %2593 = vmatpush1.msra.mxu0 0.0
        %2594 = vmatprep.subr.mxu0 0.0
        %2595 = vmatpush1.msra.mxu0 0.0
        %2596 = vmatprep.subr.mxu0 0.0
        %2597 = vmatpush1.msra.mxu0 0.0
        %2598 = vmatprep.subr.mxu0 0.0
        %2599 = vmatpush1.msra.mxu0 0.0
        %2600 = vmatprep.subr.mxu0 0.0
        %2601 = vmatpush1.msra.mxu0 0.0
        %2602 = vmatprep.subr.mxu0 0.0
        %2603 = vmatpush1.msra.mxu0 0.0
        %2604 = vmatprep.subr.mxu0 0.0
        %2605 = vmatpush1.msra.mxu0 0.0
        %2606 = vmatprep.subr.mxu0 0.0
        %2607 = vmatpush1.msra.mxu0 0.0
        %2608 = vmatprep.subr.mxu0 0.0
        %2609 = vmatpush1.msra.mxu0 0.0
        %2610 = vmatprep.subr.mxu0 0.0
        %2611 = vmatpush1.msra.mxu0 0.0
        %2612 = vmatprep.subr.mxu0 0.0
        %2613 = vmatpush1.msra.mxu0 0.0
        %2614 = vmatprep.subr.mxu0 0.0
        %2615 = vmatpush1.msra.mxu0 0.0
        %2616 = vmatprep.subr.mxu0 0.0
        %2617 = vmatpush1.msra.mxu0 0.0
        %2618 = vmatprep.subr.mxu0 0.0
        %2619 = vmatpush1.msra.mxu0 0.0
        %2620 = vmatprep.subr.mxu0 0.0
        %2621 = vmatpush1.msra.mxu0 0.0
        %2622 = vmatprep.subr.mxu0 0.0
        %2623 = vmatpush1.msra.mxu0 0.0
        %2624 = vmatprep.subr.mxu0 0.0
        %2625 = vmatpush1.msra.mxu0 0.0
        %2626 = vmatprep.mubr.f32.mxu0 0.0
        %2627 = vmatmul.mubr.f32.gmra.mrb[0].mxu0 %v484
        %v2628 = vpop.f32.mrb[0].mxu0
        %v2629 = vadd.f32 0.0, %v2628
        %v2630 = vpop.f32.mrb[0].mxu0
        %2631 = vmatprep.mubr.f32.mxu0 0.0
        %2632 = vmatmul.mubr.f32.gmra.mrb[0].mxu0 %v486
        %v2633 = vpop.f32.mrb[0].mxu0
        %v2634 = vadd.f32 0.0, %v2633
        %v2635 = vpop.f32.mrb[0].mxu0
        %2636 = vmatprep.mubr.f32.mxu0 0.0
        %2637 = vmatmul.mubr.f32.gmra.mrb[0].mxu0 %v488
        %v2638 = vpop.f32.mrb[0].mxu0
        %v2639 = vadd.f32 0.0, %v2638
        %v2640 = vpop.f32.mrb[0].mxu0
        %2641 = vmatprep.mubr.f32.mxu0 0.0
        %2642 = vmatmul.mubr.f32.gmra.mrb[0].mxu0 %v490
        %v2643 = vpop.f32.mrb[0].mxu0
        %v2644 = vadd.f32 0.0, %v2643
        %v2645 = vpop.f32.mrb[0].mxu0
        %2646 = vmatprep.mubr.f32.mxu0 0.0
        %2647 = vmatmul.mubr.f32.gmra.mrb[0].mxu0 %v492
        %v2648 = vpop.f32.mrb[0].mxu0
        %v2649 = vadd.f32 0.0, %v2648
        %v2650 = vpop.f32.mrb[0].mxu0
        %2651 = vmatprep.mubr.f32.mxu0 0.0
        %2652 = vmatmul.mubr.f32.gmra.mrb[0].mxu0 %v494
        %v2653 = vpop.f32.mrb[0].mxu0
        %v2654 = vadd.f32 0.0, %v2653
        %v2655 = vpop.f32.mrb[0].mxu0
        %2656 = vmatprep.mubr.f32.mxu0 0.0
        %2657 = vmatmul.mubr.f32.gmra.mrb[0].mxu0 %v496
        %v2658 = vpop.f32.mrb[0].mxu0
        %v2659 = vadd.f32 0.0, %v2658
        %v2660 = vpop.f32.mrb[0].mxu0
        %2661 = vmatprep.mubr.f32.mxu0 0.0
        %2662 = vmatmul.mubr.f32.gmra.mrb[0].mxu0 %v498
        %v2663 = vpop.f32.mrb[0].mxu0
        %v2664 = vadd.f32 0.0, %v2663
        %v2665 = vpop.f32.mrb[0].mxu0
        %2666 = vmatprep.mubr.f32.mxu0 0.0
        %2667 = vmatmul.mubr.f32.gmra.mrb[0].mxu0 %v500
        %v2668 = vpop.f32.mrb[0].mxu0
        %v2669 = vadd.f32 0.0, %v2668
        %v2670 = vpop.f32.mrb[0].mxu0
        %2671 = vmatprep.mubr.f32.mxu0 0.0
        %2672 = vmatmul.mubr.f32.gmra.mrb[0].mxu0 %v502
        %v2673 = vpop.f32.mrb[0].mxu0
        %v2674 = vadd.f32 0.0, %v2673
        %v2675 = vpop.f32.mrb[0].mxu0
        %2676 = vmatprep.mubr.f32.mxu0 0.0
        %2677 = vmatmul.mubr.f32.gmra.mrb[0].mxu0 %v504
        %v2678 = vpop.f32.mrb[0].mxu0
        %v2679 = vadd.f32 0.0, %v2678
        %v2680 = vpop.f32.mrb[0].mxu0
        %2681 = vmatprep.mubr.f32.mxu0 0.0
        %2682 = vmatmul.mubr.f32.gmra.mrb[0].mxu0 %v506
        %v2683 = vpop.f32.mrb[0].mxu0
        %v2684 = vadd.f32 0.0, %v2683
        %v2685 = vpop.f32.mrb[0].mxu0
        %2686 = vmatprep.mubr.f32.mxu0 0.0
        %2687 = vmatmul.mubr.f32.gmra.mrb[0].mxu0 %v508
        %v2688 = vpop.f32.mrb[0].mxu0
        %v2689 = vadd.f32 0.0, %v2688
        %v2690 = vpop.f32.mrb[0].mxu0
        %2691 = vmatprep.mubr.f32.mxu0 0.0
        %2692 = vmatmul.mubr.f32.gmra.mrb[0].mxu0 %v510
        %v2693 = vpop.f32.mrb[0].mxu0
        %v2694 = vadd.f32 0.0, %v2693
        %v2695 = vpop.f32.mrb[0].mxu0
        %2696 = vmatprep.mubr.f32.mxu0 0.0
        %2697 = vmatmul.mubr.f32.gmra.mrb[0].mxu0 %v512
        %v2698 = vpop.f32.mrb[0].mxu0
        %v2699 = vadd.f32 0.0, %v2698
        %v2700 = vpop.f32.mrb[0].mxu0
        %2701 = vmatprep.mubr.f32.mxu0 0.0
        %2702 = vmatmul.mubr.f32.gmra.mrb[0].mxu0 %v514
        %v2703 = vpop.f32.mrb[0].mxu0
        %v2704 = vadd.f32 0.0, %v2703
        %v2705 = vpop.f32.mrb[0].mxu0
        %2706 = vmatprep.mubr.f32.mxu0 0.0
        %2707 = vmatmul.mubr.f32.gmra.mrb[0].mxu0 %v516
        %v2708 = vpop.f32.mrb[0].mxu0
        %v2709 = vadd.f32 0.0, %v2708
        %v2710 = vpop.f32.mrb[0].mxu0
        %2711 = vmatprep.mubr.f32.mxu0 0.0
        %2712 = vmatmul.mubr.f32.gmra.mrb[0].mxu0 %v518
        %v2713 = vpop.f32.mrb[0].mxu0
        %v2714 = vadd.f32 0.0, %v2713
        %v2715 = vpop.f32.mrb[0].mxu0
        %2716 = vmatprep.mubr.f32.mxu0 0.0
        %2717 = vmatmul.mubr.f32.gmra.mrb[0].mxu0 %v520
        %v2718 = vpop.f32.mrb[0].mxu0
        %v2719 = vadd.f32 0.0, %v2718
        %v2720 = vpop.f32.mrb[0].mxu0
        %2721 = vmatprep.mubr.f32.mxu0 0.0
        %2722 = vmatmul.mubr.f32.gmra.mrb[0].mxu0 %v522
        %v2723 = vpop.f32.mrb[0].mxu0
        %v2724 = vadd.f32 0.0, %v2723
        %v2725 = vpop.f32.mrb[0].mxu0
        %2726 = vmatprep.mubr.f32.mxu0 0.0
        %2727 = vmatmul.mubr.f32.gmra.mrb[0].mxu0 %v524
        %v2728 = vpop.f32.mrb[0].mxu0
        %v2729 = vadd.f32 0.0, %v2728
        %v2730 = vpop.f32.mrb[0].mxu0
        %2731 = vmatprep.mubr.f32.mxu0 0.0
        %2732 = vmatmul.mubr.f32.gmra.mrb[0].mxu0 %v526
        %v2733 = vpop.f32.mrb[0].mxu0
        %v2734 = vadd.f32 0.0, %v2733
        %v2735 = vpop.f32.mrb[0].mxu0
        %2736 = vmatprep.mubr.f32.mxu0 0.0
        %2737 = vmatmul.mubr.f32.gmra.mrb[0].mxu0 %v528
        %v2738 = vpop.f32.mrb[0].mxu0
        %v2739 = vadd.f32 0.0, %v2738
        %v2740 = vpop.f32.mrb[0].mxu0
        %2741 = vmatprep.mubr.f32.mxu0 0.0
        %2742 = vmatmul.mubr.f32.gmra.mrb[0].mxu0 %v530
        %v2743 = vpop.f32.mrb[0].mxu0
        %v2744 = vadd.f32 0.0, %v2743
        %v2745 = vpop.f32.mrb[0].mxu0
        %2746 = vmatprep.mubr.f32.mxu0 0.0
        %2747 = vmatmul.mubr.f32.gmra.mrb[0].mxu0 %v532
        %v2748 = vpop.f32.mrb[0].mxu0
        %v2749 = vadd.f32 0.0, %v2748
        %v2750 = vpop.f32.mrb[0].mxu0
        %2751 = vmatprep.mubr.f32.mxu0 0.0
        %2752 = vmatmul.mubr.f32.gmra.mrb[0].mxu0 %v534
        %v2753 = vpop.f32.mrb[0].mxu0
        %v2754 = vadd.f32 0.0, %v2753
        %v2755 = vpop.f32.mrb[0].mxu0
        %2756 = vmatprep.mubr.f32.mxu0 0.0
        %2757 = vmatmul.mubr.f32.gmra.mrb[0].mxu0 %v536
        %v2758 = vpop.f32.mrb[0].mxu0
        %v2759 = vadd.f32 0.0, %v2758
        %v2760 = vpop.f32.mrb[0].mxu0
        %2761 = vmatprep.mubr.f32.mxu0 0.0
        %2762 = vmatmul.mubr.f32.gmra.mrb[0].mxu0 %v538
        %v2763 = vpop.f32.mrb[0].mxu0
        %v2764 = vadd.f32 0.0, %v2763
        %v2765 = vpop.f32.mrb[0].mxu0
        %2766 = vmatprep.mubr.f32.mxu0 0.0
        %2767 = vmatmul.mubr.f32.gmra.mrb[0].mxu0 %v1744
        %v2768 = vpop.f32.mrb[0].mxu0
        %v2769 = vadd.f32 0.0, %v2768
        %v2770 = vpop.f32.mrb[0].mxu0
        %2771 = vmatprep.mubr.f32.mxu0 0.0
        %2772 = vmatmul.mubr.f32.gmra.mrb[0].mxu0 %v1746
        %v2773 = vpop.f32.mrb[0].mxu0
        %v2774 = vadd.f32 0.0, %v2773
        %v2775 = vpop.f32.mrb[0].mxu0
        %2776 = vmatprep.mubr.f32.mxu0 0.0
        %2777 = vmatmul.mubr.f32.gmra.mrb[0].mxu0 %v2555
        %v2778 = vpop.f32.mrb[0].mxu0
        %v2779 = vadd.f32 0.0, %v2778
        %v2780 = vpop.f32.mrb[0].mxu0
        %2781 = vmatprep.mubr.f32.mxu0 0.0
        %2782 = vmatmul.mubr.f32.gmra.mrb[0].mxu0 %v2557
        %v2783 = vpop.f32.mrb[0].mxu0
        %v2784 = vadd.f32 0.0, %v2783
        %v2785 = vpop.f32.mrb[0].mxu0
        %2786 = vdwg.mxu0
        %v2787 = vadd.f32 %v2515, %v2629
        %v2788 = vadd.f32 %v2516, %v2634
        %v2789 = vadd.f32 %v2517, %v2639
        %v2790 = vadd.f32 %v2518, %v2644
        %v2791 = vadd.f32 %v2519, %v2649
        %v2792 = vadd.f32 %v2520, %v2654
        %v2793 = vadd.f32 %v2521, %v2659
        %v2794 = vadd.f32 %v2522, %v2664
        %v2795 = vadd.f32 %v2523, %v2669
        %v2796 = vadd.f32 %v2524, %v2674
        %v2797 = vadd.f32 %v2525, %v2679
        %v2798 = vadd.f32 %v2526, %v2684
        %v2799 = vadd.f32 %v2527, %v2689
        %v2800 = vadd.f32 %v2528, %v2694
        %v2801 = vadd.f32 %v2529, %v2699
        %v2802 = vadd.f32 %v2530, %v2704
        %v2803 = vadd.f32 %v2531, %v2709
        %v2804 = vadd.f32 %v2532, %v2714
        %v2805 = vadd.f32 %v2533, %v2719
        %v2806 = vadd.f32 %v2534, %v2724
        %v2807 = vadd.f32 %v2535, %v2729
        %v2808 = vadd.f32 %v2536, %v2734
        %v2809 = vadd.f32 %v2537, %v2739
        %v2810 = vadd.f32 %v2538, %v2744
        %v2811 = vadd.f32 %v2539, %v2749
        %v2812 = vadd.f32 %v2540, %v2754
        %v2813 = vadd.f32 %v2541, %v2759
        %v2814 = vadd.f32 %v2542, %v2764
        %v2815 = vadd.f32 %v2543, %v2769
        %v2816 = vadd.f32 %v2544, %v2774
        %v2817 = vadd.f32 %v2545, %v2779
        %v2818 = vadd.f32 %v2546, %v2784
        %v2819 = vrot.slane %v341, 2
        %v2820 = vrot.slane %v342, 2
        %v2821 = vsel %vm1061, %v2819, %v2820
        %v2822 = vrot.slane %v343, 2
        %v2823 = vsel %vm1061, %v2820, %v2822
        %s2824 = scalar_lea.vmem %s1, 32
        %v2825 = vld [vmem:[%s2824] sm:$0x7]
        %v2826 = vsel %vm201, %v2821, 0
        %v2828 = vsel %vm201, %v2823, 0
        %v2831 = vsel %vm540, %v2825, 0
        %2833 = vmatprep.subr.mxu0 0.0
        %2834 = vmatpush1.msra.mxu0 %v2831
        %2835 = vmatprep.subr.mxu0 0.0
        %2836 = vmatpush1.msra.mxu0 0.0
        %2837 = vmatprep.subr.mxu0 0.0
        %2838 = vmatpush1.msra.mxu0 0.0
        %2839 = vmatprep.subr.mxu0 0.0
        %2840 = vmatpush1.msra.mxu0 0.0
        %2841 = vmatprep.subr.mxu0 0.0
        %2842 = vmatpush1.msra.mxu0 0.0
        %2843 = vmatprep.subr.mxu0 0.0
        %2844 = vmatpush1.msra.mxu0 0.0
        %2845 = vmatprep.subr.mxu0 0.0
        %2846 = vmatpush1.msra.mxu0 0.0
        %2847 = vmatprep.subr.mxu0 0.0
        %2848 = vmatpush1.msra.mxu0 0.0
        %2849 = vmatprep.subr.mxu0 0.0
        %2850 = vmatpush1.msra.mxu0 0.0
        %2851 = vmatprep.subr.mxu0 0.0
        %2852 = vmatpush1.msra.mxu0 0.0
        %2853 = vmatprep.subr.mxu0 0.0
        %2854 = vmatpush1.msra.mxu0 0.0
        %2855 = vmatprep.subr.mxu0 0.0
        %2856 = vmatpush1.msra.mxu0 0.0
        %2857 = vmatprep.subr.mxu0 0.0
        %2858 = vmatpush1.msra.mxu0 0.0
        %2859 = vmatprep.subr.mxu0 0.0
        %2860 = vmatpush1.msra.mxu0 0.0
        %2861 = vmatprep.subr.mxu0 0.0
        %2862 = vmatpush1.msra.mxu0 0.0
        %2863 = vmatprep.subr.mxu0 0.0
        %2864 = vmatpush1.msra.mxu0 0.0
        %2865 = vmatprep.subr.mxu0 0.0
        %2866 = vmatpush1.msra.mxu0 0.0
        %2867 = vmatprep.subr.mxu0 0.0
        %2868 = vmatpush1.msra.mxu0 0.0
        %2869 = vmatprep.subr.mxu0 0.0
        %2870 = vmatpush1.msra.mxu0 0.0
        %2871 = vmatprep.subr.mxu0 0.0
        %2872 = vmatpush1.msra.mxu0 0.0
        %2873 = vmatprep.subr.mxu0 0.0
        %2874 = vmatpush1.msra.mxu0 0.0
        %2875 = vmatprep.subr.mxu0 0.0
        %2876 = vmatpush1.msra.mxu0 0.0
        %2877 = vmatprep.subr.mxu0 0.0
        %2878 = vmatpush1.msra.mxu0 0.0
        %2879 = vmatprep.subr.mxu0 0.0
        %2880 = vmatpush1.msra.mxu0 0.0
        %2881 = vmatprep.subr.mxu0 0.0
        %2882 = vmatpush1.msra.mxu0 0.0
        %2883 = vmatprep.subr.mxu0 0.0
        %2884 = vmatpush1.msra.mxu0 0.0
        %2885 = vmatprep.subr.mxu0 0.0
        %2886 = vmatpush1.msra.mxu0 0.0
        %2887 = vmatprep.subr.mxu0 0.0
        %2888 = vmatpush1.msra.mxu0 0.0
        %2889 = vmatprep.subr.mxu0 0.0
        %2890 = vmatpush1.msra.mxu0 0.0
        %2891 = vmatprep.subr.mxu0 0.0
        %2892 = vmatpush1.msra.mxu0 0.0
        %2893 = vmatprep.subr.mxu0 0.0
        %2894 = vmatpush1.msra.mxu0 0.0
        %2895 = vmatprep.subr.mxu0 0.0
        %2896 = vmatpush1.msra.mxu0 0.0
        %2897 = vmatprep.mubr.f32.mxu0 0.0
        %2898 = vmatmul.mubr.f32.gmra.mrb[0].mxu0 %v1152
        %v2899 = vpop.f32.mrb[0].mxu0
        %v2900 = vadd.f32 0.0, %v2899
        %v2901 = vpop.f32.mrb[0].mxu0
        %2902 = vmatprep.mubr.f32.mxu0 0.0
        %2903 = vmatmul.mubr.f32.gmra.mrb[0].mxu0 %v1154
        %v2904 = vpop.f32.mrb[0].mxu0
        %v2905 = vadd.f32 0.0, %v2904
        %v2906 = vpop.f32.mrb[0].mxu0
        %2907 = vmatprep.mubr.f32.mxu0 0.0
        %2908 = vmatmul.mubr.f32.gmra.mrb[0].mxu0 %v1156
        %v2909 = vpop.f32.mrb[0].mxu0
        %v2910 = vadd.f32 0.0, %v2909
        %v2911 = vpop.f32.mrb[0].mxu0
        %2912 = vmatprep.mubr.f32.mxu0 0.0
        %2913 = vmatmul.mubr.f32.gmra.mrb[0].mxu0 %v1158
        %v2914 = vpop.f32.mrb[0].mxu0
        %v2915 = vadd.f32 0.0, %v2914
        %v2916 = vpop.f32.mrb[0].mxu0
        %2917 = vmatprep.mubr.f32.mxu0 0.0
        %2918 = vmatmul.mubr.f32.gmra.mrb[0].mxu0 %v1160
        %v2919 = vpop.f32.mrb[0].mxu0
        %v2920 = vadd.f32 0.0, %v2919
        %v2921 = vpop.f32.mrb[0].mxu0
        %2922 = vmatprep.mubr.f32.mxu0 0.0
        %2923 = vmatmul.mubr.f32.gmra.mrb[0].mxu0 %v1162
        %v2924 = vpop.f32.mrb[0].mxu0
        %v2925 = vadd.f32 0.0, %v2924
        %v2926 = vpop.f32.mrb[0].mxu0
        %2927 = vmatprep.mubr.f32.mxu0 0.0
        %2928 = vmatmul.mubr.f32.gmra.mrb[0].mxu0 %v1164
        %v2929 = vpop.f32.mrb[0].mxu0
        %v2930 = vadd.f32 0.0, %v2929
        %v2931 = vpop.f32.mrb[0].mxu0
        %2932 = vmatprep.mubr.f32.mxu0 0.0
        %2933 = vmatmul.mubr.f32.gmra.mrb[0].mxu0 %v1166
        %v2934 = vpop.f32.mrb[0].mxu0
        %v2935 = vadd.f32 0.0, %v2934
        %v2936 = vpop.f32.mrb[0].mxu0
        %2937 = vmatprep.mubr.f32.mxu0 0.0
        %2938 = vmatmul.mubr.f32.gmra.mrb[0].mxu0 %v1168
        %v2939 = vpop.f32.mrb[0].mxu0
        %v2940 = vadd.f32 0.0, %v2939
        %v2941 = vpop.f32.mrb[0].mxu0
        %2942 = vmatprep.mubr.f32.mxu0 0.0
        %2943 = vmatmul.mubr.f32.gmra.mrb[0].mxu0 %v1170
        %v2944 = vpop.f32.mrb[0].mxu0
        %v2945 = vadd.f32 0.0, %v2944
        %v2946 = vpop.f32.mrb[0].mxu0
        %2947 = vmatprep.mubr.f32.mxu0 0.0
        %2948 = vmatmul.mubr.f32.gmra.mrb[0].mxu0 %v1172
        %v2949 = vpop.f32.mrb[0].mxu0
        %v2950 = vadd.f32 0.0, %v2949
        %v2951 = vpop.f32.mrb[0].mxu0
        %2952 = vmatprep.mubr.f32.mxu0 0.0
        %2953 = vmatmul.mubr.f32.gmra.mrb[0].mxu0 %v1174
        %v2954 = vpop.f32.mrb[0].mxu0
        %v2955 = vadd.f32 0.0, %v2954
        %v2956 = vpop.f32.mrb[0].mxu0
        %2957 = vmatprep.mubr.f32.mxu0 0.0
        %2958 = vmatmul.mubr.f32.gmra.mrb[0].mxu0 %v1176
        %v2959 = vpop.f32.mrb[0].mxu0
        %v2960 = vadd.f32 0.0, %v2959
        %v2961 = vpop.f32.mrb[0].mxu0
        %2962 = vmatprep.mubr.f32.mxu0 0.0
        %2963 = vmatmul.mubr.f32.gmra.mrb[0].mxu0 %v1178
        %v2964 = vpop.f32.mrb[0].mxu0
        %v2965 = vadd.f32 0.0, %v2964
        %v2966 = vpop.f32.mrb[0].mxu0
        %2967 = vmatprep.mubr.f32.mxu0 0.0
        %2968 = vmatmul.mubr.f32.gmra.mrb[0].mxu0 %v1180
        %v2969 = vpop.f32.mrb[0].mxu0
        %v2970 = vadd.f32 0.0, %v2969
        %v2971 = vpop.f32.mrb[0].mxu0
        %2972 = vmatprep.mubr.f32.mxu0 0.0
        %2973 = vmatmul.mubr.f32.gmra.mrb[0].mxu0 %v1182
        %v2974 = vpop.f32.mrb[0].mxu0
        %v2975 = vadd.f32 0.0, %v2974
        %v2976 = vpop.f32.mrb[0].mxu0
        %2977 = vmatprep.mubr.f32.mxu0 0.0
        %2978 = vmatmul.mubr.f32.gmra.mrb[0].mxu0 %v1184
        %v2979 = vpop.f32.mrb[0].mxu0
        %v2980 = vadd.f32 0.0, %v2979
        %v2981 = vpop.f32.mrb[0].mxu0
        %2982 = vmatprep.mubr.f32.mxu0 0.0
        %2983 = vmatmul.mubr.f32.gmra.mrb[0].mxu0 %v1186
        %v2984 = vpop.f32.mrb[0].mxu0
        %v2985 = vadd.f32 0.0, %v2984
        %v2986 = vpop.f32.mrb[0].mxu0
        %2987 = vmatprep.mubr.f32.mxu0 0.0
        %2988 = vmatmul.mubr.f32.gmra.mrb[0].mxu0 %v1188
        %v2989 = vpop.f32.mrb[0].mxu0
        %v2990 = vadd.f32 0.0, %v2989
        %v2991 = vpop.f32.mrb[0].mxu0
        %2992 = vmatprep.mubr.f32.mxu0 0.0
        %2993 = vmatmul.mubr.f32.gmra.mrb[0].mxu0 %v1190
        %v2994 = vpop.f32.mrb[0].mxu0
        %v2995 = vadd.f32 0.0, %v2994
        %v2996 = vpop.f32.mrb[0].mxu0
        %2997 = vmatprep.mubr.f32.mxu0 0.0
        %2998 = vmatmul.mubr.f32.gmra.mrb[0].mxu0 %v1192
        %v2999 = vpop.f32.mrb[0].mxu0
        %v3000 = vadd.f32 0.0, %v2999
        %v3001 = vpop.f32.mrb[0].mxu0
        %3002 = vmatprep.mubr.f32.mxu0 0.0
        %3003 = vmatmul.mubr.f32.gmra.mrb[0].mxu0 %v1194
        %v3004 = vpop.f32.mrb[0].mxu0
        %v3005 = vadd.f32 0.0, %v3004
        %v3006 = vpop.f32.mrb[0].mxu0
        %3007 = vmatprep.mubr.f32.mxu0 0.0
        %3008 = vmatmul.mubr.f32.gmra.mrb[0].mxu0 %v1196
        %v3009 = vpop.f32.mrb[0].mxu0
        %v3010 = vadd.f32 0.0, %v3009
        %v3011 = vpop.f32.mrb[0].mxu0
        %3012 = vmatprep.mubr.f32.mxu0 0.0
        %3013 = vmatmul.mubr.f32.gmra.mrb[0].mxu0 %v1198
        %v3014 = vpop.f32.mrb[0].mxu0
        %v3015 = vadd.f32 0.0, %v3014
        %v3016 = vpop.f32.mrb[0].mxu0
        %3017 = vmatprep.mubr.f32.mxu0 0.0
        %3018 = vmatmul.mubr.f32.gmra.mrb[0].mxu0 %v1200
        %v3019 = vpop.f32.mrb[0].mxu0
        %v3020 = vadd.f32 0.0, %v3019
        %v3021 = vpop.f32.mrb[0].mxu0
        %3022 = vmatprep.mubr.f32.mxu0 0.0
        %3023 = vmatmul.mubr.f32.gmra.mrb[0].mxu0 %v1202
        %v3024 = vpop.f32.mrb[0].mxu0
        %v3025 = vadd.f32 0.0, %v3024
        %v3026 = vpop.f32.mrb[0].mxu0
        %3027 = vmatprep.mubr.f32.mxu0 0.0
        %3028 = vmatmul.mubr.f32.gmra.mrb[0].mxu0 %v1204
        %v3029 = vpop.f32.mrb[0].mxu0
        %v3030 = vadd.f32 0.0, %v3029
        %v3031 = vpop.f32.mrb[0].mxu0
        %3032 = vmatprep.mubr.f32.mxu0 0.0
        %3033 = vmatmul.mubr.f32.gmra.mrb[0].mxu0 %v1206
        %v3034 = vpop.f32.mrb[0].mxu0
        %v3035 = vadd.f32 0.0, %v3034
        %v3036 = vpop.f32.mrb[0].mxu0
        %3037 = vmatprep.mubr.f32.mxu0 0.0
        %3038 = vmatmul.mubr.f32.gmra.mrb[0].mxu0 %v2015
        %v3039 = vpop.f32.mrb[0].mxu0
        %v3040 = vadd.f32 0.0, %v3039
        %v3041 = vpop.f32.mrb[0].mxu0
        %3042 = vmatprep.mubr.f32.mxu0 0.0
        %3043 = vmatmul.mubr.f32.gmra.mrb[0].mxu0 %v2017
        %v3044 = vpop.f32.mrb[0].mxu0
        %v3045 = vadd.f32 0.0, %v3044
        %v3046 = vpop.f32.mrb[0].mxu0
        %3047 = vmatprep.mubr.f32.mxu0 0.0
        %3048 = vmatmul.mubr.f32.gmra.mrb[0].mxu0 %v2826
        %v3049 = vpop.f32.mrb[0].mxu0
        %v3050 = vadd.f32 0.0, %v3049
        %v3051 = vpop.f32.mrb[0].mxu0
        %3052 = vmatprep.mubr.f32.mxu0 0.0
        %3053 = vmatmul.mubr.f32.gmra.mrb[0].mxu0 %v2828
        %v3054 = vpop.f32.mrb[0].mxu0
        %v3055 = vadd.f32 0.0, %v3054
        %v3056 = vpop.f32.mrb[0].mxu0
        %3057 = vdwg.mxu0
        %v3058 = vadd.f32 %v2787, %v2900
        %v3059 = vadd.f32 %v2788, %v2905
        %v3060 = vadd.f32 %v2789, %v2910
        %v3061 = vadd.f32 %v2790, %v2915
        %v3062 = vadd.f32 %v2791, %v2920
        %v3063 = vadd.f32 %v2792, %v2925
        %v3064 = vadd.f32 %v2793, %v2930
        %v3065 = vadd.f32 %v2794, %v2935
        %v3066 = vadd.f32 %v2795, %v2940
        %v3067 = vadd.f32 %v2796, %v2945
        %v3068 = vadd.f32 %v2797, %v2950
        %v3069 = vadd.f32 %v2798, %v2955
        %v3070 = vadd.f32 %v2799, %v2960
        %v3071 = vadd.f32 %v2800, %v2965
        %v3072 = vadd.f32 %v2801, %v2970
        %v3073 = vadd.f32 %v2802, %v2975
        %v3074 = vadd.f32 %v2803, %v2980
        %v3075 = vadd.f32 %v2804, %v2985
        %v3076 = vadd.f32 %v2805, %v2990
        %v3077 = vadd.f32 %v2806, %v2995
        %v3078 = vadd.f32 %v2807, %v3000
        %v3079 = vadd.f32 %v2808, %v3005
        %v3080 = vadd.f32 %v2809, %v3010
        %v3081 = vadd.f32 %v2810, %v3015
        %v3082 = vadd.f32 %v2811, %v3020
        %v3083 = vadd.f32 %v2812, %v3025
        %v3084 = vadd.f32 %v2813, %v3030
        %v3085 = vadd.f32 %v2814, %v3035
        %v3086 = vadd.f32 %v2815, %v3040
        %v3087 = vadd.f32 %v2816, %v3045
        %v3088 = vadd.f32 %v2817, %v3050
        %v3089 = vadd.f32 %v2818, %v3055
        %v3090 = vld [vmem:[%s2] sm:$0x1]
        %v3092 = vlaneseq
        %v3093 = vshrl.u32 %v3092, 7
        %v3094 = vsub.s32 0, %v3093
        %v3095 = vrot.slane %v3090, %v3094
        %v3097 = vadd.f32 %v3058, %v3095
        %v3098 = vadd.f32 %v3059, %v3095
        %v3099 = vadd.f32 %v3060, %v3095
        %v3100 = vadd.f32 %v3061, %v3095
        %v3101 = vadd.f32 %v3062, %v3095
        %v3102 = vadd.f32 %v3063, %v3095
        %v3103 = vadd.f32 %v3064, %v3095
        %v3104 = vadd.f32 %v3065, %v3095
        %v3105 = vadd.f32 %v3066, %v3095
        %v3106 = vadd.f32 %v3067, %v3095
        %v3107 = vadd.f32 %v3068, %v3095
        %v3108 = vadd.f32 %v3069, %v3095
        %v3109 = vadd.f32 %v3070, %v3095
        %v3110 = vadd.f32 %v3071, %v3095
        %v3111 = vadd.f32 %v3072, %v3095
        %v3112 = vadd.f32 %v3073, %v3095
        %v3113 = vadd.f32 %v3074, %v3095
        %v3114 = vadd.f32 %v3075, %v3095
        %v3115 = vadd.f32 %v3076, %v3095
        %v3116 = vadd.f32 %v3077, %v3095
        %v3117 = vadd.f32 %v3078, %v3095
        %v3118 = vadd.f32 %v3079, %v3095
        %v3119 = vadd.f32 %v3080, %v3095
        %v3120 = vadd.f32 %v3081, %v3095
        %v3121 = vadd.f32 %v3082, %v3095
        %v3122 = vadd.f32 %v3083, %v3095
        %v3123 = vadd.f32 %v3084, %v3095
        %v3124 = vadd.f32 %v3085, %v3095
        %v3125 = vadd.f32 %v3086, %v3095
        %v3126 = vadd.f32 %v3087, %v3095
        %v3127 = vadd.f32 %v3088, %v3095
        %v3128 = vadd.f32 %v3089, %v3095
        %vm3129 = vcmask 261120
        %3130 = vst.msk [vmem:[%s163] sm:$0xff] %vm3129, %v3097
        %3131 = vst.msk [vmem:[%s163 + $0x8] sm:$0xff] %vm3129, %v3098
        %3132 = vst.msk [vmem:[%s163 + $0x10] sm:$0xff] %vm3129, %v3099
        %3133 = vst.msk [vmem:[%s163 + $0x18] sm:$0xff] %vm3129, %v3100
        %3134 = vst.msk [vmem:[%s163 + $0x20] sm:$0xff] %vm3129, %v3101
        %3135 = vst.msk [vmem:[%s163 + $0x28] sm:$0xff] %vm3129, %v3102
        %3136 = vst.msk [vmem:[%s163 + $0x30] sm:$0xff] %vm3129, %v3103
        %3137 = vst.msk [vmem:[%s163 + $0x38] sm:$0xff] %vm3129, %v3104
        %3138 = vst.msk [vmem:[%s163 + $0x40] sm:$0xff] %vm3129, %v3105
        %3139 = vst.msk [vmem:[%s163 + $0x48] sm:$0xff] %vm3129, %v3106
        %3140 = vst.msk [vmem:[%s163 + $0x50] sm:$0xff] %vm3129, %v3107
        %3141 = vst.msk [vmem:[%s163 + $0x58] sm:$0xff] %vm3129, %v3108
        %3142 = vst.msk [vmem:[%s163 + $0x60] sm:$0xff] %vm3129, %v3109
        %3143 = vst.msk [vmem:[%s163 + $0x68] sm:$0xff] %vm3129, %v3110
        %3144 = vst.msk [vmem:[%s163 + $0x70] sm:$0xff] %vm3129, %v3111
        %3145 = vst.msk [vmem:[%s163 + $0x78] sm:$0xff] %vm3129, %v3112
        %3146 = vst.msk [vmem:[%s163 + $0x80] sm:$0xff] %vm3129, %v3113
        %3147 = vst.msk [vmem:[%s163 + $0x88] sm:$0xff] %vm3129, %v3114
        %3148 = vst.msk [vmem:[%s163 + $0x90] sm:$0xff] %vm3129, %v3115
        %3149 = vst.msk [vmem:[%s163 + $0x98] sm:$0xff] %vm3129, %v3116
        %3150 = vst.msk [vmem:[%s163 + $0xa0] sm:$0xff] %vm3129, %v3117
        %3151 = vst.msk [vmem:[%s163 + $0xa8] sm:$0xff] %vm3129, %v3118
        %3152 = vst.msk [vmem:[%s163 + $0xb0] sm:$0xff] %vm3129, %v3119
        %3153 = vst.msk [vmem:[%s163 + $0xb8] sm:$0xff] %vm3129, %v3120
        %3154 = vst.msk [vmem:[%s163 + $0xc0] sm:$0xff] %vm3129, %v3121
        %3155 = vst.msk [vmem:[%s163 + $0xc8] sm:$0xff] %vm3129, %v3122
        %3156 = vst.msk [vmem:[%s163 + $0xd0] sm:$0xff] %vm3129, %v3123
        %3157 = vst.msk [vmem:[%s163 + $0xd8] sm:$0xff] %vm3129, %v3124
        %3158 = vst.msk [vmem:[%s163 + $0xe0] sm:$0xff] %vm3129, %v3125
        %3159 = vst.msk [vmem:[%s163 + $0xe8] sm:$0xff] %vm3129, %v3126
        %3160 = vst.msk [vmem:[%s163 + $0xf0] sm:$0xff] %vm3129, %v3127
        %3161 = vst.msk [vmem:[%s163 + $0xf8] sm:$0xff] %vm3129, %v3128
        %s3162 = sand.u32 %s93, 1
        %s3163 = scalar_lea.sflag [#allocation4], %s3162
        %s3164 = sand.u32 %s93, 1
        %s3165 = smul.addr %s3164, 256
        %s3166 = scalar_lea.vmem [#allocation3], %s3165
        // Predicated region
        $region33: #{tpu_custom_call.1} parent=31 // pred_check
          %p3167 = pneg %p103
        $region34: #{tpu_custom_call.1} parent=31 // pred_check_branch
          %3169 = sbr.rel (%p3167) target = $region36
        $region35: #{tpu_custom_call.1} parent=31 // pred_region
          %s3171 = ssub.s32 4096, 4096
          %3172 = vsyncadd %s3163, %s3171
          %s3173 = smul.addr %s17, 32
          %s3174 = smul.addr %s3173, 128
          %s3175 = scalar_lea.hbm %s3, %s3174
          %s3176 = sshll.u32 %s3166, 4
          %s3177 = int_to_ptr.vmem [resolvable:$true] %s3176
          %3182 = dma.vmem_to_hbm [thread:$0]  %s3177, 4096, %s3175, %s3163, 128, 128, 8
        $region36: #{tpu_custom_call.1} parent=31 // pred_fallthru
          _
      $region32: #{tpu_custom_call.1} parent=5 // pred_fallthru
        _
      %p3183 = scmp.le.s32.totalorder 2, %s12
      // Predicated region
      $region37: #{tpu_custom_call.1} parent=5 // pred_check
        %p3184 = pneg %p3183
      $region38: #{tpu_custom_call.1} parent=5 // pred_check_branch
        %3186 = sbr.rel (%p3184) target = $region40
      $region39: #{tpu_custom_call.1} parent=5 // pred_region
        %s3187 = ssub.s32 %s12, 2
        // Predicated region
        $region41: #{tpu_custom_call.1} parent=39 // pred_check
          %p3188 = pneg %p109
        $region42: #{tpu_custom_call.1} parent=39 // pred_check_branch
          %3190 = sbr.rel (%p3188) target = $region44
        $region43: #{tpu_custom_call.1} parent=39 // pred_region
          %s3191 = sand.u32 %s94, 1
          %s3192 = scalar_lea.sflag [#allocation4], %s3191
          %s3193 = sand.u32 %s94, 1
          %s3194 = smul.addr %s3193, 256
          %s3195 = scalar_lea.vmem [#allocation3], %s3194
          %3196 = dma.done %s3192, 4096
        $region44: #{tpu_custom_call.1} parent=39 // pred_fallthru
          _
      $region40: #{tpu_custom_call.1} parent=5 // pred_fallthru
        _
    $region6: #{tpu_custom_call.1} parent=1 // loop_footer
      %s16 = sadd.s32 1, %s12
    $region7: #{tpu_custom_call.1} parent=1 // loop_footer_branch
      %11 = sbr.rel target = $region3
    $region8: #{tpu_custom_call.1} parent=1 // loop_exit
      _
    %3197 = vsyncpa [#allocation4], 1
    %s3198 = scalar_lea.sflag [#allocation4], 1
    %3199 = vsyncpa %s3198, 1

</llo_original>
